<compile_context>
chip_gen: v7x
topology: tpu7x:2x2x1
jax: 0.10.0
libtpu: 0.0.40
codegen_flags: <defaults>
</compile_context>

<pallas_src>
import functools

import jax
import jax.numpy as jnp
from jax import lax
from jax.experimental import pallas as pl
from jax.experimental.pallas import tpu as pltpu


# ----------------------------- in-kernel math ------------------------------

_SQRT_HALF = 0.7071067811865476


def _gelu(x):
    # torch.nn.GELU() default: exact erf formulation.
    return 0.5 * x * (1.0 + lax.erf(x * _SQRT_HALF))


def _layernorm(x, gamma, beta, d_true, eps=1e-5):
    # One-pass statistics (sum, sum of squares), biased variance, eps=1e-5.
    # NOTE: E[x^2]-E[x]^2 is adequate in f32 for LayerNorm-scale activations.
    # `d_true` is the un-padded channel count; padded lanes are zero so they
    # contribute nothing, and gamma/beta are zero-padded so padded lanes come
    # out exactly zero.
    inv_d = 1.0 / float(d_true)
    s1 = jnp.sum(x, axis=-1, keepdims=True)
    s2 = jnp.sum(x * x, axis=-1, keepdims=True)
    mu = s1 * inv_d
    var = jnp.maximum(s2 * inv_d - mu * mu, 0.0)
    return (x - mu) * lax.rsqrt(var + eps) * gamma + beta


def bytenet_block_kernel(xm1_ref, x0_ref, xp1_ref,
                         ln1_g, ln1_b, w_pf1, b_pf1,
                         ln2_g, ln2_b,
                         w_conv, b_conv,
                         ln3_g, ln3_b, w_pf2, b_pf2,
                         o_ref,
                         *, kernel_size, dilation, pad, pad8, tile_l,
                         d_in, d_h, l_true, need_mask,
                         compute_dtype, conv_mode):
    i = pl.program_id(1)
    x0 = x0_ref[0]                                     # (tile_l, d_c) f32

    # Window = [pad8-row tail of prev tile | current tile | pad8-row head of
    # next tile].  Edge tiles reuse index-clamped neighbours; those rows are
    # masked to zero below so the (wrong) clamped data never contributes.
    if pad > 0:
        win = jnp.concatenate([xm1_ref[0], x0, xp1_ref[0]], axis=0)
        win_off = pad8
    else:
        win = x0
        win_off = 0

    # ---- sequence1: LN -> GELU -> PF1 (1x1 conv == matmul) -> LN -> GELU ----
    h = _gelu(_layernorm(win, ln1_g[...], ln1_b[...], d_in))
    h = (jnp.dot(h.astype(compute_dtype), w_pf1[...],
                 preferred_element_type=jnp.float32) + b_pf1[...])
    h = _gelu(_layernorm(h, ln2_g[...], ln2_b[...], d_h))   # (tile_w, d_h_p)

    # Zero the rows whose sequence position lies outside [0, L): this is the
    # zero padding the reference conv applies to the post-sequence1 activation.
    if need_mask:
        r = lax.broadcasted_iota(jnp.int32, (h.shape[0], 1), 0)
        p = i * tile_l - win_off + r
        h = jnp.where(jnp.logical_and(p >= 0, p < l_true), h, 0.0)

    # Cast once, BEFORE the conv taps are sliced (half VMEM / half vld+vst of
    # the conv feed on the bf16 path).
    hc = h.astype(compute_dtype)
    off0 = win_off - pad          # window row of tap 0 for output row 0

    # ---- dilated conv (groups=1) --------------------------------------------
    if conv_mode == "accum":
        # k accumulating matmuls: avoids materializing a (tile_l, k*d_h) slab.
        acc = None
        for t in range(kernel_size):
            s = off0 + t * dilation
            part = jnp.dot(hc[s:s + tile_l, :], w_conv[t],
                           preferred_element_type=jnp.float32)
            acc = part if acc is None else acc + part
        c = acc + b_conv[...]
    else:
        # Fused variant: one (tile_l, k*d_h) x (k*d_h, d_h) matmul.
        if kernel_size > 1:
            slab = jnp.concatenate(
                [hc[off0 + t * dilation:off0 + t * dilation + tile_l, :]
                 for t in range(kernel_size)], axis=-1)
        else:
            slab = hc[off0:off0 + tile_l, :]
        c = (jnp.dot(slab, w_conv[...],
                     preferred_element_type=jnp.float32) + b_conv[...])

    # ---- sequence2: LN -> GELU -> PF2 ---------------------------------------
    c = _gelu(_layernorm(c, ln3_g[...], ln3_b[...], d_h))
    c = (jnp.dot(c.astype(compute_dtype), w_pf2[...],
                 preferred_element_type=jnp.float32) + b_pf2[...])

    # ---- residual ------------------------------------------------------------
    o_ref[0] = x0 + c


# ------------------------------ host wrapper -------------------------------

def _round_up(v, m):
    return ((v + m - 1) // m) * m


def _vmem_capacity_bytes():
    """Per-core VMEM capacity; conservative 64 MiB (v7x-class) fallback."""
    try:
        cap = int(pltpu.get_tpu_info().vmem_capacity_bytes)
        if cap > 0:
            return cap
    except Exception:
        pass
    return 64 * 1024 * 1024


def bytenet_block(x, params, *, kernel_size, dilation,
                  max_tile_l=None, compute_dtype=jnp.bfloat16,
                  conv_mode="accum", single_buffer_consts=True):
    """x: (N, L, d_in) float32 -> (N, L, d_out) float32 (d_out == d_in).

    compute_dtype=bfloat16 is the production default (MXU-native); the bf16
    path casts matmul activations and weights to bf16 while keeping LN stats,
    accumulation and the residual in f32.  Pass jnp.float32 for exact parity.
    """
    N, L, d_in = x.shape
    d_h = params["w_pf1"].shape[1]
    d_out = params["w_pf2"].shape[1]
    assert d_out == d_in, "residual connection requires d_out == d_in"
    assert params["w_conv"].shape == (kernel_size, d_h, d_h)
    assert conv_mode in ("accum", "slab")
    # 'same' padding only works for an even dilation*(k-1); the PyTorch module
    # itself would hit a shape mismatch in the residual otherwise.
    assert (dilation * (kernel_size - 1)) % 2 == 0, \
        "unsupported (even effective kernel) conv configuration"
    pad = dilation * (kernel_size - 1) // 2
    pad8 = _round_up(pad, 8) if pad > 0 else 8        # sublane-aligned halo

    # --- channel layout: only lane-pad when d is not already a 128-multiple ---
    chan_aligned = (d_in % 128 == 0)
    d_c = d_in if chan_aligned else _round_up(d_in, 128)   # x / output lanes
    d_h_p = _round_up(d_h, 128)

    f32 = jnp.float32
    bpe_w = jnp.dtype(compute_dtype).itemsize
    w_elems = d_c * d_h_p + kernel_size * d_h_p * d_h_p + d_h_p * d_c

    # --- pick tile_l from a VMEM budget (v7x: 64 MiB/TC, v5e/v6e: 128 MiB) ---
    vmem_cap = _vmem_capacity_bytes()
    budget = int(0.78 * vmem_cap)         # headroom for Mosaic internal scratch
    if max_tile_l is None:
        if vmem_cap >= (96 << 20):        # v5e / v6e: big tiles, amortize steps
            max_tile_l = 1024 if max(d_c, d_h_p) <= 256 else 512
        else:                             # v7x-class VMEM budget
            max_tile_l = 256

    gran = pad8 if pad > 0 else 8         # tile_l must be a multiple of pad8

    def vmem_est(tl):
        tw = tl + 2 * pad8 if pad > 0 else tl
        x_io = 2 * (tl + 2 * pad8) * d_c * 4          # x + halos, double-buffered
        o_io = 2 * tl * d_c * 4                       # output, double-buffered
        consts = ((1 if single_buffer_consts else 2) * w_elems * bpe_w
                  + 2 * 12 * max(d_c, d_h_p) * 4)     # gammas/betas/biases
        inter = (tw * (d_c + d_h_p) * 4 + tw * d_h_p * bpe_w
                 + tl * (2 * d_h_p + d_c) * 4)
        if conv_mode == "slab":
            inter += tl * kernel_size * d_h_p * bpe_w
        return x_io + o_io + consts + inter

    tile_l = max(gran, min(_round_up(max_tile_l, gran), _round_up(L, gran)))
    while tile_l > gran and vmem_est(tile_l) > budget:
        tile_l = max(gran, _round_up(tile_l // 2, gran))
    assert pad8 <= tile_l, "conv halo must fit inside one neighbouring tile"

    L_pad = _round_up(L, tile_l)
    num_lt = L_pad // tile_l
    hpb = tile_l // pad8                  # halo blocks per L tile
    n_halo_blk = L_pad // pad8

    # --- host-side padding only when actually needed (no extra HBM traffic
    #     for 128-aligned channels and L % tile_l == 0) ---
    x_p = x.astype(f32)
    if (L_pad != L) or (not chan_aligned):
        x_p = jnp.pad(x_p, ((0, 0), (0, L_pad - L), (0, d_c - d_in)))

    def pad_vec(a, cols):                 # (1, d) -> (1, cols) f32
        a = a.reshape(1, -1).astype(f32)
        return jnp.pad(a, ((0, 0), (0, cols - a.shape[1])))

    def pad_mat(a, rows, cols):
        return jnp.pad(a.astype(f32),
                       ((0, rows - a.shape[0]), (0, cols - a.shape[1])))

    ln1_g = pad_vec(params["ln1_g"], d_c)
    ln1_b = pad_vec(params["ln1_b"], d_c)
    ln2_g = pad_vec(params["ln2_g"], d_h_p)
    ln2_b = pad_vec(params["ln2_b"], d_h_p)
    ln3_g = pad_vec(params["ln3_g"], d_h_p)
    ln3_b = pad_vec(params["ln3_b"], d_h_p)
    b_pf1 = pad_vec(params["b_pf1"], d_h_p)
    b_conv = pad_vec(params["b_conv"], d_h_p)       # added after the conv dots
    b_pf2 = pad_vec(params["b_pf2"], d_c)

    w_pf1 = pad_mat(params["w_pf1"], d_c, d_h_p).astype(compute_dtype)
    w_pf2 = pad_mat(params["w_pf2"], d_h_p, d_c).astype(compute_dtype)
    wc = jnp.pad(params["w_conv"].astype(f32),
                 ((0, 0), (0, d_h_p - d_h), (0, d_h_p - d_h)))
    if conv_mode == "accum":
        w_conv = wc.astype(compute_dtype)                       # (k, dh, dh)
        w_conv_block = (kernel_size, d_h_p, d_h_p)
    else:
        w_conv = wc.reshape(kernel_size * d_h_p, d_h_p).astype(compute_dtype)
        w_conv_block = (kernel_size * d_h_p, d_h_p)

    need_mask = (pad > 0) or (L_pad != L)
    kern = functools.partial(
        bytenet_block_kernel,
        kernel_size=kernel_size, dilation=dilation, pad=pad, pad8=pad8,
        tile_l=tile_l, d_in=d_in, d_h=d_h, l_true=L, need_mask=need_mask,
        compute_dtype=compute_dtype, conv_mode=conv_mode)

    # --- cost estimate + VMEM limit (budget-derived, capped below physical) ---
    flops = 2 * N * L_pad * w_elems
    transc = N * L_pad * (d_c + 2 * d_h_p + 3)
    bytes_accessed = (4 * N * L_pad * 2 * d_c                   # x in + out
                      + 4 * N * num_lt * 2 * pad8 * d_c         # halo slivers
                      + w_elems * bpe_w)
    cost = pl.CostEstimate(flops=int(flops), transcendentals=int(transc),
                           bytes_accessed=int(bytes_accessed))
    est = vmem_est(tile_l)
    vmem_limit = int(min(int(0.98 * vmem_cap), max(32 << 20, 2 * est)))

    def build_and_call(const_pipeline_mode):
        def const_spec(shape):
            zeros = (0,) * len(shape)
            idx = lambda n, i, _z=zeros: _z
            if const_pipeline_mode is None:
                return pl.BlockSpec(shape, idx)
            return pl.BlockSpec(shape, idx, pipeline_mode=const_pipeline_mode)

        x_cur = pl.BlockSpec((1, tile_l, d_c), lambda n, i: (n, i, 0))
        x_prev = pl.BlockSpec(
            (1, pad8, d_c), lambda n, i: (n, jnp.maximum(i * hpb - 1, 0), 0))
        x_next = pl.BlockSpec(
            (1, pad8, d_c),
            lambda n, i: (n, jnp.minimum((i + 1) * hpb, n_halo_blk - 1), 0))

        in_specs = [
            x_prev, x_cur, x_next,
            const_spec((1, d_c)), const_spec((1, d_c)),          # ln1 g/b
            const_spec((d_c, d_h_p)), const_spec((1, d_h_p)),    # PF1 w/b
            const_spec((1, d_h_p)), const_spec((1, d_h_p)),      # ln2 g/b
            const_spec(w_conv_block), const_spec((1, d_h_p)),    # conv w/b
            const_spec((1, d_h_p)), const_spec((1, d_h_p)),      # ln3 g/b
            const_spec((d_h_p, d_c)), const_spec((1, d_c)),      # PF2 w/b
        ]
        out_spec = pl.BlockSpec((1, tile_l, d_c), lambda n, i: (n, i, 0))

        return pl.pallas_call(
            kern,
            out_shape=jax.ShapeDtypeStruct((N, L_pad, d_c), jnp.float32),
            grid_spec=pltpu.PrefetchScalarGridSpec(
                num_scalar_prefetch=0,
                grid=(N, num_lt),
                in_specs=in_specs,
                out_specs=out_spec),
            compiler_params=pltpu.CompilerParams(
                dimension_semantics=("parallel", "parallel"),
                vmem_limit_bytes=vmem_limit),
            cost_estimate=cost,
        )(x_p, x_p, x_p,
          ln1_g, ln1_b, w_pf1, b_pf1,
          ln2_g, ln2_b, w_conv, b_conv,
          ln3_g, ln3_b, w_pf2, b_pf2)

    if single_buffer_consts:
        try:
            # Grid-invariant constants: single-buffer them (halves weight VMEM,
            # critical for v7x's 64 MiB per-core budget).
            out_p = build_and_call(pl.Buffered(1))
        except Exception:
            out_p = build_and_call(None)   # JAX build without pipeline_mode
    else:
        out_p = build_and_call(None)

    if (L_pad != L) or (d_c != d_out):
        out_p = out_p[:, :L, :d_out]
    return out_p


# --------------------------- pure-JAX reference -----------------------------

def reference(x, p, *, kernel_size, dilation):
    pad = dilation * (kernel_size - 1) // 2

    def ln(v, g, b):
        mu = jnp.mean(v, -1, keepdims=True)
        var = jnp.mean((v - mu) ** 2, -1, keepdims=True)
        return (v - mu) / jnp.sqrt(var + 1e-5) * g + b

    gelu = lambda v: 0.5 * v * (1.0 + lax.erf(v / jnp.sqrt(2.0)))

    h = gelu(ln(x, p["ln1_g"], p["ln1_b"]))
    h = h @ p["w_pf1"] + p["b_pf1"]
    h = gelu(ln(h, p["ln2_g"], p["ln2_b"]))
    # dilated conv1d, NLC layout, rhs (k, in, out) == 'WIO'
    h = lax.conv_general_dilated(
        h, p["w_conv"], window_strides=(1,), padding=[(pad, pad)],
        rhs_dilation=(dilation,),
        dimension_numbers=("NWC", "WIO", "NWC")) + p["b_conv"]
    h = gelu(ln(h, p["ln3_g"], p["ln3_b"]))
    h = h @ p["w_pf2"] + p["b_pf2"]
    return x + h


# --------------------------------- main -------------------------------------

def _make_params(key, d_in, d_h, d_out, kernel_size):
    ks = jax.random.split(key, 12)
    return {
        "ln1_g": 1.0 + 0.05 * jax.random.normal(ks[0], (1, d_in), jnp.float32),
        "ln1_b": 0.05 * jax.random.normal(ks[1], (1, d_in), jnp.float32),
        "w_pf1": 0.1 * jax.random.normal(ks[2], (d_in, d_h), jnp.float32),
        "b_pf1": 0.05 * jax.random.normal(ks[3], (1, d_h), jnp.float32),
        "ln2_g": 1.0 + 0.05 * jax.random.normal(ks[4], (1, d_h), jnp.float32),
        "ln2_b": 0.05 * jax.random.normal(ks[5], (1, d_h), jnp.float32),
        # conv weight laid out as (k, in, out); torch weight[o, i, t] == w_conv[t, i, o]
        "w_conv": 0.1 * jax.random.normal(ks[6], (kernel_size, d_h, d_h), jnp.float32),
        "b_conv": 0.05 * jax.random.normal(ks[7], (1, d_h), jnp.float32),
        "ln3_g": 1.0 + 0.05 * jax.random.normal(ks[8], (1, d_h), jnp.float32),
        "ln3_b": 0.05 * jax.random.normal(ks[9], (1, d_h), jnp.float32),
        "w_pf2": 0.1 * jax.random.normal(ks[10], (d_h, d_out), jnp.float32),
        "b_pf2": 0.05 * jax.random.normal(ks[11], (1, d_out), jnp.float32),
    }


if __name__ == "__main__":
    key = jax.random.PRNGKey(0)
    ks = jax.random.split(key, 6)

    # ---- test 1: small single-tile config, f32, strict parity (accum conv) --
    N, L, d_in, d_h, d_out = 2, 16, 32, 64, 32
    kernel_size, dilation = 3, 2
    params = _make_params(ks[0], d_in, d_h, d_out, kernel_size)
    x = jax.random.normal(ks[1], (N, L, d_in), jnp.float32)

    out = bytenet_block(x, params, kernel_size=kernel_size, dilation=dilation,
                        compute_dtype=jnp.float32)
    out = jax.block_until_ready(out)
    ref = reference(x, params, kernel_size=kernel_size, dilation=dilation)
    assert out.shape == (N, L, d_out), out.shape
    assert jnp.allclose(out, ref, atol=2e-4, rtol=2e-4), \
        float(jnp.max(jnp.abs(out - ref)))

    # ---- test 2: multi-tile halo + ragged L / channel padding, f32, accum ---
    N2, L2, d_in2, d_h2, d_out2 = 2, 200, 40, 72, 40
    k2_, dil2 = 5, 2
    params2 = _make_params(ks[2], d_in2, d_h2, d_out2, k2_)
    x2 = jax.random.normal(ks[3], (N2, L2, d_in2), jnp.float32)

    ref2 = reference(x2, params2, kernel_size=k2_, dilation=dil2)
    out2 = bytenet_block(x2, params2, kernel_size=k2_, dilation=dil2,
                         max_tile_l=64, compute_dtype=jnp.float32)
    out2 = jax.block_until_ready(out2)
    assert out2.shape == (N2, L2, d_out2), out2.shape
    assert jnp.allclose(out2, ref2, atol=2e-4, rtol=2e-4), \
        float(jnp.max(jnp.abs(out2 - ref2)))

    # ---- test 3: same config, fused slab conv path, f32 ---------------------
    out3 = bytenet_block(x2, params2, kernel_size=k2_, dilation=dil2,
                         max_tile_l=64, compute_dtype=jnp.float32,
                         conv_mode="slab")
    out3 = jax.block_until_ready(out3)
    assert jnp.allclose(out3, ref2, atol=2e-4, rtol=2e-4), \
        float(jnp.max(jnp.abs(out3 - ref2)))

    # ---- test 4: 128-aligned channels, L % tile_l == 0 (no host pad/slice) --
    N4, L4, d4, dh4 = 2, 32, 128, 128
    k4_, dil4 = 3, 1
    params4 = _make_params(ks[4], d4, dh4, d4, k4_)
    x4 = jax.random.normal(ks[5], (N4, L4, d4), jnp.float32)
    ref4 = reference(x4, params4, kernel_size=k4_, dilation=dil4)
    out4 = bytenet_block(x4, params4, kernel_size=k4_, dilation=dil4,
                         compute_dtype=jnp.float32)
    out4 = jax.block_until_ready(out4)
    assert out4.shape == (N4, L4, d4), out4.shape
    assert jnp.allclose(out4, ref4, atol=2e-4, rtol=2e-4), \
        float(jnp.max(jnp.abs(out4 - ref4)))

    # ---- test 5: production defaults (bf16 matmuls), loose tolerance --------
    out_bf16 = bytenet_block(x, params, kernel_size=kernel_size,
                             dilation=dilation)        # compute_dtype=bfloat16
    out_bf16 = jax.block_until_ready(out_bf16)
    assert jnp.allclose(out_bf16, ref, atol=0.25, rtol=0.05), \
        float(jnp.max(jnp.abs(out_bf16 - ref)))

    print("KERNEL_OK")
</pallas_src>

<mosaic_0001>
module attributes {stable_mosaic.version = 11 : i64} {
  func.func @bytenet_block_kernel(%arg0: i32, %arg1: i32, %arg2: memref<1x8x128xf32, #tpu.memory_space<vmem>>, %arg3: memref<1x16x128xf32, #tpu.memory_space<vmem>>, %arg4: memref<1x8x128xf32, #tpu.memory_space<vmem>>, %arg5: memref<1x128xf32, #tpu.memory_space<vmem>>, %arg6: memref<1x128xf32, #tpu.memory_space<vmem>>, %arg7: memref<128x128xf32, #tpu.memory_space<vmem>>, %arg8: memref<1x128xf32, #tpu.memory_space<vmem>>, %arg9: memref<1x128xf32, #tpu.memory_space<vmem>>, %arg10: memref<1x128xf32, #tpu.memory_space<vmem>>, %arg11: memref<3x128x128xf32, #tpu.memory_space<vmem>>, %arg12: memref<1x128xf32, #tpu.memory_space<vmem>>, %arg13: memref<1x128xf32, #tpu.memory_space<vmem>>, %arg14: memref<1x128xf32, #tpu.memory_space<vmem>>, %arg15: memref<128x128xf32, #tpu.memory_space<vmem>>, %arg16: memref<1x128xf32, #tpu.memory_space<vmem>>, %arg17: memref<1x16x128xf32, #tpu.memory_space<vmem>>) attributes {dimension_semantics = [#tpu.dimension_semantics<parallel>, #tpu.dimension_semantics<parallel>], iteration_bounds = array<i64: 2, 1>, scalar_prefetch = 0 : i64, scratch_operands = 0 : i64, tpu.core_type = #tpu.core_type<tc>, window_params = [{transform_indices = @transform_0, window_bounds = array<i64: 1, 8, 128>}, {transform_indices = @transform_1, window_bounds = array<i64: 1, 16, 128>}, {transform_indices = @transform_2, window_bounds = array<i64: 1, 8, 128>}, {pipeline_mode = #tpu.pipeline_mode<synchronous>, transform_indices = @transform_3, window_bounds = array<i64: 1, 128>}, {pipeline_mode = #tpu.pipeline_mode<synchronous>, transform_indices = @transform_4, window_bounds = array<i64: 1, 128>}, {pipeline_mode = #tpu.pipeline_mode<synchronous>, transform_indices = @transform_5, window_bounds = array<i64: 128, 128>}, {pipeline_mode = #tpu.pipeline_mode<synchronous>, transform_indices = @transform_6, window_bounds = array<i64: 1, 128>}, {pipeline_mode = #tpu.pipeline_mode<synchronous>, transform_indices = @transform_7, window_bounds = array<i64: 1, 128>}, {pipeline_mode = #tpu.pipeline_mode<synchronous>, transform_indices = @transform_8, window_bounds = array<i64: 1, 128>}, {pipeline_mode = #tpu.pipeline_mode<synchronous>, transform_indices = @transform_9, window_bounds = array<i64: 3, 128, 128>}, {pipeline_mode = #tpu.pipeline_mode<synchronous>, transform_indices = @transform_10, window_bounds = array<i64: 1, 128>}, {pipeline_mode = #tpu.pipeline_mode<synchronous>, transform_indices = @transform_11, window_bounds = array<i64: 1, 128>}, {pipeline_mode = #tpu.pipeline_mode<synchronous>, transform_indices = @transform_12, window_bounds = array<i64: 1, 128>}, {pipeline_mode = #tpu.pipeline_mode<synchronous>, transform_indices = @transform_13, window_bounds = array<i64: 128, 128>}, {pipeline_mode = #tpu.pipeline_mode<synchronous>, transform_indices = @transform_14, window_bounds = array<i64: 1, 128>}, {transform_indices = @transform_15, window_bounds = array<i64: 1, 16, 128>}]} {
    %c0 = arith.constant 0 : index
    %c0_0 = arith.constant 0 : index
    %c0_1 = arith.constant 0 : index
    %0 = vector.load %arg3[%c0, %c0_0, %c0_1] : memref<1x16x128xf32, #tpu.memory_space<vmem>>, vector<1x16x128xf32>
    %1 = vector.shape_cast %0 : vector<1x16x128xf32> to vector<16x128xf32>
    %c0_2 = arith.constant 0 : index
    %c0_3 = arith.constant 0 : index
    %c0_4 = arith.constant 0 : index
    %2 = vector.load %arg2[%c0_2, %c0_3, %c0_4] : memref<1x8x128xf32, #tpu.memory_space<vmem>>, vector<1x8x128xf32>
    %3 = vector.shape_cast %2 : vector<1x8x128xf32> to vector<8x128xf32>
    %c0_5 = arith.constant 0 : index
    %c0_6 = arith.constant 0 : index
    %c0_7 = arith.constant 0 : index
    %4 = vector.load %arg4[%c0_5, %c0_6, %c0_7] : memref<1x8x128xf32, #tpu.memory_space<vmem>>, vector<1x8x128xf32>
    %5 = vector.shape_cast %4 : vector<1x8x128xf32> to vector<8x128xf32>
    %6 = tpu.concatenate %3, %1, %5 in 0 : vector<8x128xf32>, vector<16x128xf32>, vector<8x128xf32> -> vector<32x128xf32>
    %c0_8 = arith.constant 0 : index
    %c0_9 = arith.constant 0 : index
    %7 = vector.load %arg5[%c0_8, %c0_9] : memref<1x128xf32, #tpu.memory_space<vmem>>, vector<1x128xf32>
    %c0_10 = arith.constant 0 : index
    %c0_11 = arith.constant 0 : index
    %8 = vector.load %arg6[%c0_10, %c0_11] : memref<1x128xf32, #tpu.memory_space<vmem>>, vector<1x128xf32>
    %cst = arith.constant dense<0.000000e+00> : vector<32xf32>
    %9 = vector.multi_reduction <add>, %6, %cst [1] : vector<32x128xf32> to vector<32xf32>
    %10 = vector.shape_cast %9 : vector<32xf32> to vector<32x1xf32>
    %11 = arith.mulf %6, %6 : vector<32x128xf32>
    %cst_12 = arith.constant dense<0.000000e+00> : vector<32xf32>
    %12 = vector.multi_reduction <add>, %11, %cst_12 [1] : vector<32x128xf32> to vector<32xf32>
    %13 = vector.shape_cast %12 : vector<32xf32> to vector<32x1xf32>
    %cst_13 = arith.constant 3.125000e-02 : f32
    %14 = vector.broadcast %cst_13 : f32 to vector<32x1xf32>
    %15 = arith.mulf %10, %14 : vector<32x1xf32>
    %cst_14 = arith.constant 3.125000e-02 : f32
    %16 = vector.broadcast %cst_14 : f32 to vector<32x1xf32>
    %17 = arith.mulf %13, %16 : vector<32x1xf32>
    %18 = arith.mulf %15, %15 : vector<32x1xf32>
    %19 = arith.subf %17, %18 : vector<32x1xf32>
    %cst_15 = arith.constant 0.000000e+00 : f32
    %20 = vector.broadcast %cst_15 : f32 to vector<32x1xf32>
    %21 = arith.maximumf %19, %20 : vector<32x1xf32>
    %22 = vector.broadcast %15 : vector<32x1xf32> to vector<32x128xf32>
    %23 = arith.subf %6, %22 : vector<32x128xf32>
    %cst_16 = arith.constant 9.99999974E-6 : f32
    %24 = vector.broadcast %cst_16 : f32 to vector<32x1xf32>
    %25 = arith.addf %21, %24 : vector<32x1xf32>
    %26 = math.rsqrt %25 : vector<32x1xf32>
    %27 = vector.broadcast %26 : vector<32x1xf32> to vector<32x128xf32>
    %28 = arith.mulf %23, %27 : vector<32x128xf32>
    %29 = vector.broadcast %7 : vector<1x128xf32> to vector<32x128xf32>
    %30 = arith.mulf %28, %29 : vector<32x128xf32>
    %31 = vector.broadcast %8 : vector<1x128xf32> to vector<32x128xf32>
    %32 = arith.addf %30, %31 : vector<32x128xf32>
    %cst_17 = arith.constant 5.000000e-01 : f32
    %33 = vector.broadcast %cst_17 : f32 to vector<32x128xf32>
    %34 = arith.mulf %33, %32 : vector<32x128xf32>
    %cst_18 = arith.constant 0.707106769 : f32
    %35 = vector.broadcast %cst_18 : f32 to vector<32x128xf32>
    %36 = arith.mulf %32, %35 : vector<32x128xf32>
    %37 = math.erf %36 : vector<32x128xf32>
    %cst_19 = arith.constant 1.000000e+00 : f32
    %38 = vector.broadcast %cst_19 : f32 to vector<32x128xf32>
    %39 = arith.addf %38, %37 : vector<32x128xf32>
    %40 = arith.mulf %34, %39 : vector<32x128xf32>
    %c0_20 = arith.constant 0 : index
    %c0_21 = arith.constant 0 : index
    %41 = vector.load %arg7[%c0_20, %c0_21] : memref<128x128xf32, #tpu.memory_space<vmem>>, vector<128x128xf32>
    %cst_22 = arith.constant dense<0.000000e+00> : vector<32x128xf32>
    %42 = tpu.matmul %40, %41, %cst_22 {dimension_numbers = #tpu.dot_dimension_numbers<[1], [0], [0], [1], [0, 0, 1, 1], [], []>} : vector<32x128xf32>, vector<128x128xf32>, vector<32x128xf32> -> vector<32x128xf32>
    %c0_23 = arith.constant 0 : index
    %c0_24 = arith.constant 0 : index
    %43 = vector.load %arg8[%c0_23, %c0_24] : memref<1x128xf32, #tpu.memory_space<vmem>>, vector<1x128xf32>
    %44 = vector.broadcast %43 : vector<1x128xf32> to vector<32x128xf32>
    %45 = arith.addf %42, %44 : vector<32x128xf32>
    %c0_25 = arith.constant 0 : index
    %c0_26 = arith.constant 0 : index
    %46 = vector.load %arg9[%c0_25, %c0_26] : memref<1x128xf32, #tpu.memory_space<vmem>>, vector<1x128xf32>
    %c0_27 = arith.constant 0 : index
    %c0_28 = arith.constant 0 : index
    %47 = vector.load %arg10[%c0_27, %c0_28] : memref<1x128xf32, #tpu.memory_space<vmem>>, vector<1x128xf32>
    %cst_29 = arith.constant dense<0.000000e+00> : vector<32xf32>
    %48 = vector.multi_reduction <add>, %45, %cst_29 [1] : vector<32x128xf32> to vector<32xf32>
    %49 = vector.shape_cast %48 : vector<32xf32> to vector<32x1xf32>
    %50 = arith.mulf %45, %45 : vector<32x128xf32>
    %cst_30 = arith.constant dense<0.000000e+00> : vector<32xf32>
    %51 = vector.multi_reduction <add>, %50, %cst_30 [1] : vector<32x128xf32> to vector<32xf32>
    %52 = vector.shape_cast %51 : vector<32xf32> to vector<32x1xf32>
    %cst_31 = arith.constant 1.562500e-02 : f32
    %53 = vector.broadcast %cst_31 : f32 to vector<32x1xf32>
    %54 = arith.mulf %49, %53 : vector<32x1xf32>
    %cst_32 = arith.constant 1.562500e-02 : f32
    %55 = vector.broadcast %cst_32 : f32 to vector<32x1xf32>
    %56 = arith.mulf %52, %55 : vector<32x1xf32>
    %57 = arith.mulf %54, %54 : vector<32x1xf32>
    %58 = arith.subf %56, %57 : vector<32x1xf32>
    %cst_33 = arith.constant 0.000000e+00 : f32
    %59 = vector.broadcast %cst_33 : f32 to vector<32x1xf32>
    %60 = arith.maximumf %58, %59 : vector<32x1xf32>
    %61 = vector.broadcast %54 : vector<32x1xf32> to vector<32x128xf32>
    %62 = arith.subf %45, %61 : vector<32x128xf32>
    %cst_34 = arith.constant 9.99999974E-6 : f32
    %63 = vector.broadcast %cst_34 : f32 to vector<32x1xf32>
    %64 = arith.addf %60, %63 : vector<32x1xf32>
    %65 = math.rsqrt %64 : vector<32x1xf32>
    %66 = vector.broadcast %65 : vector<32x1xf32> to vector<32x128xf32>
    %67 = arith.mulf %62, %66 : vector<32x128xf32>
    %68 = vector.broadcast %46 : vector<1x128xf32> to vector<32x128xf32>
    %69 = arith.mulf %67, %68 : vector<32x128xf32>
    %70 = vector.broadcast %47 : vector<1x128xf32> to vector<32x128xf32>
    %71 = arith.addf %69, %70 : vector<32x128xf32>
    %cst_35 = arith.constant 5.000000e-01 : f32
    %72 = vector.broadcast %cst_35 : f32 to vector<32x128xf32>
    %73 = arith.mulf %72, %71 : vector<32x128xf32>
    %cst_36 = arith.constant 0.707106769 : f32
    %74 = vector.broadcast %cst_36 : f32 to vector<32x128xf32>
    %75 = arith.mulf %71, %74 : vector<32x128xf32>
    %76 = math.erf %75 : vector<32x128xf32>
    %cst_37 = arith.constant 1.000000e+00 : f32
    %77 = vector.broadcast %cst_37 : f32 to vector<32x128xf32>
    %78 = arith.addf %77, %76 : vector<32x128xf32>
    %79 = arith.mulf %73, %78 : vector<32x128xf32>
    %80 = tpu.iota {dimensions = array<i32: 0>} : vector<32x1xi32>
    %c16_i32 = arith.constant 16 : i32
    %81 = arith.muli %arg1, %c16_i32 : i32
    %c8_i32 = arith.constant 8 : i32
    %82 = arith.subi %81, %c8_i32 : i32
    %83 = vector.broadcast %82 : i32 to vector<32x1xi32>
    %84 = arith.addi %83, %80 : vector<32x1xi32>
    %c0_i32 = arith.constant 0 : i32
    %85 = vector.broadcast %c0_i32 : i32 to vector<32x1xi32>
    %86 = arith.cmpi sge, %84, %85 : vector<32x1xi32>
    %c16_i32_38 = arith.constant 16 : i32
    %87 = vector.broadcast %c16_i32_38 : i32 to vector<32x1xi32>
    %88 = arith.cmpi slt, %84, %87 : vector<32x1xi32>
    %89 = arith.andi %86, %88 : vector<32x1xi1>
    %cst_39 = arith.constant 0.000000e+00 : f32
    %90 = vector.shape_cast %89 : vector<32x1xi1> to vector<32x1xi1>
    %91 = vector.broadcast %90 : vector<32x1xi1> to vector<32x128xi1>
    %92 = vector.broadcast %cst_39 : f32 to vector<32x128xf32>
    %93 = arith.select %91, %79, %92 : vector<32x128xi1>, vector<32x128xf32>
    %94 = vector.extract_strided_slice %93 {offsets = [6, 0], sizes = [16, 128], strides = [1, 1]} : vector<32x128xf32> to vector<16x128xf32>
    %c0_40 = arith.constant 0 : index
    %c0_41 = arith.constant 0 : index
    %c0_42 = arith.constant 0 : index
    %95 = vector.load %arg11[%c0_40, %c0_41, %c0_42] : memref<3x128x128xf32, #tpu.memory_space<vmem>>, vector<1x128x128xf32>
    %96 = vector.shape_cast %95 : vector<1x128x128xf32> to vector<128x128xf32>
    %cst_43 = arith.constant dense<0.000000e+00> : vector<16x128xf32>
    %97 = tpu.matmul %94, %96, %cst_43 {dimension_numbers = #tpu.dot_dimension_numbers<[1], [0], [0], [1], [0, 0, 1, 1], [], []>} : vector<16x128xf32>, vector<128x128xf32>, vector<16x128xf32> -> vector<16x128xf32>
    %98 = vector.extract_strided_slice %93 {offsets = [8, 0], sizes = [16, 128], strides = [1, 1]} : vector<32x128xf32> to vector<16x128xf32>
    %c1 = arith.constant 1 : index
    %c0_44 = arith.constant 0 : index
    %c0_45 = arith.constant 0 : index
    %99 = vector.load %arg11[%c1, %c0_44, %c0_45] : memref<3x128x128xf32, #tpu.memory_space<vmem>>, vector<1x128x128xf32>
    %100 = vector.shape_cast %99 : vector<1x128x128xf32> to vector<128x128xf32>
    %cst_46 = arith.constant dense<0.000000e+00> : vector<16x128xf32>
    %101 = tpu.matmul %98, %100, %cst_46 {dimension_numbers = #tpu.dot_dimension_numbers<[1], [0], [0], [1], [0, 0, 1, 1], [], []>} : vector<16x128xf32>, vector<128x128xf32>, vector<16x128xf32> -> vector<16x128xf32>
    %102 = arith.addf %97, %101 : vector<16x128xf32>
    %103 = vector.extract_strided_slice %93 {offsets = [10, 0], sizes = [16, 128], strides = [1, 1]} : vector<32x128xf32> to vector<16x128xf32>
    %c2 = arith.constant 2 : index
    %c0_47 = arith.constant 0 : index
    %c0_48 = arith.constant 0 : index
    %104 = vector.load %arg11[%c2, %c0_47, %c0_48] : memref<3x128x128xf32, #tpu.memory_space<vmem>>, vector<1x128x128xf32>
    %105 = vector.shape_cast %104 : vector<1x128x128xf32> to vector<128x128xf32>
    %cst_49 = arith.constant dense<0.000000e+00> : vector<16x128xf32>
    %106 = tpu.matmul %103, %105, %cst_49 {dimension_numbers = #tpu.dot_dimension_numbers<[1], [0], [0], [1], [0, 0, 1, 1], [], []>} : vector<16x128xf32>, vector<128x128xf32>, vector<16x128xf32> -> vector<16x128xf32>
    %107 = arith.addf %102, %106 : vector<16x128xf32>
    %c0_50 = arith.constant 0 : index
    %c0_51 = arith.constant 0 : index
    %108 = vector.load %arg12[%c0_50, %c0_51] : memref<1x128xf32, #tpu.memory_space<vmem>>, vector<1x128xf32>
    %109 = vector.broadcast %108 : vector<1x128xf32> to vector<16x128xf32>
    %110 = arith.addf %107, %109 : vector<16x128xf32>
    %c0_52 = arith.constant 0 : index
    %c0_53 = arith.constant 0 : index
    %111 = vector.load %arg13[%c0_52, %c0_53] : memref<1x128xf32, #tpu.memory_space<vmem>>, vector<1x128xf32>
    %c0_54 = arith.constant 0 : index
    %c0_55 = arith.constant 0 : index
    %112 = vector.load %arg14[%c0_54, %c0_55] : memref<1x128xf32, #tpu.memory_space<vmem>>, vector<1x128xf32>
    %cst_56 = arith.constant dense<0.000000e+00> : vector<16xf32>
    %113 = vector.multi_reduction <add>, %110, %cst_56 [1] : vector<16x128xf32> to vector<16xf32>
    %114 = vector.shape_cast %113 : vector<16xf32> to vector<16x1xf32>
    %115 = arith.mulf %110, %110 : vector<16x128xf32>
    %cst_57 = arith.constant dense<0.000000e+00> : vector<16xf32>
    %116 = vector.multi_reduction <add>, %115, %cst_57 [1] : vector<16x128xf32> to vector<16xf32>
    %117 = vector.shape_cast %116 : vector<16xf32> to vector<16x1xf32>
    %cst_58 = arith.constant 1.562500e-02 : f32
    %118 = vector.broadcast %cst_58 : f32 to vector<16x1xf32>
    %119 = arith.mulf %114, %118 : vector<16x1xf32>
    %cst_59 = arith.constant 1.562500e-02 : f32
    %120 = vector.broadcast %cst_59 : f32 to vector<16x1xf32>
    %121 = arith.mulf %117, %120 : vector<16x1xf32>
    %122 = arith.mulf %119, %119 : vector<16x1xf32>
    %123 = arith.subf %121, %122 : vector<16x1xf32>
    %cst_60 = arith.constant 0.000000e+00 : f32
    %124 = vector.broadcast %cst_60 : f32 to vector<16x1xf32>
    %125 = arith.maximumf %123, %124 : vector<16x1xf32>
    %126 = vector.broadcast %119 : vector<16x1xf32> to vector<16x128xf32>
    %127 = arith.subf %110, %126 : vector<16x128xf32>
    %cst_61 = arith.constant 9.99999974E-6 : f32
    %128 = vector.broadcast %cst_61 : f32 to vector<16x1xf32>
    %129 = arith.addf %125, %128 : vector<16x1xf32>
    %130 = math.rsqrt %129 : vector<16x1xf32>
    %131 = vector.broadcast %130 : vector<16x1xf32> to vector<16x128xf32>
    %132 = arith.mulf %127, %131 : vector<16x128xf32>
    %133 = vector.broadcast %111 : vector<1x128xf32> to vector<16x128xf32>
    %134 = arith.mulf %132, %133 : vector<16x128xf32>
    %135 = vector.broadcast %112 : vector<1x128xf32> to vector<16x128xf32>
    %136 = arith.addf %134, %135 : vector<16x128xf32>
    %cst_62 = arith.constant 5.000000e-01 : f32
    %137 = vector.broadcast %cst_62 : f32 to vector<16x128xf32>
    %138 = arith.mulf %137, %136 : vector<16x128xf32>
    %cst_63 = arith.constant 0.707106769 : f32
    %139 = vector.broadcast %cst_63 : f32 to vector<16x128xf32>
    %140 = arith.mulf %136, %139 : vector<16x128xf32>
    %141 = math.erf %140 : vector<16x128xf32>
    %cst_64 = arith.constant 1.000000e+00 : f32
    %142 = vector.broadcast %cst_64 : f32 to vector<16x128xf32>
    %143 = arith.addf %142, %141 : vector<16x128xf32>
    %144 = arith.mulf %138, %143 : vector<16x128xf32>
    %c0_65 = arith.constant 0 : index
    %c0_66 = arith.constant 0 : index
    %145 = vector.load %arg15[%c0_65, %c0_66] : memref<128x128xf32, #tpu.memory_space<vmem>>, vector<128x128xf32>
    %cst_67 = arith.constant dense<0.000000e+00> : vector<16x128xf32>
    %146 = tpu.matmul %144, %145, %cst_67 {dimension_numbers = #tpu.dot_dimension_numbers<[1], [0], [0], [1], [0, 0, 1, 1], [], []>} : vector<16x128xf32>, vector<128x128xf32>, vector<16x128xf32> -> vector<16x128xf32>
    %c0_68 = arith.constant 0 : index
    %c0_69 = arith.constant 0 : index
    %147 = vector.load %arg16[%c0_68, %c0_69] : memref<1x128xf32, #tpu.memory_space<vmem>>, vector<1x128xf32>
    %148 = vector.broadcast %147 : vector<1x128xf32> to vector<16x128xf32>
    %149 = arith.addf %146, %148 : vector<16x128xf32>
    %150 = arith.addf %1, %149 : vector<16x128xf32>
    %c0_70 = arith.constant 0 : index
    %c0_71 = arith.constant 0 : index
    %c0_72 = arith.constant 0 : index
    %151 = vector.load %arg17[%c0_70, %c0_71, %c0_72] : memref<1x16x128xf32, #tpu.memory_space<vmem>>, vector<1x16x128xf32>
    %152 = vector.shape_cast %151 : vector<1x16x128xf32> to vector<16x128xf32>
    %153 = vector.shape_cast %150 : vector<16x128xf32> to vector<1x16x128xf32>
    tpu.vector_store %arg17[%c0_70, %c0_71, %c0_72], %153 {strides = array<i32>} : memref<1x16x128xf32, #tpu.memory_space<vmem>>, vector<1x16x128xf32>,
    return
  }
  func.func @transform_0(%arg0: i32, %arg1: i32) -> (i32, i32, i32) {
    %c2_i32 = arith.constant 2 : i32
    %0 = arith.muli %arg1, %c2_i32 : i32
    %c1_i32 = arith.constant 1 : i32
    %1 = arith.subi %0, %c1_i32 : i32
    %c0_i32 = arith.constant 0 : i32
    %2 = arith.maxsi %1, %c0_i32 : i32
    %c0_i32_0 = arith.constant 0 : i32
    %c0_i32_1 = arith.constant 0 : i32
    return %arg0, %2, %c0_i32_0 : i32, i32, i32
  }
  func.func @transform_1(%arg0: i32, %arg1: i32) -> (i32, i32, i32) {
    %c0_i32 = arith.constant 0 : i32
    %c0_i32_0 = arith.constant 0 : i32
    return %arg0, %arg1, %c0_i32 : i32, i32, i32
  }
  func.func @transform_2(%arg0: i32, %arg1: i32) -> (i32, i32, i32) {
    %c1_i32 = arith.constant 1 : i32
    %0 = arith.addi %arg1, %c1_i32 : i32
    %c2_i32 = arith.constant 2 : i32
    %1 = arith.muli %0, %c2_i32 : i32
    %c1_i32_0 = arith.constant 1 : i32
    %2 = arith.minsi %1, %c1_i32_0 : i32
    %c0_i32 = arith.constant 0 : i32
    %c0_i32_1 = arith.constant 0 : i32
    return %arg0, %2, %c0_i32 : i32, i32, i32
  }
  func.func @transform_3(%arg0: i32, %arg1: i32) -> (i32, i32) {
    %c0_i32 = arith.constant 0 : i32
    %c0_i32_0 = arith.constant 0 : i32
    %c0_i32_1 = arith.constant 0 : i32
    return %c0_i32, %c0_i32_0 : i32, i32
  }
  func.func @transform_4(%arg0: i32, %arg1: i32) -> (i32, i32) {
    %c0_i32 = arith.constant 0 : i32
    %c0_i32_0 = arith.constant 0 : i32
    %c0_i32_1 = arith.constant 0 : i32
    return %c0_i32, %c0_i32_0 : i32, i32
  }
  func.func @transform_5(%arg0: i32, %arg1: i32) -> (i32, i32) {
    %c0_i32 = arith.constant 0 : i32
    %c0_i32_0 = arith.constant 0 : i32
    %c0_i32_1 = arith.constant 0 : i32
    return %c0_i32, %c0_i32_0 : i32, i32
  }
  func.func @transform_6(%arg0: i32, %arg1: i32) -> (i32, i32) {
    %c0_i32 = arith.constant 0 : i32
    %c0_i32_0 = arith.constant 0 : i32
    %c0_i32_1 = arith.constant 0 : i32
    return %c0_i32, %c0_i32_0 : i32, i32
  }
  func.func @transform_7(%arg0: i32, %arg1: i32) -> (i32, i32) {
    %c0_i32 = arith.constant 0 : i32
    %c0_i32_0 = arith.constant 0 : i32
    %c0_i32_1 = arith.constant 0 : i32
    return %c0_i32, %c0_i32_0 : i32, i32
  }
  func.func @transform_8(%arg0: i32, %arg1: i32) -> (i32, i32) {
    %c0_i32 = arith.constant 0 : i32
    %c0_i32_0 = arith.constant 0 : i32
    %c0_i32_1 = arith.constant 0 : i32
    return %c0_i32, %c0_i32_0 : i32, i32
  }
  func.func @transform_9(%arg0: i32, %arg1: i32) -> (i32, i32, i32) {
    %c0_i32 = arith.constant 0 : i32
    %c0_i32_0 = arith.constant 0 : i32
    %c0_i32_1 = arith.constant 0 : i32
    %c0_i32_2 = arith.constant 0 : i32
    return %c0_i32, %c0_i32_0, %c0_i32_1 : i32, i32, i32
  }
  func.func @transform_10(%arg0: i32, %arg1: i32) -> (i32, i32) {
    %c0_i32 = arith.constant 0 : i32
    %c0_i32_0 = arith.constant 0 : i32
    %c0_i32_1 = arith.constant 0 : i32
    return %c0_i32, %c0_i32_0 : i32, i32
  }
  func.func @transform_11(%arg0: i32, %arg1: i32) -> (i32, i32) {
    %c0_i32 = arith.constant 0 : i32
    %c0_i32_0 = arith.constant 0 : i32
    %c0_i32_1 = arith.constant 0 : i32
    return %c0_i32, %c0_i32_0 : i32, i32
  }
  func.func @transform_12(%arg0: i32, %arg1: i32) -> (i32, i32) {
    %c0_i32 = arith.constant 0 : i32
    %c0_i32_0 = arith.constant 0 : i32
    %c0_i32_1 = arith.constant 0 : i32
    return %c0_i32, %c0_i32_0 : i32, i32
  }
  func.func @transform_13(%arg0: i32, %arg1: i32) -> (i32, i32) {
    %c0_i32 = arith.constant 0 : i32
    %c0_i32_0 = arith.constant 0 : i32
    %c0_i32_1 = arith.constant 0 : i32
    return %c0_i32, %c0_i32_0 : i32, i32
  }
  func.func @transform_14(%arg0: i32, %arg1: i32) -> (i32, i32) {
    %c0_i32 = arith.constant 0 : i32
    %c0_i32_0 = arith.constant 0 : i32
    %c0_i32_1 = arith.constant 0 : i32
    return %c0_i32, %c0_i32_0 : i32, i32
  }
  func.func @transform_15(%arg0: i32, %arg1: i32) -> (i32, i32, i32) {
    %c0_i32 = arith.constant 0 : i32
    %c0_i32_0 = arith.constant 0 : i32
    return %arg0, %arg1, %c0_i32 : i32, i32, i32
  }
}

module attributes {stable_mosaic.version = 11 : i64} {
  func.func @bytenet_block_kernel(%arg0: i32, %arg1: i32, %arg2: memref<1x8x128xf32, #tpu.memory_space<vmem>>, %arg3: memref<1x16x128xf32, #tpu.memory_space<vmem>>, %arg4: memref<1x8x128xf32, #tpu.memory_space<vmem>>, %arg5: memref<1x128xf32, #tpu.memory_space<vmem>>, %arg6: memref<1x128xf32, #tpu.memory_space<vmem>>, %arg7: memref<128x128xf32, #tpu.memory_space<vmem>>, %arg8: memref<1x128xf32, #tpu.memory_space<vmem>>, %arg9: memref<1x128xf32, #tpu.memory_space<vmem>>, %arg10: memref<1x128xf32, #tpu.memory_space<vmem>>, %arg11: memref<3x128x128xf32, #tpu.memory_space<vmem>>, %arg12: memref<1x128xf32, #tpu.memory_space<vmem>>, %arg13: memref<1x128xf32, #tpu.memory_space<vmem>>, %arg14: memref<1x128xf32, #tpu.memory_space<vmem>>, %arg15: memref<128x128xf32, #tpu.memory_space<vmem>>, %arg16: memref<1x128xf32, #tpu.memory_space<vmem>>, %arg17: memref<1x16x128xf32, #tpu.memory_space<vmem>>) attributes {dimension_semantics = [#tpu.dimension_semantics<parallel>, #tpu.dimension_semantics<parallel>], iteration_bounds = array<i64: 2, 1>, scalar_prefetch = 0 : i64, scratch_operands = 0 : i64, tpu.core_type = #tpu.core_type<tc>, window_params = [{transform_indices = @transform_0, window_bounds = array<i64: 1, 8, 128>}, {transform_indices = @transform_1, window_bounds = array<i64: 1, 16, 128>}, {transform_indices = @transform_2, window_bounds = array<i64: 1, 8, 128>}, {pipeline_mode = #tpu.pipeline_mode<synchronous>, transform_indices = @transform_3, window_bounds = array<i64: 1, 128>}, {pipeline_mode = #tpu.pipeline_mode<synchronous>, transform_indices = @transform_4, window_bounds = array<i64: 1, 128>}, {pipeline_mode = #tpu.pipeline_mode<synchronous>, transform_indices = @transform_5, window_bounds = array<i64: 128, 128>}, {pipeline_mode = #tpu.pipeline_mode<synchronous>, transform_indices = @transform_6, window_bounds = array<i64: 1, 128>}, {pipeline_mode = #tpu.pipeline_mode<synchronous>, transform_indices = @transform_7, window_bounds = array<i64: 1, 128>}, {pipeline_mode = #tpu.pipeline_mode<synchronous>, transform_indices = @transform_8, window_bounds = array<i64: 1, 128>}, {pipeline_mode = #tpu.pipeline_mode<synchronous>, transform_indices = @transform_9, window_bounds = array<i64: 3, 128, 128>}, {pipeline_mode = #tpu.pipeline_mode<synchronous>, transform_indices = @transform_10, window_bounds = array<i64: 1, 128>}, {pipeline_mode = #tpu.pipeline_mode<synchronous>, transform_indices = @transform_11, window_bounds = array<i64: 1, 128>}, {pipeline_mode = #tpu.pipeline_mode<synchronous>, transform_indices = @transform_12, window_bounds = array<i64: 1, 128>}, {pipeline_mode = #tpu.pipeline_mode<synchronous>, transform_indices = @transform_13, window_bounds = array<i64: 128, 128>}, {pipeline_mode = #tpu.pipeline_mode<synchronous>, transform_indices = @transform_14, window_bounds = array<i64: 1, 128>}, {transform_indices = @transform_15, window_bounds = array<i64: 1, 16, 128>}]} {
    %c0 = arith.constant 0 : index
    %c0_0 = arith.constant 0 : index
    %c0_1 = arith.constant 0 : index
    %0 = vector.load %arg3[%c0, %c0_0, %c0_1] : memref<1x16x128xf32, #tpu.memory_space<vmem>>, vector<1x16x128xf32>
    %1 = vector.shape_cast %0 : vector<1x16x128xf32> to vector<16x128xf32>
    %c0_2 = arith.constant 0 : index
    %c0_3 = arith.constant 0 : index
    %c0_4 = arith.constant 0 : index
    %2 = vector.load %arg2[%c0_2, %c0_3, %c0_4] : memref<1x8x128xf32, #tpu.memory_space<vmem>>, vector<1x8x128xf32>
    %3 = vector.shape_cast %2 : vector<1x8x128xf32> to vector<8x128xf32>
    %c0_5 = arith.constant 0 : index
    %c0_6 = arith.constant 0 : index
    %c0_7 = arith.constant 0 : index
    %4 = vector.load %arg4[%c0_5, %c0_6, %c0_7] : memref<1x8x128xf32, #tpu.memory_space<vmem>>, vector<1x8x128xf32>
    %5 = vector.shape_cast %4 : vector<1x8x128xf32> to vector<8x128xf32>
    %6 = tpu.concatenate %3, %1, %5 in 0 : vector<8x128xf32>, vector<16x128xf32>, vector<8x128xf32> -> vector<32x128xf32>
    %c0_8 = arith.constant 0 : index
    %c0_9 = arith.constant 0 : index
    %7 = vector.load %arg5[%c0_8, %c0_9] : memref<1x128xf32, #tpu.memory_space<vmem>>, vector<1x128xf32>
    %c0_10 = arith.constant 0 : index
    %c0_11 = arith.constant 0 : index
    %8 = vector.load %arg6[%c0_10, %c0_11] : memref<1x128xf32, #tpu.memory_space<vmem>>, vector<1x128xf32>
    %cst = arith.constant dense<0.000000e+00> : vector<32xf32>
    %9 = vector.multi_reduction <add>, %6, %cst [1] : vector<32x128xf32> to vector<32xf32>
    %10 = vector.shape_cast %9 : vector<32xf32> to vector<32x1xf32>
    %11 = arith.mulf %6, %6 : vector<32x128xf32>
    %cst_12 = arith.constant dense<0.000000e+00> : vector<32xf32>
    %12 = vector.multi_reduction <add>, %11, %cst_12 [1] : vector<32x128xf32> to vector<32xf32>
    %13 = vector.shape_cast %12 : vector<32xf32> to vector<32x1xf32>
    %cst_13 = arith.constant 3.125000e-02 : f32
    %14 = vector.broadcast %cst_13 : f32 to vector<32x1xf32>
    %15 = arith.mulf %10, %14 : vector<32x1xf32>
    %cst_14 = arith.constant 3.125000e-02 : f32
    %16 = vector.broadcast %cst_14 : f32 to vector<32x1xf32>
    %17 = arith.mulf %13, %16 : vector<32x1xf32>
    %18 = arith.mulf %15, %15 : vector<32x1xf32>
    %19 = arith.subf %17, %18 : vector<32x1xf32>
    %cst_15 = arith.constant 0.000000e+00 : f32
    %20 = vector.broadcast %cst_15 : f32 to vector<32x1xf32>
    %21 = arith.maximumf %19, %20 : vector<32x1xf32>
    %22 = vector.broadcast %15 : vector<32x1xf32> to vector<32x128xf32>
    %23 = arith.subf %6, %22 : vector<32x128xf32>
    %cst_16 = arith.constant 9.99999974E-6 : f32
    %24 = vector.broadcast %cst_16 : f32 to vector<32x1xf32>
    %25 = arith.addf %21, %24 : vector<32x1xf32>
    %26 = math.rsqrt %25 : vector<32x1xf32>
    %27 = vector.broadcast %26 : vector<32x1xf32> to vector<32x128xf32>
    %28 = arith.mulf %23, %27 : vector<32x128xf32>
    %29 = vector.broadcast %7 : vector<1x128xf32> to vector<32x128xf32>
    %30 = arith.mulf %28, %29 : vector<32x128xf32>
    %31 = vector.broadcast %8 : vector<1x128xf32> to vector<32x128xf32>
    %32 = arith.addf %30, %31 : vector<32x128xf32>
    %cst_17 = arith.constant 5.000000e-01 : f32
    %33 = vector.broadcast %cst_17 : f32 to vector<32x128xf32>
    %34 = arith.mulf %33, %32 : vector<32x128xf32>
    %cst_18 = arith.constant 0.707106769 : f32
    %35 = vector.broadcast %cst_18 : f32 to vector<32x128xf32>
    %36 = arith.mulf %32, %35 : vector<32x128xf32>
    %37 = math.erf %36 : vector<32x128xf32>
    %cst_19 = arith.constant 1.000000e+00 : f32
    %38 = vector.broadcast %cst_19 : f32 to vector<32x128xf32>
    %39 = arith.addf %38, %37 : vector<32x128xf32>
    %40 = arith.mulf %34, %39 : vector<32x128xf32>
    %c0_20 = arith.constant 0 : index
    %c0_21 = arith.constant 0 : index
    %41 = vector.load %arg7[%c0_20, %c0_21] : memref<128x128xf32, #tpu.memory_space<vmem>>, vector<128x128xf32>
    %cst_22 = arith.constant dense<0.000000e+00> : vector<32x128xf32>
    %42 = tpu.matmul %40, %41, %cst_22 {dimension_numbers = #tpu.dot_dimension_numbers<[1], [0], [0], [1], [0, 0, 1, 1], [], []>} : vector<32x128xf32>, vector<128x128xf32>, vector<32x128xf32> -> vector<32x128xf32>
    %c0_23 = arith.constant 0 : index
    %c0_24 = arith.constant 0 : index
    %43 = vector.load %arg8[%c0_23, %c0_24] : memref<1x128xf32, #tpu.memory_space<vmem>>, vector<1x128xf32>
    %44 = vector.broadcast %43 : vector<1x128xf32> to vector<32x128xf32>
    %45 = arith.addf %42, %44 : vector<32x128xf32>
    %c0_25 = arith.constant 0 : index
    %c0_26 = arith.constant 0 : index
    %46 = vector.load %arg9[%c0_25, %c0_26] : memref<1x128xf32, #tpu.memory_space<vmem>>, vector<1x128xf32>
    %c0_27 = arith.constant 0 : index
    %c0_28 = arith.constant 0 : index
    %47 = vector.load %arg10[%c0_27, %c0_28] : memref<1x128xf32, #tpu.memory_space<vmem>>, vector<1x128xf32>
    %cst_29 = arith.constant dense<0.000000e+00> : vector<32xf32>
    %48 = vector.multi_reduction <add>, %45, %cst_29 [1] : vector<32x128xf32> to vector<32xf32>
    %49 = vector.shape_cast %48 : vector<32xf32> to vector<32x1xf32>
    %50 = arith.mulf %45, %45 : vector<32x128xf32>
    %cst_30 = arith.constant dense<0.000000e+00> : vector<32xf32>
    %51 = vector.multi_reduction <add>, %50, %cst_30 [1] : vector<32x128xf32> to vector<32xf32>
    %52 = vector.shape_cast %51 : vector<32xf32> to vector<32x1xf32>
    %cst_31 = arith.constant 1.562500e-02 : f32
    %53 = vector.broadcast %cst_31 : f32 to vector<32x1xf32>
    %54 = arith.mulf %49, %53 : vector<32x1xf32>
    %cst_32 = arith.constant 1.562500e-02 : f32
    %55 = vector.broadcast %cst_32 : f32 to vector<32x1xf32>
    %56 = arith.mulf %52, %55 : vector<32x1xf32>
    %57 = arith.mulf %54, %54 : vector<32x1xf32>
    %58 = arith.subf %56, %57 : vector<32x1xf32>
    %cst_33 = arith.constant 0.000000e+00 : f32
    %59 = vector.broadcast %cst_33 : f32 to vector<32x1xf32>
    %60 = arith.maximumf %58, %59 : vector<32x1xf32>
    %61 = vector.broadcast %54 : vector<32x1xf32> to vector<32x128xf32>
    %62 = arith.subf %45, %61 : vector<32x128xf32>
    %cst_34 = arith.constant 9.99999974E-6 : f32
    %63 = vector.broadcast %cst_34 : f32 to vector<32x1xf32>
    %64 = arith.addf %60, %63 : vector<32x1xf32>
    %65 = math.rsqrt %64 : vector<32x1xf32>
    %66 = vector.broadcast %65 : vector<32x1xf32> to vector<32x128xf32>
    %67 = arith.mulf %62, %66 : vector<32x128xf32>
    %68 = vector.broadcast %46 : vector<1x128xf32> to vector<32x128xf32>
    %69 = arith.mulf %67, %68 : vector<32x128xf32>
    %70 = vector.broadcast %47 : vector<1x128xf32> to vector<32x128xf32>
    %71 = arith.addf %69, %70 : vector<32x128xf32>
    %cst_35 = arith.constant 5.000000e-01 : f32
    %72 = vector.broadcast %cst_35 : f32 to vector<32x128xf32>
    %73 = arith.mulf %72, %71 : vector<32x128xf32>
    %cst_36 = arith.constant 0.707106769 : f32
    %74 = vector.broadcast %cst_36 : f32 to vector<32x128xf32>
    %75 = arith.mulf %71, %74 : vector<32x128xf32>
    %76 = math.erf %75 : vector<32x128xf32>
    %cst_37 = arith.constant 1.000000e+00 : f32
    %77 = vector.broadcast %cst_37 : f32 to vector<32x128xf32>
    %78 = arith.addf %77, %76 : vector<32x128xf32>
    %79 = arith.mulf %73, %78 : vector<32x128xf32>
    %80 = tpu.iota {dimensions = array<i32: 0>} : vector<32x1xi32>
    %c16_i32 = arith.constant 16 : i32
    %81 = arith.muli %arg1, %c16_i32 : i32
    %c8_i32 = arith.constant 8 : i32
    %82 = arith.subi %81, %c8_i32 : i32
    %83 = vector.broadcast %82 : i32 to vector<32x1xi32>
    %84 = arith.addi %83, %80 : vector<32x1xi32>
    %c0_i32 = arith.constant 0 : i32
    %85 = vector.broadcast %c0_i32 : i32 to vector<32x1xi32>
    %86 = arith.cmpi sge, %84, %85 : vector<32x1xi32>
    %c16_i32_38 = arith.constant 16 : i32
    %87 = vector.broadcast %c16_i32_38 : i32 to vector<32x1xi32>
    %88 = arith.cmpi slt, %84, %87 : vector<32x1xi32>
    %89 = arith.andi %86, %88 : vector<32x1xi1>
    %cst_39 = arith.constant 0.000000e+00 : f32
    %90 = vector.shape_cast %89 : vector<32x1xi1> to vector<32x1xi1>
    %91 = vector.broadcast %90 : vector<32x1xi1> to vector<32x128xi1>
    %92 = vector.broadcast %cst_39 : f32 to vector<32x128xf32>
    %93 = arith.select %91, %79, %92 : vector<32x128xi1>, vector<32x128xf32>
    %94 = vector.extract_strided_slice %93 {offsets = [6, 0], sizes = [16, 128], strides = [1, 1]} : vector<32x128xf32> to vector<16x128xf32>
    %c0_40 = arith.constant 0 : index
    %c0_41 = arith.constant 0 : index
    %c0_42 = arith.constant 0 : index
    %95 = vector.load %arg11[%c0_40, %c0_41, %c0_42] : memref<3x128x128xf32, #tpu.memory_space<vmem>>, vector<1x128x128xf32>
    %96 = vector.shape_cast %95 : vector<1x128x128xf32> to vector<128x128xf32>
    %cst_43 = arith.constant dense<0.000000e+00> : vector<16x128xf32>
    %97 = tpu.matmul %94, %96, %cst_43 {dimension_numbers = #tpu.dot_dimension_numbers<[1], [0], [0], [1], [0, 0, 1, 1], [], []>} : vector<16x128xf32>, vector<128x128xf32>, vector<16x128xf32> -> vector<16x128xf32>
    %98 = vector.extract_strided_slice %93 {offsets = [8, 0], sizes = [16, 128], strides = [1, 1]} : vector<32x128xf32> to vector<16x128xf32>
    %c1 = arith.constant 1 : index
    %c0_44 = arith.constant 0 : index
    %c0_45 = arith.constant 0 : index
    %99 = vector.load %arg11[%c1, %c0_44, %c0_45] : memref<3x128x128xf32, #tpu.memory_space<vmem>>, vector<1x128x128xf32>
    %100 = vector.shape_cast %99 : vector<1x128x128xf32> to vector<128x128xf32>
    %cst_46 = arith.constant dense<0.000000e+00> : vector<16x128xf32>
    %101 = tpu.matmul %98, %100, %cst_46 {dimension_numbers = #tpu.dot_dimension_numbers<[1], [0], [0], [1], [0, 0, 1, 1], [], []>} : vector<16x128xf32>, vector<128x128xf32>, vector<16x128xf32> -> vector<16x128xf32>
    %102 = arith.addf %97, %101 : vector<16x128xf32>
    %103 = vector.extract_strided_slice %93 {offsets = [10, 0], sizes = [16, 128], strides = [1, 1]} : vector<32x128xf32> to vector<16x128xf32>
    %c2 = arith.constant 2 : index
    %c0_47 = arith.constant 0 : index
    %c0_48 = arith.constant 0 : index
    %104 = vector.load %arg11[%c2, %c0_47, %c0_48] : memref<3x128x128xf32, #tpu.memory_space<vmem>>, vector<1x128x128xf32>
    %105 = vector.shape_cast %104 : vector<1x128x128xf32> to vector<128x128xf32>
    %cst_49 = arith.constant dense<0.000000e+00> : vector<16x128xf32>
    %106 = tpu.matmul %103, %105, %cst_49 {dimension_numbers = #tpu.dot_dimension_numbers<[1], [0], [0], [1], [0, 0, 1, 1], [], []>} : vector<16x128xf32>, vector<128x128xf32>, vector<16x128xf32> -> vector<16x128xf32>
    %107 = arith.addf %102, %106 : vector<16x128xf32>
    %c0_50 = arith.constant 0 : index
    %c0_51 = arith.constant 0 : index
    %108 = vector.load %arg12[%c0_50, %c0_51] : memref<1x128xf32, #tpu.memory_space<vmem>>, vector<1x128xf32>
    %109 = vector.broadcast %108 : vector<1x128xf32> to vector<16x128xf32>
    %110 = arith.addf %107, %109 : vector<16x128xf32>
    %c0_52 = arith.constant 0 : index
    %c0_53 = arith.constant 0 : index
    %111 = vector.load %arg13[%c0_52, %c0_53] : memref<1x128xf32, #tpu.memory_space<vmem>>, vector<1x128xf32>
    %c0_54 = arith.constant 0 : index
    %c0_55 = arith.constant 0 : index
    %112 = vector.load %arg14[%c0_54, %c0_55] : memref<1x128xf32, #tpu.memory_space<vmem>>, vector<1x128xf32>
    %cst_56 = arith.constant dense<0.000000e+00> : vector<16xf32>
    %113 = vector.multi_reduction <add>, %110, %cst_56 [1] : vector<16x128xf32> to vector<16xf32>
    %114 = vector.shape_cast %113 : vector<16xf32> to vector<16x1xf32>
    %115 = arith.mulf %110, %110 : vector<16x128xf32>
    %cst_57 = arith.constant dense<0.000000e+00> : vector<16xf32>
    %116 = vector.multi_reduction <add>, %115, %cst_57 [1] : vector<16x128xf32> to vector<16xf32>
    %117 = vector.shape_cast %116 : vector<16xf32> to vector<16x1xf32>
    %cst_58 = arith.constant 1.562500e-02 : f32
    %118 = vector.broadcast %cst_58 : f32 to vector<16x1xf32>
    %119 = arith.mulf %114, %118 : vector<16x1xf32>
    %cst_59 = arith.constant 1.562500e-02 : f32
    %120 = vector.broadcast %cst_59 : f32 to vector<16x1xf32>
    %121 = arith.mulf %117, %120 : vector<16x1xf32>
    %122 = arith.mulf %119, %119 : vector<16x1xf32>
    %123 = arith.subf %121, %122 : vector<16x1xf32>
    %cst_60 = arith.constant 0.000000e+00 : f32
    %124 = vector.broadcast %cst_60 : f32 to vector<16x1xf32>
    %125 = arith.maximumf %123, %124 : vector<16x1xf32>
    %126 = vector.broadcast %119 : vector<16x1xf32> to vector<16x128xf32>
    %127 = arith.subf %110, %126 : vector<16x128xf32>
    %cst_61 = arith.constant 9.99999974E-6 : f32
    %128 = vector.broadcast %cst_61 : f32 to vector<16x1xf32>
    %129 = arith.addf %125, %128 : vector<16x1xf32>
    %130 = math.rsqrt %129 : vector<16x1xf32>
    %131 = vector.broadcast %130 : vector<16x1xf32> to vector<16x128xf32>
    %132 = arith.mulf %127, %131 : vector<16x128xf32>
    %133 = vector.broadcast %111 : vector<1x128xf32> to vector<16x128xf32>
    %134 = arith.mulf %132, %133 : vector<16x128xf32>
    %135 = vector.broadcast %112 : vector<1x128xf32> to vector<16x128xf32>
    %136 = arith.addf %134, %135 : vector<16x128xf32>
    %cst_62 = arith.constant 5.000000e-01 : f32
    %137 = vector.broadcast %cst_62 : f32 to vector<16x128xf32>
    %138 = arith.mulf %137, %136 : vector<16x128xf32>
    %cst_63 = arith.constant 0.707106769 : f32
    %139 = vector.broadcast %cst_63 : f32 to vector<16x128xf32>
    %140 = arith.mulf %136, %139 : vector<16x128xf32>
    %141 = math.erf %140 : vector<16x128xf32>
    %cst_64 = arith.constant 1.000000e+00 : f32
    %142 = vector.broadcast %cst_64 : f32 to vector<16x128xf32>
    %143 = arith.addf %142, %141 : vector<16x128xf32>
    %144 = arith.mulf %138, %143 : vector<16x128xf32>
    %c0_65 = arith.constant 0 : index
    %c0_66 = arith.constant 0 : index
    %145 = vector.load %arg15[%c0_65, %c0_66] : memref<128x128xf32, #tpu.memory_space<vmem>>, vector<128x128xf32>
    %cst_67 = arith.constant dense<0.000000e+00> : vector<16x128xf32>
    %146 = tpu.matmul %144, %145, %cst_67 {dimension_numbers = #tpu.dot_dimension_numbers<[1], [0], [0], [1], [0, 0, 1, 1], [], []>} : vector<16x128xf32>, vector<128x128xf32>, vector<16x128xf32> -> vector<16x128xf32>
    %c0_68 = arith.constant 0 : index
    %c0_69 = arith.constant 0 : index
    %147 = vector.load %arg16[%c0_68, %c0_69] : memref<1x128xf32, #tpu.memory_space<vmem>>, vector<1x128xf32>
    %148 = vector.broadcast %147 : vector<1x128xf32> to vector<16x128xf32>
    %149 = arith.addf %146, %148 : vector<16x128xf32>
    %150 = arith.addf %1, %149 : vector<16x128xf32>
    %c0_70 = arith.constant 0 : index
    %c0_71 = arith.constant 0 : index
    %c0_72 = arith.constant 0 : index
    %151 = vector.load %arg17[%c0_70, %c0_71, %c0_72] : memref<1x16x128xf32, #tpu.memory_space<vmem>>, vector<1x16x128xf32>
    %152 = vector.shape_cast %151 : vector<1x16x128xf32> to vector<16x128xf32>
    %153 = vector.shape_cast %150 : vector<16x128xf32> to vector<1x16x128xf32>
    tpu.vector_store %arg17[%c0_70, %c0_71, %c0_72], %153 {strides = array<i32>} : memref<1x16x128xf32, #tpu.memory_space<vmem>>, vector<1x16x128xf32>,
    return
  }
  func.func @transform_0(%arg0: i32, %arg1: i32) -> (i32, i32, i32) {
    %c2_i32 = arith.constant 2 : i32
    %0 = arith.muli %arg1, %c2_i32 : i32
    %c1_i32 = arith.constant 1 : i32
    %1 = arith.subi %0, %c1_i32 : i32
    %c0_i32 = arith.constant 0 : i32
    %2 = arith.maxsi %1, %c0_i32 : i32
    %c0_i32_0 = arith.constant 0 : i32
    %c0_i32_1 = arith.constant 0 : i32
    return %arg0, %2, %c0_i32_0 : i32, i32, i32
  }
  func.func @transform_1(%arg0: i32, %arg1: i32) -> (i32, i32, i32) {
    %c0_i32 = arith.constant 0 : i32
    %c0_i32_0 = arith.constant 0 : i32
    return %arg0, %arg1, %c0_i32 : i32, i32, i32
  }
  func.func @transform_2(%arg0: i32, %arg1: i32) -> (i32, i32, i32) {
    %c1_i32 = arith.constant 1 : i32
    %0 = arith.addi %arg1, %c1_i32 : i32
    %c2_i32 = arith.constant 2 : i32
    %1 = arith.muli %0, %c2_i32 : i32
    %c1_i32_0 = arith.constant 1 : i32
    %2 = arith.minsi %1, %c1_i32_0 : i32
    %c0_i32 = arith.constant 0 : i32
    %c0_i32_1 = arith.constant 0 : i32
    return %arg0, %2, %c0_i32 : i32, i32, i32
  }
  func.func @transform_3(%arg0: i32, %arg1: i32) -> (i32, i32) {
    %c0_i32 = arith.constant 0 : i32
    %c0_i32_0 = arith.constant 0 : i32
    %c0_i32_1 = arith.constant 0 : i32
    return %c0_i32, %c0_i32_0 : i32, i32
  }
  func.func @transform_4(%arg0: i32, %arg1: i32) -> (i32, i32) {
    %c0_i32 = arith.constant 0 : i32
    %c0_i32_0 = arith.constant 0 : i32
    %c0_i32_1 = arith.constant 0 : i32
    return %c0_i32, %c0_i32_0 : i32, i32
  }
  func.func @transform_5(%arg0: i32, %arg1: i32) -> (i32, i32) {
    %c0_i32 = arith.constant 0 : i32
    %c0_i32_0 = arith.constant 0 : i32
    %c0_i32_1 = arith.constant 0 : i32
    return %c0_i32, %c0_i32_0 : i32, i32
  }
  func.func @transform_6(%arg0: i32, %arg1: i32) -> (i32, i32) {
    %c0_i32 = arith.constant 0 : i32
    %c0_i32_0 = arith.constant 0 : i32
    %c0_i32_1 = arith.constant 0 : i32
    return %c0_i32, %c0_i32_0 : i32, i32
  }
  func.func @transform_7(%arg0: i32, %arg1: i32) -> (i32, i32) {
    %c0_i32 = arith.constant 0 : i32
    %c0_i32_0 = arith.constant 0 : i32
    %c0_i32_1 = arith.constant 0 : i32
    return %c0_i32, %c0_i32_0 : i32, i32
  }
  func.func @transform_8(%arg0: i32, %arg1: i32) -> (i32, i32) {
    %c0_i32 = arith.constant 0 : i32
    %c0_i32_0 = arith.constant 0 : i32
    %c0_i32_1 = arith.constant 0 : i32
    return %c0_i32, %c0_i32_0 : i32, i32
  }
  func.func @transform_9(%arg0: i32, %arg1: i32) -> (i32, i32, i32) {
    %c0_i32 = arith.constant 0 : i32
    %c0_i32_0 = arith.constant 0 : i32
    %c0_i32_1 = arith.constant 0 : i32
    %c0_i32_2 = arith.constant 0 : i32
    return %c0_i32, %c0_i32_0, %c0_i32_1 : i32, i32, i32
  }
  func.func @transform_10(%arg0: i32, %arg1: i32) -> (i32, i32) {
    %c0_i32 = arith.constant 0 : i32
    %c0_i32_0 = arith.constant 0 : i32
    %c0_i32_1 = arith.constant 0 : i32
    return %c0_i32, %c0_i32_0 : i32, i32
  }
  func.func @transform_11(%arg0: i32, %arg1: i32) -> (i32, i32) {
    %c0_i32 = arith.constant 0 : i32
    %c0_i32_0 = arith.constant 0 : i32
    %c0_i32_1 = arith.constant 0 : i32
    return %c0_i32, %c0_i32_0 : i32, i32
  }
  func.func @transform_12(%arg0: i32, %arg1: i32) -> (i32, i32) {
    %c0_i32 = arith.constant 0 : i32
    %c0_i32_0 = arith.constant 0 : i32
    %c0_i32_1 = arith.constant 0 : i32
    return %c0_i32, %c0_i32_0 : i32, i32
  }
  func.func @transform_13(%arg0: i32, %arg1: i32) -> (i32, i32) {
    %c0_i32 = arith.constant 0 : i32
    %c0_i32_0 = arith.constant 0 : i32
    %c0_i32_1 = arith.constant 0 : i32
    return %c0_i32, %c0_i32_0 : i32, i32
  }
  func.func @transform_14(%arg0: i32, %arg1: i32) -> (i32, i32) {
    %c0_i32 = arith.constant 0 : i32
    %c0_i32_0 = arith.constant 0 : i32
    %c0_i32_1 = arith.constant 0 : i32
    return %c0_i32, %c0_i32_0 : i32, i32
  }
  func.func @transform_15(%arg0: i32, %arg1: i32) -> (i32, i32, i32) {
    %c0_i32 = arith.constant 0 : i32
    %c0_i32_0 = arith.constant 0 : i32
    return %arg0, %arg1, %c0_i32 : i32, i32, i32
  }
}

</mosaic_0001>

<llo_original>
// kernel: tpu_custom_call.1
$region0: #{tpu_custom_call.1}
  #allocation0 [shape = 'u32[]', space=smem, size = 0x4, offset = 0x4, fixed_abs, tag = 'smem constant byte address 0x4 - core index']
  #allocation1 [shape = 'u32[144,128]{1,0:T(1,128)}', space=vmem, size = 0x12000, scoped, tag = 'internal scratch']
  %s0 = inlined_call_operand.hbm [shape: f32[2,16,128], index: 0, kind: input, shape index: {}]
  %s1 = inlined_call_operand.hbm [shape: f32[2,16,128], index: 1, kind: input, shape index: {}]
  %s2 = inlined_call_operand.hbm [shape: f32[2,16,128], index: 2, kind: input, shape index: {}]
  %s3 = inlined_call_operand.vmem [shape: f32[1,128], index: 3, kind: input, shape index: {}]
  %s4 = inlined_call_operand.vmem [shape: f32[1,128], index: 4, kind: input, shape index: {}]
  %s5 = inlined_call_operand.hbm [shape: f32[128,128], index: 5, kind: input, shape index: {}]
  %s6 = inlined_call_operand.vmem [shape: f32[1,128], index: 6, kind: input, shape index: {}]
  %s7 = inlined_call_operand.vmem [shape: f32[1,128], index: 7, kind: input, shape index: {}]
  %s8 = inlined_call_operand.vmem [shape: f32[1,128], index: 8, kind: input, shape index: {}]
  %s9 = inlined_call_operand.hbm [shape: f32[3,128,128], index: 9, kind: input, shape index: {}]
  %s10 = inlined_call_operand.vmem [shape: f32[1,128], index: 10, kind: input, shape index: {}]
  %s11 = inlined_call_operand.vmem [shape: f32[1,128], index: 11, kind: input, shape index: {}]
  %s12 = inlined_call_operand.vmem [shape: f32[1,128], index: 12, kind: input, shape index: {}]
  %s13 = inlined_call_operand.hbm [shape: f32[128,128], index: 13, kind: input, shape index: {}]
  %s14 = inlined_call_operand.vmem [shape: f32[1,128], index: 14, kind: input, shape index: {}]
  %s15 = inlined_call_operand.hbm [shape: f32[2,16,128], index: 15, kind: output, shape index: {}]
  %s16 = sld [smem:[#allocation0]]
  $region117: #{tpu_custom_call.1} parent=0
    _
  %s18 = ssub.s32 1, %s16
  %s19 = scalar_select 0, %s18, %s16
  $region1: #{tpu_custom_call.1} parent=0
    #allocation2 [shape = 'u8[8192]{0}', space=vmem, size = 0x2000, scoped, tag = 'input window, operand 0']
    #allocation3 [shape = 's32[2]{0}', space=sflag, size = 0x8, scoped, tag = 'scoped memory for tpu_custom_call.1']
    #allocation4 [shape = 's32[2]{0}', space=sflag, size = 0x8, scoped, tag = 'scoped memory for tpu_custom_call.1']
    #allocation5 [shape = 'u8[16384]{0}', space=vmem, size = 0x4000, scoped, tag = 'input window, operand 1']
    #allocation6 [shape = 's32[2]{0}', space=sflag, size = 0x8, scoped, tag = 'scoped memory for tpu_custom_call.1']
    #allocation7 [shape = 'u8[8192]{0}', space=vmem, size = 0x2000, scoped, tag = 'input window, operand 2']
    #allocation8 [shape = 'u8[65536]{0}', space=vmem, size = 0x10000, scoped, tag = 'input window, operand 5, single buffered']
    #allocation9 [shape = 's32[1]{0}', space=sflag, size = 0x4, scoped, tag = 'scoped memory for tpu_custom_call.1']
    #allocation10 [shape = 'u8[196608]{0}', space=vmem, size = 0x30000, scoped, tag = 'input window, operand 9, single buffered']
    #allocation11 [shape = 'u8[65536]{0}', space=vmem, size = 0x10000, scoped, tag = 'input window, operand 13, single buffered']
    #allocation12 [shape = 's32[1]{0}', space=sflag, size = 0x4, scoped, tag = 'scoped memory for tpu_custom_call.1']
    #allocation13 [shape = 'u8[16384]{0}', space=vmem, size = 0x4000, scoped, tag = 'output window, operand 0']
    %20 = vsyncpa [#allocation3], 0
    %s21 = scalar_lea.sflag [#allocation3], 1
    %22 = vsyncpa %s21, 0
    %23 = vsyncpa [#allocation6], 0
    %s24 = scalar_lea.sflag [#allocation6], 1
    %25 = vsyncpa %s24, 0
    %26 = vsyncpa [#allocation9], 0
    %27 = vsyncpa [#allocation12], 0
    %28 = vsyncpa [#allocation4], 0
    %s29 = scalar_lea.sflag [#allocation4], 1
    %30 = vsyncpa %s29, 0
    loop: start=0, step=1, limit=4
    $region2: #{tpu_custom_call.1} parent=1 // loop_pre_header
      _
    $region3: #{tpu_custom_call.1} parent=1 // loop_header
      %s32 = sphi 0, %s36
      %p33 = scmp.ge.s32.totalorder %s32, 4
      %s39 = sphi 0, %s51
      %s40 = sphi 0, %s47
      %s41 = sphi 0, %s39
      %s42 = sphi 0, %s40
      %s43 = sphi 0, %s41
      %s44 = sphi 0, %s42
      %s64 = sphi 0, %s66
      %s67 = sphi 0, %s64
      %s68 = sphi 0, %s67
      %s84 = sphi 0, %s68
      %s92 = sphi 0, %s94
      %s95 = sphi 0, %s92
      %s96 = sphi 0, %s95
      %s112 = sphi 0, %s96
      %s128 = sphi 0, %s130
      %s131 = sphi 0, %s128
      %s132 = sphi 0, %s131
      %s148 = sphi 0, %s132
      %s152 = sphi 0, %s152
      %s154 = sphi 0, %s152
      %s155 = sphi 0, %s154
      %s169 = sphi 0, %s155
      %s173 = sphi 0, %s173
      %s175 = sphi 0, %s173
      %s176 = sphi 0, %s175
      %s190 = sphi 0, %s176
      %s194 = sphi 0, %s194
      %s196 = sphi 0, %s194
      %s197 = sphi 0, %s196
      %s211 = sphi 0, %s197
      %s215 = sphi 0, %s215
      %s217 = sphi 0, %s215
      %s218 = sphi 0, %s217
      %s232 = sphi 0, %s218
      %s236 = sphi 0, %s236
      %s238 = sphi 0, %s236
      %s239 = sphi 0, %s238
      %s253 = sphi 0, %s239
      %s257 = sphi 0, %s257
      %s259 = sphi 0, %s257
      %s260 = sphi 0, %s259
      %s274 = sphi 0, %s260
      %s278 = sphi 0, %s278
      %s280 = sphi 0, %s278
      %s281 = sphi 0, %s280
      %s295 = sphi 0, %s281
      %s299 = sphi 0, %s299
      %s301 = sphi 0, %s299
      %s302 = sphi 0, %s301
      %s316 = sphi 0, %s302
      %s320 = sphi 0, %s320
      %s322 = sphi 0, %s320
      %s323 = sphi 0, %s322
      %s337 = sphi 0, %s323
      %s341 = sphi 0, %s341
      %s343 = sphi 0, %s341
      %s344 = sphi 0, %s343
      %s358 = sphi 0, %s344
      %s362 = sphi 0, %s362
      %s364 = sphi 0, %s362
      %s365 = sphi 0, %s364
      %s379 = sphi 0, %s365
      %s383 = sphi 0, %s383
      %s385 = sphi 0, %s383
      %s386 = sphi 0, %s385
      %s400 = sphi 0, %s386
      %s408 = sphi 0, %s410
      %s411 = sphi 0, %s408
      %s412 = sphi 0, %s411
      %s428 = sphi 0, %s412
    $region4: #{tpu_custom_call.1} parent=1 // loop_header_branch
      %35 = sbr.rel (%p33) target = $region8
    $region5: #{tpu_custom_call.1} parent=1 // loop_body
      %s37 = ssub.s32 %s32, 1
      %s38 = ssub.s32 %s32, 2
      %s45 = sadd.s32 1, %s40
      %p46 = scmp.ge.s32.totalorder %s45, 1
      %s47 = scalar_select %p46, 0, %s45
      %s48 = sadd.s32 1, %s39
      %s49 = scalar_select %p46, %s48, %s39
      %p50 = scmp.ge.s32.totalorder %s49, 2
      %s51 = scalar_select %p50, 0, %s49
      %s52 = smul.u32 %s40, 2
      %s53 = ssub.s32 %s52, 1
      %p54 = scmp.gt.s32.totalorder %s53, 0
      %s55 = scalar_select %p54, %s53, 0
      %s56 = smul.u32 %s47, 2
      %s57 = ssub.s32 %s56, 1
      %p58 = scmp.gt.s32.totalorder %s57, 0
      %s59 = scalar_select %p58, %s57, 0
      %s60 = ssub.s32 %s39, %s51
      %s61 = ssub.s32 %s55, %s59
      %s62 = sor.u32 %s60, %s61
      %p63 = scmp.eq.s32.totalorder %s62, 0
      %s65 = sadd.s32 %s64, 1
      %s66 = scalar_select %p63, %s64, %s65
      %p69 = pneg %p63
      %p70 = scmp.eq.s32.totalorder %s32, 1
      %p71 = por %p69, %p70
      %p72 = scmp.ne.s32.totalorder %s64, %s67
      %p73 = scmp.eq.s32.totalorder %s32, 0
      %p74 = por %p72, %p73
      %p75 = scmp.ne.s32.totalorder %s64, %s67
      %p76 = scmp.eq.s32.totalorder %s37, 1
      %p77 = por %p75, %p76
      %p78 = scmp.ne.s32.totalorder %s67, %s68
      %p79 = scmp.eq.s32.totalorder %s37, 0
      %p80 = por %p78, %p79
      %p81 = scmp.ne.s32.totalorder %s67, %s68
      %p82 = scmp.eq.s32.totalorder %s38, 1
      %p83 = por %p81, %p82
      %p85 = scmp.ne.s32.totalorder %s68, %s84
      %p86 = scmp.eq.s32.totalorder %s38, 0
      %p87 = por %p85, %p86
      %s88 = ssub.s32 %s39, %s51
      %s89 = ssub.s32 %s40, %s47
      %s90 = sor.u32 %s88, %s89
      %p91 = scmp.eq.s32.totalorder %s90, 0
      %s93 = sadd.s32 %s92, 1
      %s94 = scalar_select %p91, %s92, %s93
      %p97 = pneg %p91
      %p98 = scmp.eq.s32.totalorder %s32, 1
      %p99 = por %p97, %p98
      %p100 = scmp.ne.s32.totalorder %s92, %s95
      %p101 = scmp.eq.s32.totalorder %s32, 0
      %p102 = por %p100, %p101
      %p103 = scmp.ne.s32.totalorder %s92, %s95
      %p104 = scmp.eq.s32.totalorder %s37, 1
      %p105 = por %p103, %p104
      %p106 = scmp.ne.s32.totalorder %s95, %s96
      %p107 = scmp.eq.s32.totalorder %s37, 0
      %p108 = por %p106, %p107
      %p109 = scmp.ne.s32.totalorder %s95, %s96
      %p110 = scmp.eq.s32.totalorder %s38, 1
      %p111 = por %p109, %p110
      %p113 = scmp.ne.s32.totalorder %s96, %s112
      %p114 = scmp.eq.s32.totalorder %s38, 0
      %p115 = por %p113, %p114
      %s116 = sadd.s32 %s40, 1
      %s117 = smul.u32 %s116, 2
      %p118 = scmp.lt.s32.totalorder %s117, 1
      %s119 = scalar_select %p118, %s117, 1
      %s120 = sadd.s32 %s47, 1
      %s121 = smul.u32 %s120, 2
      %p122 = scmp.lt.s32.totalorder %s121, 1
      %s123 = scalar_select %p122, %s121, 1
      %s124 = ssub.s32 %s39, %s51
      %s125 = ssub.s32 %s119, %s123
      %s126 = sor.u32 %s124, %s125
      %p127 = scmp.eq.s32.totalorder %s126, 0
      %s129 = sadd.s32 %s128, 1
      %s130 = scalar_select %p127, %s128, %s129
      %p133 = pneg %p127
      %p134 = scmp.eq.s32.totalorder %s32, 1
      %p135 = por %p133, %p134
      %p136 = scmp.ne.s32.totalorder %s128, %s131
      %p137 = scmp.eq.s32.totalorder %s32, 0
      %p138 = por %p136, %p137
      %p139 = scmp.ne.s32.totalorder %s128, %s131
      %p140 = scmp.eq.s32.totalorder %s37, 1
      %p141 = por %p139, %p140
      %p142 = scmp.ne.s32.totalorder %s131, %s132
      %p143 = scmp.eq.s32.totalorder %s37, 0
      %p144 = por %p142, %p143
      %p145 = scmp.ne.s32.totalorder %s131, %s132
      %p146 = scmp.eq.s32.totalorder %s38, 1
      %p147 = por %p145, %p146
      %p149 = scmp.ne.s32.totalorder %s132, %s148
      %p150 = scmp.eq.s32.totalorder %s38, 0
      %p151 = por %p149, %p150
      %s153 = sadd.s32 %s152, 1
      %p156 = scmp.eq.s32.totalorder %s32, 1
      %p157 = scmp.ne.s32.totalorder %s152, %s154
      %p158 = scmp.eq.s32.totalorder %s32, 0
      %p159 = por %p157, %p158
      %p160 = scmp.ne.s32.totalorder %s152, %s154
      %p161 = scmp.eq.s32.totalorder %s37, 1
      %p162 = por %p160, %p161
      %p163 = scmp.ne.s32.totalorder %s154, %s155
      %p164 = scmp.eq.s32.totalorder %s37, 0
      %p165 = por %p163, %p164
      %p166 = scmp.ne.s32.totalorder %s154, %s155
      %p167 = scmp.eq.s32.totalorder %s38, 1
      %p168 = por %p166, %p167
      %p170 = scmp.ne.s32.totalorder %s155, %s169
      %p171 = scmp.eq.s32.totalorder %s38, 0
      %p172 = por %p170, %p171
      %s174 = sadd.s32 %s173, 1
      %p177 = scmp.eq.s32.totalorder %s32, 1
      %p178 = scmp.ne.s32.totalorder %s173, %s175
      %p179 = scmp.eq.s32.totalorder %s32, 0
      %p180 = por %p178, %p179
      %p181 = scmp.ne.s32.totalorder %s173, %s175
      %p182 = scmp.eq.s32.totalorder %s37, 1
      %p183 = por %p181, %p182
      %p184 = scmp.ne.s32.totalorder %s175, %s176
      %p185 = scmp.eq.s32.totalorder %s37, 0
      %p186 = por %p184, %p185
      %p187 = scmp.ne.s32.totalorder %s175, %s176
      %p188 = scmp.eq.s32.totalorder %s38, 1
      %p189 = por %p187, %p188
      %p191 = scmp.ne.s32.totalorder %s176, %s190
      %p192 = scmp.eq.s32.totalorder %s38, 0
      %p193 = por %p191, %p192
      %s195 = sadd.s32 %s194, 1
      %p198 = scmp.eq.s32.totalorder %s32, 1
      %p199 = scmp.ne.s32.totalorder %s194, %s196
      %p200 = scmp.eq.s32.totalorder %s32, 0
      %p201 = por %p199, %p200
      %p202 = scmp.ne.s32.totalorder %s194, %s196
      %p203 = scmp.eq.s32.totalorder %s37, 1
      %p204 = por %p202, %p203
      %p205 = scmp.ne.s32.totalorder %s196, %s197
      %p206 = scmp.eq.s32.totalorder %s37, 0
      %p207 = por %p205, %p206
      %p208 = scmp.ne.s32.totalorder %s196, %s197
      %p209 = scmp.eq.s32.totalorder %s38, 1
      %p210 = por %p208, %p209
      %p212 = scmp.ne.s32.totalorder %s197, %s211
      %p213 = scmp.eq.s32.totalorder %s38, 0
      %p214 = por %p212, %p213
      %s216 = sadd.s32 %s215, 1
      %p219 = scmp.eq.s32.totalorder %s32, 1
      %p220 = scmp.ne.s32.totalorder %s215, %s217
      %p221 = scmp.eq.s32.totalorder %s32, 0
      %p222 = por %p220, %p221
      %p223 = scmp.ne.s32.totalorder %s215, %s217
      %p224 = scmp.eq.s32.totalorder %s37, 1
      %p225 = por %p223, %p224
      %p226 = scmp.ne.s32.totalorder %s217, %s218
      %p227 = scmp.eq.s32.totalorder %s37, 0
      %p228 = por %p226, %p227
      %p229 = scmp.ne.s32.totalorder %s217, %s218
      %p230 = scmp.eq.s32.totalorder %s38, 1
      %p231 = por %p229, %p230
      %p233 = scmp.ne.s32.totalorder %s218, %s232
      %p234 = scmp.eq.s32.totalorder %s38, 0
      %p235 = por %p233, %p234
      %s237 = sadd.s32 %s236, 1
      %p240 = scmp.eq.s32.totalorder %s32, 1
      %p241 = scmp.ne.s32.totalorder %s236, %s238
      %p242 = scmp.eq.s32.totalorder %s32, 0
      %p243 = por %p241, %p242
      %p244 = scmp.ne.s32.totalorder %s236, %s238
      %p245 = scmp.eq.s32.totalorder %s37, 1
      %p246 = por %p244, %p245
      %p247 = scmp.ne.s32.totalorder %s238, %s239
      %p248 = scmp.eq.s32.totalorder %s37, 0
      %p249 = por %p247, %p248
      %p250 = scmp.ne.s32.totalorder %s238, %s239
      %p251 = scmp.eq.s32.totalorder %s38, 1
      %p252 = por %p250, %p251
      %p254 = scmp.ne.s32.totalorder %s239, %s253
      %p255 = scmp.eq.s32.totalorder %s38, 0
      %p256 = por %p254, %p255
      %s258 = sadd.s32 %s257, 1
      %p261 = scmp.eq.s32.totalorder %s32, 1
      %p262 = scmp.ne.s32.totalorder %s257, %s259
      %p263 = scmp.eq.s32.totalorder %s32, 0
      %p264 = por %p262, %p263
      %p265 = scmp.ne.s32.totalorder %s257, %s259
      %p266 = scmp.eq.s32.totalorder %s37, 1
      %p267 = por %p265, %p266
      %p268 = scmp.ne.s32.totalorder %s259, %s260
      %p269 = scmp.eq.s32.totalorder %s37, 0
      %p270 = por %p268, %p269
      %p271 = scmp.ne.s32.totalorder %s259, %s260
      %p272 = scmp.eq.s32.totalorder %s38, 1
      %p273 = por %p271, %p272
      %p275 = scmp.ne.s32.totalorder %s260, %s274
      %p276 = scmp.eq.s32.totalorder %s38, 0
      %p277 = por %p275, %p276
      %s279 = sadd.s32 %s278, 1
      %p282 = scmp.eq.s32.totalorder %s32, 1
      %p283 = scmp.ne.s32.totalorder %s278, %s280
      %p284 = scmp.eq.s32.totalorder %s32, 0
      %p285 = por %p283, %p284
      %p286 = scmp.ne.s32.totalorder %s278, %s280
      %p287 = scmp.eq.s32.totalorder %s37, 1
      %p288 = por %p286, %p287
      %p289 = scmp.ne.s32.totalorder %s280, %s281
      %p290 = scmp.eq.s32.totalorder %s37, 0
      %p291 = por %p289, %p290
      %p292 = scmp.ne.s32.totalorder %s280, %s281
      %p293 = scmp.eq.s32.totalorder %s38, 1
      %p294 = por %p292, %p293
      %p296 = scmp.ne.s32.totalorder %s281, %s295
      %p297 = scmp.eq.s32.totalorder %s38, 0
      %p298 = por %p296, %p297
      %s300 = sadd.s32 %s299, 1
      %p303 = scmp.eq.s32.totalorder %s32, 1
      %p304 = scmp.ne.s32.totalorder %s299, %s301
      %p305 = scmp.eq.s32.totalorder %s32, 0
      %p306 = por %p304, %p305
      %p307 = scmp.ne.s32.totalorder %s299, %s301
      %p308 = scmp.eq.s32.totalorder %s37, 1
      %p309 = por %p307, %p308
      %p310 = scmp.ne.s32.totalorder %s301, %s302
      %p311 = scmp.eq.s32.totalorder %s37, 0
      %p312 = por %p310, %p311
      %p313 = scmp.ne.s32.totalorder %s301, %s302
      %p314 = scmp.eq.s32.totalorder %s38, 1
      %p315 = por %p313, %p314
      %p317 = scmp.ne.s32.totalorder %s302, %s316
      %p318 = scmp.eq.s32.totalorder %s38, 0
      %p319 = por %p317, %p318
      %s321 = sadd.s32 %s320, 1
      %p324 = scmp.eq.s32.totalorder %s32, 1
      %p325 = scmp.ne.s32.totalorder %s320, %s322
      %p326 = scmp.eq.s32.totalorder %s32, 0
      %p327 = por %p325, %p326
      %p328 = scmp.ne.s32.totalorder %s320, %s322
      %p329 = scmp.eq.s32.totalorder %s37, 1
      %p330 = por %p328, %p329
      %p331 = scmp.ne.s32.totalorder %s322, %s323
      %p332 = scmp.eq.s32.totalorder %s37, 0
      %p333 = por %p331, %p332
      %p334 = scmp.ne.s32.totalorder %s322, %s323
      %p335 = scmp.eq.s32.totalorder %s38, 1
      %p336 = por %p334, %p335
      %p338 = scmp.ne.s32.totalorder %s323, %s337
      %p339 = scmp.eq.s32.totalorder %s38, 0
      %p340 = por %p338, %p339
      %s342 = sadd.s32 %s341, 1
      %p345 = scmp.eq.s32.totalorder %s32, 1
      %p346 = scmp.ne.s32.totalorder %s341, %s343
      %p347 = scmp.eq.s32.totalorder %s32, 0
      %p348 = por %p346, %p347
      %p349 = scmp.ne.s32.totalorder %s341, %s343
      %p350 = scmp.eq.s32.totalorder %s37, 1
      %p351 = por %p349, %p350
      %p352 = scmp.ne.s32.totalorder %s343, %s344
      %p353 = scmp.eq.s32.totalorder %s37, 0
      %p354 = por %p352, %p353
      %p355 = scmp.ne.s32.totalorder %s343, %s344
      %p356 = scmp.eq.s32.totalorder %s38, 1
      %p357 = por %p355, %p356
      %p359 = scmp.ne.s32.totalorder %s344, %s358
      %p360 = scmp.eq.s32.totalorder %s38, 0
      %p361 = por %p359, %p360
      %s363 = sadd.s32 %s362, 1
      %p366 = scmp.eq.s32.totalorder %s32, 1
      %p367 = scmp.ne.s32.totalorder %s362, %s364
      %p368 = scmp.eq.s32.totalorder %s32, 0
      %p369 = por %p367, %p368
      %p370 = scmp.ne.s32.totalorder %s362, %s364
      %p371 = scmp.eq.s32.totalorder %s37, 1
      %p372 = por %p370, %p371
      %p373 = scmp.ne.s32.totalorder %s364, %s365
      %p374 = scmp.eq.s32.totalorder %s37, 0
      %p375 = por %p373, %p374
      %p376 = scmp.ne.s32.totalorder %s364, %s365
      %p377 = scmp.eq.s32.totalorder %s38, 1
      %p378 = por %p376, %p377
      %p380 = scmp.ne.s32.totalorder %s365, %s379
      %p381 = scmp.eq.s32.totalorder %s38, 0
      %p382 = por %p380, %p381
      %s384 = sadd.s32 %s383, 1
      %p387 = scmp.eq.s32.totalorder %s32, 1
      %p388 = scmp.ne.s32.totalorder %s383, %s385
      %p389 = scmp.eq.s32.totalorder %s32, 0
      %p390 = por %p388, %p389
      %p391 = scmp.ne.s32.totalorder %s383, %s385
      %p392 = scmp.eq.s32.totalorder %s37, 1
      %p393 = por %p391, %p392
      %p394 = scmp.ne.s32.totalorder %s385, %s386
      %p395 = scmp.eq.s32.totalorder %s37, 0
      %p396 = por %p394, %p395
      %p397 = scmp.ne.s32.totalorder %s385, %s386
      %p398 = scmp.eq.s32.totalorder %s38, 1
      %p399 = por %p397, %p398
      %p401 = scmp.ne.s32.totalorder %s386, %s400
      %p402 = scmp.eq.s32.totalorder %s38, 0
      %p403 = por %p401, %p402
      %s404 = ssub.s32 %s39, %s51
      %s405 = ssub.s32 %s40, %s47
      %s406 = sor.u32 %s404, %s405
      %p407 = scmp.eq.s32.totalorder %s406, 0
      %s409 = sadd.s32 %s408, 1
      %s410 = scalar_select %p407, %s408, %s409
      %p413 = pneg %p407
      %p414 = scmp.eq.s32.totalorder %s32, 1
      %p415 = por %p413, %p414
      %p416 = scmp.ne.s32.totalorder %s408, %s411
      %p417 = scmp.eq.s32.totalorder %s32, 0
      %p418 = por %p416, %p417
      %p419 = scmp.ne.s32.totalorder %s408, %s411
      %p420 = scmp.eq.s32.totalorder %s37, 1
      %p421 = por %p419, %p420
      %p422 = scmp.ne.s32.totalorder %s411, %s412
      %p423 = scmp.eq.s32.totalorder %s37, 0
      %p424 = por %p422, %p423
      %p425 = scmp.ne.s32.totalorder %s411, %s412
      %p426 = scmp.eq.s32.totalorder %s38, 1
      %p427 = por %p425, %p426
      %p429 = scmp.ne.s32.totalorder %s412, %s428
      %p430 = scmp.eq.s32.totalorder %s38, 0
      %p431 = por %p429, %p430
      %p432 = scmp.le.s32.totalorder 1, %s32
      %p433 = scmp.lt.s32.totalorder %s32, 3
      %p434 = pnand %p432, %p433
      %p435 = pneg %p434
      // Predicated region
      $region9: #{tpu_custom_call.1} parent=5 // pred_check
        _
      $region10: #{tpu_custom_call.1} parent=5 // pred_check_branch
        %437 = sbr.rel (%p434) target = $region12
      $region11: #{tpu_custom_call.1} parent=5 // pred_region
        %s438 = ssub.s32 %s32, 1
        // Predicated region
        $region13: #{tpu_custom_call.1} parent=11 // pred_check
          %p439 = pneg %p165
        $region14: #{tpu_custom_call.1} parent=11 // pred_check_branch
          %441 = sbr.rel (%p439) target = $region16
        $region15: #{tpu_custom_call.1} parent=11 // pred_region
          _
        $region16: #{tpu_custom_call.1} parent=11 // pred_fallthru
          _
        // Predicated region
        $region17: #{tpu_custom_call.1} parent=11 // pred_check
          %p442 = pneg %p186
        $region18: #{tpu_custom_call.1} parent=11 // pred_check_branch
          %444 = sbr.rel (%p442) target = $region20
        $region19: #{tpu_custom_call.1} parent=11 // pred_region
          _
        $region20: #{tpu_custom_call.1} parent=11 // pred_fallthru
          _
        // Predicated region
        $region21: #{tpu_custom_call.1} parent=11 // pred_check
          %p445 = pneg %p207
        $region22: #{tpu_custom_call.1} parent=11 // pred_check_branch
          %447 = sbr.rel (%p445) target = $region24
        $region23: #{tpu_custom_call.1} parent=11 // pred_region
          %s449 = ssub.s32 2048, 2048
          %450 = vsyncadd [#allocation9], %s449
          %s451 = sshll.u32 [#allocation8], 4
          %s452 = int_to_ptr.vmem [resolvable:$true] %s451
          %457 = dma.hbm_to_vmem [thread:$0]  %s5, 2048, %s452, [#allocation9], 128, 128, 8
        $region24: #{tpu_custom_call.1} parent=11 // pred_fallthru
          _
        // Predicated region
        $region25: #{tpu_custom_call.1} parent=11 // pred_check
          %p458 = pneg %p228
        $region26: #{tpu_custom_call.1} parent=11 // pred_check_branch
          %460 = sbr.rel (%p458) target = $region28
        $region27: #{tpu_custom_call.1} parent=11 // pred_region
          _
        $region28: #{tpu_custom_call.1} parent=11 // pred_fallthru
          _
        // Predicated region
        $region29: #{tpu_custom_call.1} parent=11 // pred_check
          %p461 = pneg %p249
        $region30: #{tpu_custom_call.1} parent=11 // pred_check_branch
          %463 = sbr.rel (%p461) target = $region32
        $region31: #{tpu_custom_call.1} parent=11 // pred_region
          _
        $region32: #{tpu_custom_call.1} parent=11 // pred_fallthru
          _
        // Predicated region
        $region33: #{tpu_custom_call.1} parent=11 // pred_check
          %p464 = pneg %p270
        $region34: #{tpu_custom_call.1} parent=11 // pred_check_branch
          %466 = sbr.rel (%p464) target = $region36
        $region35: #{tpu_custom_call.1} parent=11 // pred_region
          _
        $region36: #{tpu_custom_call.1} parent=11 // pred_fallthru
          _
        // Predicated region
        $region37: #{tpu_custom_call.1} parent=11 // pred_check
          %p467 = pneg %p291
        $region38: #{tpu_custom_call.1} parent=11 // pred_check_branch
          %469 = sbr.rel (%p467) target = $region40
        $region39: #{tpu_custom_call.1} parent=11 // pred_region
          %s471 = ssub.s32 6144, 6144
          %472 = vsyncadd [#allocation9], %s471
          %s473 = sshll.u32 [#allocation10], 4
          %s474 = int_to_ptr.vmem [resolvable:$true] %s473
          %479 = dma.hbm_to_vmem [thread:$0]  %s9, 6144, %s474, [#allocation9], 128, 128, 8
        $region40: #{tpu_custom_call.1} parent=11 // pred_fallthru
          _
        // Predicated region
        $region41: #{tpu_custom_call.1} parent=11 // pred_check
          %p480 = pneg %p312
        $region42: #{tpu_custom_call.1} parent=11 // pred_check_branch
          %482 = sbr.rel (%p480) target = $region44
        $region43: #{tpu_custom_call.1} parent=11 // pred_region
          _
        $region44: #{tpu_custom_call.1} parent=11 // pred_fallthru
          _
        // Predicated region
        $region45: #{tpu_custom_call.1} parent=11 // pred_check
          %p483 = pneg %p333
        $region46: #{tpu_custom_call.1} parent=11 // pred_check_branch
          %485 = sbr.rel (%p483) target = $region48
        $region47: #{tpu_custom_call.1} parent=11 // pred_region
          _
        $region48: #{tpu_custom_call.1} parent=11 // pred_fallthru
          _
        // Predicated region
        $region49: #{tpu_custom_call.1} parent=11 // pred_check
          %p486 = pneg %p354
        $region50: #{tpu_custom_call.1} parent=11 // pred_check_branch
          %488 = sbr.rel (%p486) target = $region52
        $region51: #{tpu_custom_call.1} parent=11 // pred_region
          _
        $region52: #{tpu_custom_call.1} parent=11 // pred_fallthru
          _
        // Predicated region
        $region53: #{tpu_custom_call.1} parent=11 // pred_check
          %p489 = pneg %p375
        $region54: #{tpu_custom_call.1} parent=11 // pred_check_branch
          %491 = sbr.rel (%p489) target = $region56
        $region55: #{tpu_custom_call.1} parent=11 // pred_region
          %s493 = ssub.s32 2048, 2048
          %494 = vsyncadd [#allocation12], %s493
          %s495 = sshll.u32 [#allocation11], 4
          %s496 = int_to_ptr.vmem [resolvable:$true] %s495
          %501 = dma.hbm_to_vmem [thread:$0]  %s13, 2048, %s496, [#allocation12], 128, 128, 8
        $region56: #{tpu_custom_call.1} parent=11 // pred_fallthru
          _
        // Predicated region
        $region57: #{tpu_custom_call.1} parent=11 // pred_check
          %p502 = pneg %p396
        $region58: #{tpu_custom_call.1} parent=11 // pred_check_branch
          %504 = sbr.rel (%p502) target = $region60
        $region59: #{tpu_custom_call.1} parent=11 // pred_region
          _
        $region60: #{tpu_custom_call.1} parent=11 // pred_fallthru
          _
      $region12: #{tpu_custom_call.1} parent=5 // pred_fallthru
        _
      %p505 = scmp.lt.s32.totalorder %s32, 2
      // Predicated region
      $region61: #{tpu_custom_call.1} parent=5 // pred_check
        %p506 = pneg %p505
      $region62: #{tpu_custom_call.1} parent=5 // pred_check_branch
        %508 = sbr.rel (%p506) target = $region64
      $region63: #{tpu_custom_call.1} parent=5 // pred_region
        // Predicated region
        $region65: #{tpu_custom_call.1} parent=63 // pred_check
          %p509 = pneg %p74
        $region66: #{tpu_custom_call.1} parent=63 // pred_check_branch
          %511 = sbr.rel (%p509) target = $region68
        $region67: #{tpu_custom_call.1} parent=63 // pred_region
          %s512 = sand.u32 %s64, 1
          %s513 = scalar_lea.sflag [#allocation3], %s512
          %s514 = sand.u32 %s64, 1
          %s515 = smul.addr %s514, 8
          %s516 = scalar_lea.vmem [#allocation2], %s515
          %s517 = smul.u32 %s40, 2
          %s518 = ssub.s32 %s517, 1
          %p519 = scmp.gt.s32.totalorder %s518, 0
          %s520 = scalar_select %p519, %s518, 0
          %s522 = ssub.s32 128, 128
          %523 = vsyncadd %s513, %s522
          %s524 = smul.addr %s39, 2
          %s525 = sadd.s32 %s520, %s524
          %s526 = smul.addr %s525, 128
          %s527 = scalar_lea.hbm %s0, %s526
          %s529 = sshll.u32 %s516, 4
          %s530 = int_to_ptr.vmem [resolvable:$true] %s529
          %532 = dma.hbm_to_vmem [thread:$0]  %s527, 128, %s530, %s513
        $region68: #{tpu_custom_call.1} parent=63 // pred_fallthru
          _
        // Predicated region
        $region69: #{tpu_custom_call.1} parent=63 // pred_check
          %p533 = pneg %p102
        $region70: #{tpu_custom_call.1} parent=63 // pred_check_branch
          %535 = sbr.rel (%p533) target = $region72
        $region71: #{tpu_custom_call.1} parent=63 // pred_region
          %s536 = sand.u32 %s32, 1
          %s537 = scalar_lea.sflag [#allocation6], %s536
          %s538 = sand.u32 %s92, 1
          %s539 = smul.addr %s538, 16
          %s540 = scalar_lea.vmem [#allocation5], %s539
          %s541 = smul.u32 2, %s40
          %s543 = ssub.s32 256, 256
          %544 = vsyncadd %s537, %s543
          %s545 = smul.addr %s39, 2
          %s546 = sadd.s32 %s541, %s545
          %s547 = smul.addr %s546, 128
          %s548 = scalar_lea.hbm %s1, %s547
          %s549 = sshll.u32 %s540, 4
          %s550 = int_to_ptr.vmem [resolvable:$true] %s549
          %555 = dma.hbm_to_vmem [thread:$0]  %s548, 256, %s550, %s537, 128, 128, 8
        $region72: #{tpu_custom_call.1} parent=63 // pred_fallthru
          _
        // Predicated region
        $region73: #{tpu_custom_call.1} parent=63 // pred_check
          %p556 = pneg %p138
        $region74: #{tpu_custom_call.1} parent=63 // pred_check_branch
          %558 = sbr.rel (%p556) target = $region76
        $region75: #{tpu_custom_call.1} parent=63 // pred_region
          %s559 = sand.u32 %s32, 1
          %s560 = scalar_lea.sflag [#allocation6], %s559
          %s561 = sand.u32 %s128, 1
          %s562 = smul.addr %s561, 8
          %s563 = scalar_lea.vmem [#allocation7], %s562
          %s564 = sadd.s32 %s40, 1
          %s565 = smul.u32 %s564, 2
          %p566 = scmp.lt.s32.totalorder %s565, 1
          %s567 = scalar_select %p566, %s565, 1
          %s569 = ssub.s32 128, 128
          %570 = vsyncadd %s560, %s569
          %s571 = smul.addr %s39, 2
          %s572 = sadd.s32 %s567, %s571
          %s573 = smul.addr %s572, 128
          %s574 = scalar_lea.hbm %s2, %s573
          %s576 = sshll.u32 %s563, 4
          %s577 = int_to_ptr.vmem [resolvable:$true] %s576
          %579 = dma.hbm_to_vmem [thread:$0]  %s574, 128, %s577, %s560
        $region76: #{tpu_custom_call.1} parent=63 // pred_fallthru
          _
      $region64: #{tpu_custom_call.1} parent=5 // pred_fallthru
        _
      %p580 = scmp.le.s32.totalorder 1, %s32
      %p581 = scmp.lt.s32.totalorder %s32, 3
      %p582 = pnand %p580, %p581
      %p583 = pneg %p582
      // Predicated region
      $region77: #{tpu_custom_call.1} parent=5 // pred_check
        _
      $region78: #{tpu_custom_call.1} parent=5 // pred_check_branch
        %585 = sbr.rel (%p582) target = $region80
      $region79: #{tpu_custom_call.1} parent=5 // pred_region
        %s586 = ssub.s32 %s32, 1
        %s587 = sand.u32 %s67, 1
        %s588 = scalar_lea.sflag [#allocation3], %s587
        %s589 = sand.u32 %s67, 1
        %s590 = smul.addr %s589, 8
        %s591 = scalar_lea.vmem [#allocation2], %s590
        // Predicated region
        $region81: #{tpu_custom_call.1} parent=79 // pred_check
          %p592 = pneg %p80
        $region82: #{tpu_custom_call.1} parent=79 // pred_check_branch
          %594 = sbr.rel (%p592) target = $region84
        $region83: #{tpu_custom_call.1} parent=79 // pred_region
          %595 = dma.done %s588, 128
        $region84: #{tpu_custom_call.1} parent=79 // pred_fallthru
          _
        %s596 = sand.u32 %s37, 1
        %s597 = scalar_lea.sflag [#allocation6], %s596
        %s598 = sand.u32 %s95, 1
        %s599 = smul.addr %s598, 16
        %s600 = scalar_lea.vmem [#allocation5], %s599
        // Predicated region
        $region85: #{tpu_custom_call.1} parent=79 // pred_check
          %p601 = pneg %p108
        $region86: #{tpu_custom_call.1} parent=79 // pred_check_branch
          %603 = sbr.rel (%p601) target = $region88
        $region87: #{tpu_custom_call.1} parent=79 // pred_region
          %604 = dma.done %s597, 256
        $region88: #{tpu_custom_call.1} parent=79 // pred_fallthru
          _
        %s605 = sand.u32 %s37, 1
        %s606 = scalar_lea.sflag [#allocation6], %s605
        %s607 = sand.u32 %s131, 1
        %s608 = smul.addr %s607, 8
        %s609 = scalar_lea.vmem [#allocation7], %s608
        // Predicated region
        $region89: #{tpu_custom_call.1} parent=79 // pred_check
          %p610 = pneg %p144
        $region90: #{tpu_custom_call.1} parent=79 // pred_check_branch
          %612 = sbr.rel (%p610) target = $region92
        $region91: #{tpu_custom_call.1} parent=79 // pred_region
          %613 = dma.done %s606, 128
        $region92: #{tpu_custom_call.1} parent=79 // pred_fallthru
          _
        // Predicated region
        $region93: #{tpu_custom_call.1} parent=79 // pred_check
          %p614 = pneg %p207
        $region94: #{tpu_custom_call.1} parent=79 // pred_check_branch
          %616 = sbr.rel (%p614) target = $region96
        $region95: #{tpu_custom_call.1} parent=79 // pred_region
          %617 = dma.done [#allocation9], 2048
        $region96: #{tpu_custom_call.1} parent=79 // pred_fallthru
          _
        // Predicated region
        $region97: #{tpu_custom_call.1} parent=79 // pred_check
          %p618 = pneg %p291
        $region98: #{tpu_custom_call.1} parent=79 // pred_check_branch
          %620 = sbr.rel (%p618) target = $region100
        $region99: #{tpu_custom_call.1} parent=79 // pred_region
          %621 = dma.done [#allocation9], 6144
        $region100: #{tpu_custom_call.1} parent=79 // pred_fallthru
          _
        // Predicated region
        $region101: #{tpu_custom_call.1} parent=79 // pred_check
          %p622 = pneg %p375
        $region102: #{tpu_custom_call.1} parent=79 // pred_check_branch
          %624 = sbr.rel (%p622) target = $region104
        $region103: #{tpu_custom_call.1} parent=79 // pred_region
          %625 = dma.done [#allocation12], 2048
        $region104: #{tpu_custom_call.1} parent=79 // pred_fallthru
          _
        %s626 = sand.u32 %s67, 1
        %s627 = scalar_lea.sflag [#allocation3], %s626
        %s628 = sand.u32 %s67, 1
        %s629 = smul.addr %s628, 8
        %s630 = scalar_lea.vmem [#allocation2], %s629
        %p631 = pneg %p80
        %p632 = pneg %p77
        %s633 = sand.u32 %s37, 1
        %s634 = scalar_lea.sflag [#allocation6], %s633
        %s635 = sand.u32 %s95, 1
        %s636 = smul.addr %s635, 16
        %s637 = scalar_lea.vmem [#allocation5], %s636
        %p638 = pneg %p108
        %p639 = pneg %p105
        %s640 = sand.u32 %s37, 1
        %s641 = scalar_lea.sflag [#allocation6], %s640
        %s642 = sand.u32 %s131, 1
        %s643 = smul.addr %s642, 8
        %s644 = scalar_lea.vmem [#allocation7], %s643
        %p645 = pneg %p144
        %p646 = pneg %p141
        %p647 = pneg %p165
        %p648 = pneg %p162
        %p649 = pneg %p186
        %p650 = pneg %p183
        %p651 = pneg %p207
        %p652 = pneg %p204
        %p653 = pneg %p228
        %p654 = pneg %p225
        %p655 = pneg %p249
        %p656 = pneg %p246
        %p657 = pneg %p270
        %p658 = pneg %p267
        %p659 = pneg %p291
        %p660 = pneg %p288
        %p661 = pneg %p312
        %p662 = pneg %p309
        %p663 = pneg %p333
        %p664 = pneg %p330
        %p665 = pneg %p354
        %p666 = pneg %p351
        %p667 = pneg %p375
        %p668 = pneg %p372
        %p669 = pneg %p396
        %p670 = pneg %p393
        %p671 = pneg %p424
        %p672 = pneg %p421
        %s673 = sand.u32 %s411, 1
        %s674 = scalar_lea.sflag [#allocation4], %s673
        %s675 = sand.u32 %s411, 1
        %s676 = smul.addr %s675, 16
        %s677 = scalar_lea.vmem [#allocation13], %s676
        %s678 = smul.u32 %s42, 2
        %s679 = ssub.s32 %s678, 1
        %p680 = scmp.gt.s32.totalorder %s679, 0
        %s681 = scalar_select %p680, %s679, 0
        %s682 = smul.u32 2, %s42
        %s683 = sadd.s32 %s42, 1
        %s684 = smul.u32 %s683, 2
        %p685 = scmp.lt.s32.totalorder %s684, 1
        %s686 = scalar_select %p685, %s684, 1
        %s687 = smul.u32 2, %s42
        %v688 = vld [vmem:[%s600] sm:$0xff]
        %v689 = vld [vmem:[%s600 + $0x8] sm:$0xff]
        %v690 = vld [vmem:[%s591] sm:$0xff]
        %v691 = vld [vmem:[%s609] sm:$0xff]
        %v692 = vld [vmem:[%s3] sm:$0x1]
        %v693 = vld [vmem:[%s4] sm:$0x1]
        %694 = vadd.xlane.f32.xlu0 %v690
        %v695 = vpop.xlane.xlu0 %694
        %696 = vadd.xlane.f32.xlu0 %v688
        %v697 = vpop.xlane.xlu0 %696
        %698 = vadd.xlane.f32.xlu0 %v689
        %v699 = vpop.xlane.xlu0 %698
        %700 = vadd.xlane.f32.xlu0 %v691
        %v701 = vpop.xlane.xlu0 %700
        %v702 = vmul.f32 %v690, %v690
        %v703 = vmul.f32 %v688, %v688
        %v704 = vmul.f32 %v689, %v689
        %v705 = vmul.f32 %v691, %v691
        %706 = vadd.xlane.f32.xlu0 %v702
        %v707 = vpop.xlane.xlu0 %706
        %708 = vadd.xlane.f32.xlu0 %v703
        %v709 = vpop.xlane.xlu0 %708
        %710 = vadd.xlane.f32.xlu0 %v704
        %v711 = vpop.xlane.xlu0 %710
        %712 = vadd.xlane.f32.xlu0 %v705
        %v713 = vpop.xlane.xlu0 %712
        %v714 = vmul.f32 %v695, 0.03125
        %v715 = vmul.f32 %v697, 0.03125
        %v716 = vmul.f32 %v699, 0.03125
        %v717 = vmul.f32 %v701, 0.03125
        %v718 = vmul.f32 %v707, 0.03125
        %v719 = vmul.f32 %v709, 0.03125
        %v720 = vmul.f32 %v711, 0.03125
        %v721 = vmul.f32 %v713, 0.03125
        %v722 = vmul.f32 %v714, %v714
        %v723 = vmul.f32 %v715, %v715
        %v724 = vmul.f32 %v716, %v716
        %v725 = vmul.f32 %v717, %v717
        %v726 = vsub.f32 %v718, %v722
        %v727 = vsub.f32 %v719, %v723
        %v728 = vsub.f32 %v720, %v724
        %v729 = vsub.f32 %v721, %v725
        %v730 = vmax.f32 %v726, 0.0
        %v731 = vmax.f32 %v727, 0.0
        %v732 = vmax.f32 %v728, 0.0
        %v733 = vmax.f32 %v729, 0.0
        %v734 = vsub.f32 %v690, %v714
        %v735 = vsub.f32 %v688, %v715
        %v736 = vsub.f32 %v689, %v716
        %v737 = vsub.f32 %v691, %v717
        %v738 = vadd.f32 %v730, 1e-05
        %v739 = vadd.f32 %v731, 1e-05
        %v740 = vadd.f32 %v732, 1e-05
        %v741 = vadd.f32 %v733, 1e-05
        %v742 = vrsqrt.pop %v738
        %v743 = vrsqrt.pop %v739
        %v744 = vrsqrt.pop %v740
        %v745 = vrsqrt.pop %v741
        %v746 = vmul.f32 %v734, %v742
        %v747 = vmul.f32 %v735, %v743
        %v748 = vmul.f32 %v736, %v744
        %v749 = vmul.f32 %v737, %v745
        %v751 = vlaneseq
        %v752 = vshrl.u32 %v751, 7
        %v753 = vsub.s32 0, %v752
        %v754 = vrot.slane %v692, %v753
        %v756 = vmul.f32 %v746, %v754
        %v757 = vmul.f32 %v747, %v754
        %v758 = vmul.f32 %v748, %v754
        %v759 = vmul.f32 %v749, %v754
        %v761 = vlaneseq
        %v762 = vshrl.u32 %v761, 7
        %v763 = vsub.s32 0, %v762
        %v764 = vrot.slane %v693, %v763
        %v766 = vadd.f32 %v756, %v764
        %v767 = vadd.f32 %v757, %v764
        %v768 = vadd.f32 %v758, %v764
        %v769 = vadd.f32 %v759, %v764
        %v770 = vmul.f32 %v766, 0.5
        %v771 = vmul.f32 %v767, 0.5
        %v772 = vmul.f32 %v768, 0.5
        %v773 = vmul.f32 %v769, 0.5
        %v774 = vmul.f32 %v766, 0.70710677
        %v775 = vmul.f32 %v767, 0.70710677
        %v776 = vmul.f32 %v768, 0.70710677
        %v777 = vmul.f32 %v769, 0.70710677
        %v778 = verf.f32.pop %v774
        %v779 = verf.f32.pop %v775
        %v780 = verf.f32.pop %v776
        %v781 = verf.f32.pop %v777
        %v782 = vadd.f32 %v778, 1.0
        %v783 = vadd.f32 %v779, 1.0
        %v784 = vadd.f32 %v780, 1.0
        %v785 = vadd.f32 %v781, 1.0
        %v786 = vmul.f32 %v770, %v782
        %v787 = vmul.f32 %v771, %v783
        %v788 = vmul.f32 %v772, %v784
        %v789 = vmul.f32 %v773, %v785
        %v790 = vld [vmem:[#allocation8] sm:$0xff]
        %v791 = vld [vmem:[#allocation8 + $0x8] sm:$0xff]
        %v792 = vld [vmem:[#allocation8 + $0x10] sm:$0xff]
        %v793 = vld [vmem:[#allocation8 + $0x18] sm:$0xff]
        %v794 = vld [vmem:[#allocation8 + $0x20] sm:$0xff]
        %v795 = vld [vmem:[#allocation8 + $0x28] sm:$0xff]
        %v796 = vld [vmem:[#allocation8 + $0x30] sm:$0xff]
        %v797 = vld [vmem:[#allocation8 + $0x38] sm:$0xff]
        %v798 = vld [vmem:[#allocation8 + $0x40] sm:$0xff]
        %v799 = vld [vmem:[#allocation8 + $0x48] sm:$0xff]
        %v800 = vld [vmem:[#allocation8 + $0x50] sm:$0xff]
        %v801 = vld [vmem:[#allocation8 + $0x58] sm:$0xff]
        %v802 = vld [vmem:[#allocation8 + $0x60] sm:$0xff]
        %v803 = vld [vmem:[#allocation8 + $0x68] sm:$0xff]
        %v804 = vld [vmem:[#allocation8 + $0x70] sm:$0xff]
        %v805 = vld [vmem:[#allocation8 + $0x78] sm:$0xff]
        %v806 = vld [vmem:[%s6] sm:$0x1]
        %v808 = vlaneseq
        %v809 = vshrl.u32 %v808, 7
        %v810 = vsub.s32 0, %v809
        %v811 = vrot.slane %v806, %v810
        %813 = vmatprep.subr.mxu0 0.0
        %814 = vmatpush1.msra.mxu0 %v790
        %815 = vmatprep.subr.mxu0 0.0
        %816 = vmatpush1.msra.mxu0 %v791
        %817 = vmatprep.subr.mxu0 0.0
        %818 = vmatpush1.msra.mxu0 %v792
        %819 = vmatprep.subr.mxu0 0.0
        %820 = vmatpush1.msra.mxu0 %v793
        %821 = vmatprep.subr.mxu0 0.0
        %822 = vmatpush1.msra.mxu0 %v794
        %823 = vmatprep.subr.mxu0 0.0
        %824 = vmatpush1.msra.mxu0 %v795
        %825 = vmatprep.subr.mxu0 0.0
        %826 = vmatpush1.msra.mxu0 %v796
        %827 = vmatprep.subr.mxu0 0.0
        %828 = vmatpush1.msra.mxu0 %v797
        %829 = vmatprep.subr.mxu0 0.0
        %830 = vmatpush1.msra.mxu0 %v798
        %831 = vmatprep.subr.mxu0 0.0
        %832 = vmatpush1.msra.mxu0 %v799
        %833 = vmatprep.subr.mxu0 0.0
        %834 = vmatpush1.msra.mxu0 %v800
        %835 = vmatprep.subr.mxu0 0.0
        %836 = vmatpush1.msra.mxu0 %v801
        %837 = vmatprep.subr.mxu0 0.0
        %838 = vmatpush1.msra.mxu0 %v802
        %839 = vmatprep.subr.mxu0 0.0
        %840 = vmatpush1.msra.mxu0 %v803
        %841 = vmatprep.subr.mxu0 0.0
        %842 = vmatpush1.msra.mxu0 %v804
        %843 = vmatprep.subr.mxu0 0.0
        %844 = vmatpush1.msra.mxu0 %v805
        %845 = vmatprep.subr.mxu0 0.0
        %846 = vmatpush1.msra.mxu0 0.0
        %847 = vmatprep.subr.mxu0 0.0
        %848 = vmatpush1.msra.mxu0 0.0
        %849 = vmatprep.subr.mxu0 0.0
        %850 = vmatpush1.msra.mxu0 0.0
        %851 = vmatprep.subr.mxu0 0.0
        %852 = vmatpush1.msra.mxu0 0.0
        %853 = vmatprep.subr.mxu0 0.0
        %854 = vmatpush1.msra.mxu0 0.0
        %855 = vmatprep.subr.mxu0 0.0
        %856 = vmatpush1.msra.mxu0 0.0
        %857 = vmatprep.subr.mxu0 0.0
        %858 = vmatpush1.msra.mxu0 0.0
        %859 = vmatprep.subr.mxu0 0.0
        %860 = vmatpush1.msra.mxu0 0.0
        %861 = vmatprep.subr.mxu0 0.0
        %862 = vmatpush1.msra.mxu0 0.0
        %863 = vmatprep.subr.mxu0 0.0
        %864 = vmatpush1.msra.mxu0 0.0
        %865 = vmatprep.subr.mxu0 0.0
        %866 = vmatpush1.msra.mxu0 0.0
        %867 = vmatprep.subr.mxu0 0.0
        %868 = vmatpush1.msra.mxu0 0.0
        %869 = vmatprep.subr.mxu0 0.0
        %870 = vmatpush1.msra.mxu0 0.0
        %871 = vmatprep.subr.mxu0 0.0
        %872 = vmatpush1.msra.mxu0 0.0
        %873 = vmatprep.subr.mxu0 0.0
        %874 = vmatpush1.msra.mxu0 0.0
        %875 = vmatprep.subr.mxu0 0.0
        %876 = vmatpush1.msra.mxu0 0.0
        %877 = vmatprep.mubr.f32.mxu0 0.0
        %878 = vmatmul.mubr.f32.gmra.mrb[0].mxu0 %v786
        %v879 = vpop.f32.mrb[0].mxu0
        %v880 = vadd.f32 %v811, %v879
        %v881 = vpop.f32.mrb[0].mxu0
        %882 = vmatprep.mubr.f32.mxu0 0.0
        %883 = vmatmul.mubr.f32.gmra.mrb[0].mxu0 %v787
        %v884 = vpop.f32.mrb[0].mxu0
        %v885 = vadd.f32 %v811, %v884
        %v886 = vpop.f32.mrb[0].mxu0
        %887 = vmatprep.mubr.f32.mxu0 0.0
        %888 = vmatmul.mubr.f32.gmra.mrb[0].mxu0 %v788
        %v889 = vpop.f32.mrb[0].mxu0
        %v890 = vadd.f32 %v811, %v889
        %v891 = vpop.f32.mrb[0].mxu0
        %892 = vmatprep.mubr.f32.mxu0 0.0
        %893 = vmatmul.mubr.f32.gmra.mrb[0].mxu0 %v789
        %v894 = vpop.f32.mrb[0].mxu0
        %v895 = vadd.f32 %v811, %v894
        %v896 = vpop.f32.mrb[0].mxu0
        %897 = vdwg.mxu0
        %v898 = vld [vmem:[%s7] sm:$0x1]
        %v899 = vld [vmem:[%s8] sm:$0x1]
        %900 = vadd.xlane.f32.xlu0 %v880
        %v901 = vpop.xlane.xlu0 %900
        %902 = vadd.xlane.f32.xlu0 %v885
        %v903 = vpop.xlane.xlu0 %902
        %904 = vadd.xlane.f32.xlu0 %v890
        %v905 = vpop.xlane.xlu0 %904
        %906 = vadd.xlane.f32.xlu0 %v895
        %v907 = vpop.xlane.xlu0 %906
        %v908 = vmul.f32 %v880, %v880
        %v909 = vmul.f32 %v885, %v885
        %v910 = vmul.f32 %v890, %v890
        %v911 = vmul.f32 %v895, %v895
        %912 = vadd.xlane.f32.xlu0 %v908
        %v913 = vpop.xlane.xlu0 %912
        %914 = vadd.xlane.f32.xlu0 %v909
        %v915 = vpop.xlane.xlu0 %914
        %916 = vadd.xlane.f32.xlu0 %v910
        %v917 = vpop.xlane.xlu0 %916
        %918 = vadd.xlane.f32.xlu0 %v911
        %v919 = vpop.xlane.xlu0 %918
        %v920 = vmul.f32 %v901, 0.015625
        %v921 = vmul.f32 %v903, 0.015625
        %v922 = vmul.f32 %v905, 0.015625
        %v923 = vmul.f32 %v907, 0.015625
        %v924 = vmul.f32 %v913, 0.015625
        %v925 = vmul.f32 %v915, 0.015625
        %v926 = vmul.f32 %v917, 0.015625
        %v927 = vmul.f32 %v919, 0.015625
        %v928 = vmul.f32 %v920, %v920
        %v929 = vmul.f32 %v921, %v921
        %v930 = vmul.f32 %v922, %v922
        %v931 = vmul.f32 %v923, %v923
        %v932 = vsub.f32 %v924, %v928
        %v933 = vsub.f32 %v925, %v929
        %v934 = vsub.f32 %v926, %v930
        %v935 = vsub.f32 %v927, %v931
        %v936 = vmax.f32 %v932, 0.0
        %v937 = vmax.f32 %v933, 0.0
        %v938 = vmax.f32 %v934, 0.0
        %v939 = vmax.f32 %v935, 0.0
        %v940 = vsub.f32 %v880, %v920
        %v941 = vsub.f32 %v885, %v921
        %v942 = vsub.f32 %v890, %v922
        %v943 = vsub.f32 %v895, %v923
        %v944 = vadd.f32 %v936, 1e-05
        %v945 = vadd.f32 %v937, 1e-05
        %v946 = vadd.f32 %v938, 1e-05
        %v947 = vadd.f32 %v939, 1e-05
        %v948 = vrsqrt.pop %v944
        %v949 = vrsqrt.pop %v945
        %v950 = vrsqrt.pop %v946
        %v951 = vrsqrt.pop %v947
        %v952 = vmul.f32 %v940, %v948
        %v953 = vmul.f32 %v941, %v949
        %v954 = vmul.f32 %v942, %v950
        %v955 = vmul.f32 %v943, %v951
        %v957 = vlaneseq
        %v958 = vshrl.u32 %v957, 7
        %v959 = vsub.s32 0, %v958
        %v960 = vrot.slane %v898, %v959
        %v962 = vmul.f32 %v952, %v960
        %v963 = vmul.f32 %v953, %v960
        %v964 = vmul.f32 %v954, %v960
        %v965 = vmul.f32 %v955, %v960
        %v967 = vlaneseq
        %v968 = vshrl.u32 %v967, 7
        %v969 = vsub.s32 0, %v968
        %v970 = vrot.slane %v899, %v969
        %v972 = vadd.f32 %v962, %v970
        %v973 = vadd.f32 %v963, %v970
        %v974 = vadd.f32 %v964, %v970
        %v975 = vadd.f32 %v965, %v970
        %v976 = vmul.f32 %v972, 0.5
        %v977 = vmul.f32 %v973, 0.5
        %v978 = vmul.f32 %v974, 0.5
        %v979 = vmul.f32 %v975, 0.5
        %v980 = vmul.f32 %v972, 0.70710677
        %v981 = vmul.f32 %v973, 0.70710677
        %v982 = vmul.f32 %v974, 0.70710677
        %v983 = vmul.f32 %v975, 0.70710677
        %v984 = verf.f32.pop %v980
        %v985 = verf.f32.pop %v981
        %v986 = verf.f32.pop %v982
        %v987 = verf.f32.pop %v983
        %v988 = vadd.f32 %v984, 1.0
        %v989 = vadd.f32 %v985, 1.0
        %v990 = vadd.f32 %v986, 1.0
        %v991 = vadd.f32 %v987, 1.0
        %v992 = vmul.f32 %v976, %v988
        %v993 = vmul.f32 %v977, %v989
        %v994 = vmul.f32 %v978, %v990
        %v995 = vmul.f32 %v979, %v991
        %v996 = vlaneseq
        %v997 = vshrl.u32 %v996, 7
        %v998 = vadd.s32 %v997, 8
        %v999 = vadd.s32 %v997, 16
        %v1000 = vadd.s32 %v997, 24
        %s1001 = smul.u32 %s42, 16
        %s1002 = ssub.s32 %s1001, 8
        %v1003 = vstv %s1002
        %v1004 = vadd.s32 %v1003, %v997
        %v1005 = vadd.s32 %v1003, %v998
        %v1006 = vadd.s32 %v1003, %v999
        %v1007 = vadd.s32 %v1003, %v1000
        %vm1008 = vcmp.ge.s32.totalorder %v1004, 0
        %vm1009 = vcmp.ge.s32.totalorder %v1005, 0
        %vm1010 = vcmp.ge.s32.totalorder %v1006, 0
        %vm1011 = vcmp.ge.s32.totalorder %v1007, 0
        %vm1012 = vcmp.lt.s32.totalorder %v1004, 16
        %vm1013 = vcmp.lt.s32.totalorder %v1005, 16
        %vm1014 = vcmp.lt.s32.totalorder %v1006, 16
        %vm1015 = vcmp.lt.s32.totalorder %v1007, 16
        %vm1016 = vmand %vm1008, %vm1012
        %vm1017 = vmand %vm1009, %vm1013
        %vm1018 = vmand %vm1010, %vm1014
        %vm1019 = vmand %vm1011, %vm1015
        %v1020 = vsel %vm1016, 1, 0
        %v1021 = vsel %vm1017, 1, 0
        %v1022 = vsel %vm1018, 1, 0
        %v1023 = vsel %vm1019, 1, 0
        %vm1024 = vcmp.eq.s32.totalorder %v1020, 1
        %vm1025 = vcmp.eq.s32.totalorder %v1021, 1
        %vm1026 = vcmp.eq.s32.totalorder %v1022, 1
        %vm1027 = vcmp.eq.s32.totalorder %v1023, 1
        %v1028 = vsel %vm1024, %v992, 0.0
        %v1029 = vsel %vm1025, %v993, 0.0
        %v1030 = vsel %vm1026, %v994, 0.0
        %v1031 = vsel %vm1027, %v995, 0.0
        %v1032 = vld [vmem:[#allocation10] sm:$0xff]
        %v1033 = vld [vmem:[#allocation10 + $0x8] sm:$0xff]
        %v1034 = vld [vmem:[#allocation10 + $0x10] sm:$0xff]
        %v1035 = vld [vmem:[#allocation10 + $0x18] sm:$0xff]
        %v1036 = vld [vmem:[#allocation10 + $0x20] sm:$0xff]
        %v1037 = vld [vmem:[#allocation10 + $0x28] sm:$0xff]
        %v1038 = vld [vmem:[#allocation10 + $0x30] sm:$0xff]
        %v1039 = vld [vmem:[#allocation10 + $0x38] sm:$0xff]
        %v1040 = vld [vmem:[#allocation10 + $0x40] sm:$0xff]
        %v1041 = vld [vmem:[#allocation10 + $0x48] sm:$0xff]
        %v1042 = vld [vmem:[#allocation10 + $0x50] sm:$0xff]
        %v1043 = vld [vmem:[#allocation10 + $0x58] sm:$0xff]
        %v1044 = vld [vmem:[#allocation10 + $0x60] sm:$0xff]
        %v1045 = vld [vmem:[#allocation10 + $0x68] sm:$0xff]
        %v1046 = vld [vmem:[#allocation10 + $0x70] sm:$0xff]
        %v1047 = vld [vmem:[#allocation10 + $0x78] sm:$0xff]
        %s1048 = scalar_lea.vmem [#allocation10], 128
        %v1049 = vld [vmem:[%s1048] sm:$0xff]
        %v1050 = vld [vmem:[%s1048 + $0x8] sm:$0xff]
        %v1051 = vld [vmem:[%s1048 + $0x10] sm:$0xff]
        %v1052 = vld [vmem:[%s1048 + $0x18] sm:$0xff]
        %v1053 = vld [vmem:[%s1048 + $0x20] sm:$0xff]
        %v1054 = vld [vmem:[%s1048 + $0x28] sm:$0xff]
        %v1055 = vld [vmem:[%s1048 + $0x30] sm:$0xff]
        %v1056 = vld [vmem:[%s1048 + $0x38] sm:$0xff]
        %v1057 = vld [vmem:[%s1048 + $0x40] sm:$0xff]
        %v1058 = vld [vmem:[%s1048 + $0x48] sm:$0xff]
        %v1059 = vld [vmem:[%s1048 + $0x50] sm:$0xff]
        %v1060 = vld [vmem:[%s1048 + $0x58] sm:$0xff]
        %v1061 = vld [vmem:[%s1048 + $0x60] sm:$0xff]
        %v1062 = vld [vmem:[%s1048 + $0x68] sm:$0xff]
        %v1063 = vld [vmem:[%s1048 + $0x70] sm:$0xff]
        %v1064 = vld [vmem:[%s1048 + $0x78] sm:$0xff]
        %1065 = vmatprep.subr.mxu0 0.0
        %1066 = vmatpush1.msra.mxu0 %v1049
        %1067 = vmatprep.subr.mxu0 0.0
        %1068 = vmatpush1.msra.mxu0 %v1050
        %1069 = vmatprep.subr.mxu0 0.0
        %1070 = vmatpush1.msra.mxu0 %v1051
        %1071 = vmatprep.subr.mxu0 0.0
        %1072 = vmatpush1.msra.mxu0 %v1052
        %1073 = vmatprep.subr.mxu0 0.0
        %1074 = vmatpush1.msra.mxu0 %v1053
        %1075 = vmatprep.subr.mxu0 0.0
        %1076 = vmatpush1.msra.mxu0 %v1054
        %1077 = vmatprep.subr.mxu0 0.0
        %1078 = vmatpush1.msra.mxu0 %v1055
        %1079 = vmatprep.subr.mxu0 0.0
        %1080 = vmatpush1.msra.mxu0 %v1056
        %1081 = vmatprep.subr.mxu0 0.0
        %1082 = vmatpush1.msra.mxu0 %v1057
        %1083 = vmatprep.subr.mxu0 0.0
        %1084 = vmatpush1.msra.mxu0 %v1058
        %1085 = vmatprep.subr.mxu0 0.0
        %1086 = vmatpush1.msra.mxu0 %v1059
        %1087 = vmatprep.subr.mxu0 0.0
        %1088 = vmatpush1.msra.mxu0 %v1060
        %1089 = vmatprep.subr.mxu0 0.0
        %1090 = vmatpush1.msra.mxu0 %v1061
        %1091 = vmatprep.subr.mxu0 0.0
        %1092 = vmatpush1.msra.mxu0 %v1062
        %1093 = vmatprep.subr.mxu0 0.0
        %1094 = vmatpush1.msra.mxu0 %v1063
        %1095 = vmatprep.subr.mxu0 0.0
        %1096 = vmatpush1.msra.mxu0 %v1064
        %1097 = vmatprep.subr.mxu0 0.0
        %1098 = vmatpush1.msra.mxu0 0.0
        %1099 = vmatprep.subr.mxu0 0.0
        %1100 = vmatpush1.msra.mxu0 0.0
        %1101 = vmatprep.subr.mxu0 0.0
        %1102 = vmatpush1.msra.mxu0 0.0
        %1103 = vmatprep.subr.mxu0 0.0
        %1104 = vmatpush1.msra.mxu0 0.0
        %1105 = vmatprep.subr.mxu0 0.0
        %1106 = vmatpush1.msra.mxu0 0.0
        %1107 = vmatprep.subr.mxu0 0.0
        %1108 = vmatpush1.msra.mxu0 0.0
        %1109 = vmatprep.subr.mxu0 0.0
        %1110 = vmatpush1.msra.mxu0 0.0
        %1111 = vmatprep.subr.mxu0 0.0
        %1112 = vmatpush1.msra.mxu0 0.0
        %1113 = vmatprep.subr.mxu0 0.0
        %1114 = vmatpush1.msra.mxu0 0.0
        %1115 = vmatprep.subr.mxu0 0.0
        %1116 = vmatpush1.msra.mxu0 0.0
        %1117 = vmatprep.subr.mxu0 0.0
        %1118 = vmatpush1.msra.mxu0 0.0
        %1119 = vmatprep.subr.mxu0 0.0
        %1120 = vmatpush1.msra.mxu0 0.0
        %1121 = vmatprep.subr.mxu0 0.0
        %1122 = vmatpush1.msra.mxu0 0.0
        %1123 = vmatprep.subr.mxu0 0.0
        %1124 = vmatpush1.msra.mxu0 0.0
        %1125 = vmatprep.subr.mxu0 0.0
        %1126 = vmatpush1.msra.mxu0 0.0
        %1127 = vmatprep.subr.mxu0 0.0
        %1128 = vmatpush1.msra.mxu0 0.0
        %1129 = vmatprep.mubr.f32.mxu0 0.0
        %1130 = vmatmul.mubr.f32.gmra.mrb[0].mxu0 %v1029
        %v1131 = vpop.f32.mrb[0].mxu0
        %v1132 = vadd.f32 0.0, %v1131
        %v1133 = vpop.f32.mrb[0].mxu0
        %1134 = vmatprep.mubr.f32.mxu0 0.0
        %1135 = vmatmul.mubr.f32.gmra.mrb[0].mxu0 %v1030
        %v1136 = vpop.f32.mrb[0].mxu0
        %v1137 = vadd.f32 0.0, %v1136
        %v1138 = vpop.f32.mrb[0].mxu0
        %1139 = vdwg.mxu0
        %vm1143 = vcmask 1041408
        %v1144 = vrot.slane %v1028, 6
        %v1145 = vrot.slane %v1029, 6
        %v1146 = vsel %vm1143, %v1144, %v1145
        %v1147 = vrot.slane %v1030, 6
        %v1148 = vsel %vm1143, %v1145, %v1147
        %1151 = vmatprep.subr.mxu0 0.0
        %1152 = vmatpush1.msra.mxu0 %v1032
        %1153 = vmatprep.subr.mxu0 0.0
        %1154 = vmatpush1.msra.mxu0 %v1033
        %1155 = vmatprep.subr.mxu0 0.0
        %1156 = vmatpush1.msra.mxu0 %v1034
        %1157 = vmatprep.subr.mxu0 0.0
        %1158 = vmatpush1.msra.mxu0 %v1035
        %1159 = vmatprep.subr.mxu0 0.0
        %1160 = vmatpush1.msra.mxu0 %v1036
        %1161 = vmatprep.subr.mxu0 0.0
        %1162 = vmatpush1.msra.mxu0 %v1037
        %1163 = vmatprep.subr.mxu0 0.0
        %1164 = vmatpush1.msra.mxu0 %v1038
        %1165 = vmatprep.subr.mxu0 0.0
        %1166 = vmatpush1.msra.mxu0 %v1039
        %1167 = vmatprep.subr.mxu0 0.0
        %1168 = vmatpush1.msra.mxu0 %v1040
        %1169 = vmatprep.subr.mxu0 0.0
        %1170 = vmatpush1.msra.mxu0 %v1041
        %1171 = vmatprep.subr.mxu0 0.0
        %1172 = vmatpush1.msra.mxu0 %v1042
        %1173 = vmatprep.subr.mxu0 0.0
        %1174 = vmatpush1.msra.mxu0 %v1043
        %1175 = vmatprep.subr.mxu0 0.0
        %1176 = vmatpush1.msra.mxu0 %v1044
        %1177 = vmatprep.subr.mxu0 0.0
        %1178 = vmatpush1.msra.mxu0 %v1045
        %1179 = vmatprep.subr.mxu0 0.0
        %1180 = vmatpush1.msra.mxu0 %v1046
        %1181 = vmatprep.subr.mxu0 0.0
        %1182 = vmatpush1.msra.mxu0 %v1047
        %1183 = vmatprep.subr.mxu0 0.0
        %1184 = vmatpush1.msra.mxu0 0.0
        %1185 = vmatprep.subr.mxu0 0.0
        %1186 = vmatpush1.msra.mxu0 0.0
        %1187 = vmatprep.subr.mxu0 0.0
        %1188 = vmatpush1.msra.mxu0 0.0
        %1189 = vmatprep.subr.mxu0 0.0
        %1190 = vmatpush1.msra.mxu0 0.0
        %1191 = vmatprep.subr.mxu0 0.0
        %1192 = vmatpush1.msra.mxu0 0.0
        %1193 = vmatprep.subr.mxu0 0.0
        %1194 = vmatpush1.msra.mxu0 0.0
        %1195 = vmatprep.subr.mxu0 0.0
        %1196 = vmatpush1.msra.mxu0 0.0
        %1197 = vmatprep.subr.mxu0 0.0
        %1198 = vmatpush1.msra.mxu0 0.0
        %1199 = vmatprep.subr.mxu0 0.0
        %1200 = vmatpush1.msra.mxu0 0.0
        %1201 = vmatprep.subr.mxu0 0.0
        %1202 = vmatpush1.msra.mxu0 0.0
        %1203 = vmatprep.subr.mxu0 0.0
        %1204 = vmatpush1.msra.mxu0 0.0
        %1205 = vmatprep.subr.mxu0 0.0
        %1206 = vmatpush1.msra.mxu0 0.0
        %1207 = vmatprep.subr.mxu0 0.0
        %1208 = vmatpush1.msra.mxu0 0.0
        %1209 = vmatprep.subr.mxu0 0.0
        %1210 = vmatpush1.msra.mxu0 0.0
        %1211 = vmatprep.subr.mxu0 0.0
        %1212 = vmatpush1.msra.mxu0 0.0
        %1213 = vmatprep.subr.mxu0 0.0
        %1214 = vmatpush1.msra.mxu0 0.0
        %1215 = vmatprep.mubr.f32.mxu0 0.0
        %1216 = vmatmul.mubr.f32.gmra.mrb[0].mxu0 %v1146
        %v1217 = vpop.f32.mrb[0].mxu0
        %v1218 = vadd.f32 %v1132, %v1217
        %v1219 = vpop.f32.mrb[0].mxu0
        %1220 = vmatprep.mubr.f32.mxu0 0.0
        %1221 = vmatmul.mubr.f32.gmra.mrb[0].mxu0 %v1148
        %v1222 = vpop.f32.mrb[0].mxu0
        %v1223 = vadd.f32 %v1137, %v1222
        %v1224 = vpop.f32.mrb[0].mxu0
        %1225 = vdwg.mxu0
        %s1226 = scalar_lea.vmem [#allocation10], 256
        %v1227 = vld [vmem:[%s1226] sm:$0xff]
        %v1228 = vld [vmem:[%s1226 + $0x8] sm:$0xff]
        %v1229 = vld [vmem:[%s1226 + $0x10] sm:$0xff]
        %v1230 = vld [vmem:[%s1226 + $0x18] sm:$0xff]
        %v1231 = vld [vmem:[%s1226 + $0x20] sm:$0xff]
        %v1232 = vld [vmem:[%s1226 + $0x28] sm:$0xff]
        %v1233 = vld [vmem:[%s1226 + $0x30] sm:$0xff]
        %v1234 = vld [vmem:[%s1226 + $0x38] sm:$0xff]
        %v1235 = vld [vmem:[%s1226 + $0x40] sm:$0xff]
        %v1236 = vld [vmem:[%s1226 + $0x48] sm:$0xff]
        %v1237 = vld [vmem:[%s1226 + $0x50] sm:$0xff]
        %v1238 = vld [vmem:[%s1226 + $0x58] sm:$0xff]
        %v1239 = vld [vmem:[%s1226 + $0x60] sm:$0xff]
        %v1240 = vld [vmem:[%s1226 + $0x68] sm:$0xff]
        %v1241 = vld [vmem:[%s1226 + $0x70] sm:$0xff]
        %v1242 = vld [vmem:[%s1226 + $0x78] sm:$0xff]
        %vm1244 = vcmask 1045504
        %v1245 = vrot.slane %v1029, 2
        %v1246 = vrot.slane %v1030, 2
        %v1247 = vsel %vm1244, %v1245, %v1246
        %v1248 = vrot.slane %v1031, 2
        %v1249 = vsel %vm1244, %v1246, %v1248
        %1252 = vmatprep.subr.mxu0 0.0
        %1253 = vmatpush1.msra.mxu0 %v1227
        %1254 = vmatprep.subr.mxu0 0.0
        %1255 = vmatpush1.msra.mxu0 %v1228
        %1256 = vmatprep.subr.mxu0 0.0
        %1257 = vmatpush1.msra.mxu0 %v1229
        %1258 = vmatprep.subr.mxu0 0.0
        %1259 = vmatpush1.msra.mxu0 %v1230
        %1260 = vmatprep.subr.mxu0 0.0
        %1261 = vmatpush1.msra.mxu0 %v1231
        %1262 = vmatprep.subr.mxu0 0.0
        %1263 = vmatpush1.msra.mxu0 %v1232
        %1264 = vmatprep.subr.mxu0 0.0
        %1265 = vmatpush1.msra.mxu0 %v1233
        %1266 = vmatprep.subr.mxu0 0.0
        %1267 = vmatpush1.msra.mxu0 %v1234
        %1268 = vmatprep.subr.mxu0 0.0
        %1269 = vmatpush1.msra.mxu0 %v1235
        %1270 = vmatprep.subr.mxu0 0.0
        %1271 = vmatpush1.msra.mxu0 %v1236
        %1272 = vmatprep.subr.mxu0 0.0
        %1273 = vmatpush1.msra.mxu0 %v1237
        %1274 = vmatprep.subr.mxu0 0.0
        %1275 = vmatpush1.msra.mxu0 %v1238
        %1276 = vmatprep.subr.mxu0 0.0
        %1277 = vmatpush1.msra.mxu0 %v1239
        %1278 = vmatprep.subr.mxu0 0.0
        %1279 = vmatpush1.msra.mxu0 %v1240
        %1280 = vmatprep.subr.mxu0 0.0
        %1281 = vmatpush1.msra.mxu0 %v1241
        %1282 = vmatprep.subr.mxu0 0.0
        %1283 = vmatpush1.msra.mxu0 %v1242
        %1284 = vmatprep.subr.mxu0 0.0
        %1285 = vmatpush1.msra.mxu0 0.0
        %1286 = vmatprep.subr.mxu0 0.0
        %1287 = vmatpush1.msra.mxu0 0.0
        %1288 = vmatprep.subr.mxu0 0.0
        %1289 = vmatpush1.msra.mxu0 0.0
        %1290 = vmatprep.subr.mxu0 0.0
        %1291 = vmatpush1.msra.mxu0 0.0
        %1292 = vmatprep.subr.mxu0 0.0
        %1293 = vmatpush1.msra.mxu0 0.0
        %1294 = vmatprep.subr.mxu0 0.0
        %1295 = vmatpush1.msra.mxu0 0.0
        %1296 = vmatprep.subr.mxu0 0.0
        %1297 = vmatpush1.msra.mxu0 0.0
        %1298 = vmatprep.subr.mxu0 0.0
        %1299 = vmatpush1.msra.mxu0 0.0
        %1300 = vmatprep.subr.mxu0 0.0
        %1301 = vmatpush1.msra.mxu0 0.0
        %1302 = vmatprep.subr.mxu0 0.0
        %1303 = vmatpush1.msra.mxu0 0.0
        %1304 = vmatprep.subr.mxu0 0.0
        %1305 = vmatpush1.msra.mxu0 0.0
        %1306 = vmatprep.subr.mxu0 0.0
        %1307 = vmatpush1.msra.mxu0 0.0
        %1308 = vmatprep.subr.mxu0 0.0
        %1309 = vmatpush1.msra.mxu0 0.0
        %1310 = vmatprep.subr.mxu0 0.0
        %1311 = vmatpush1.msra.mxu0 0.0
        %1312 = vmatprep.subr.mxu0 0.0
        %1313 = vmatpush1.msra.mxu0 0.0
        %1314 = vmatprep.subr.mxu0 0.0
        %1315 = vmatpush1.msra.mxu0 0.0
        %1316 = vmatprep.mubr.f32.mxu0 0.0
        %1317 = vmatmul.mubr.f32.gmra.mrb[0].mxu0 %v1247
        %v1318 = vpop.f32.mrb[0].mxu0
        %v1319 = vadd.f32 0.0, %v1318
        %v1320 = vpop.f32.mrb[0].mxu0
        %1321 = vmatprep.mubr.f32.mxu0 0.0
        %1322 = vmatmul.mubr.f32.gmra.mrb[0].mxu0 %v1249
        %v1323 = vpop.f32.mrb[0].mxu0
        %v1324 = vadd.f32 0.0, %v1323
        %v1325 = vpop.f32.mrb[0].mxu0
        %1326 = vdwg.mxu0
        %v1327 = vadd.f32 %v1218, %v1319
        %v1328 = vadd.f32 %v1223, %v1324
        %v1329 = vld [vmem:[%s10] sm:$0x1]
        %v1331 = vlaneseq
        %v1332 = vshrl.u32 %v1331, 7
        %v1333 = vsub.s32 0, %v1332
        %v1334 = vrot.slane %v1329, %v1333
        %v1336 = vadd.f32 %v1327, %v1334
        %v1337 = vadd.f32 %v1328, %v1334
        %v1338 = vld [vmem:[%s11] sm:$0x1]
        %v1339 = vld [vmem:[%s12] sm:$0x1]
        %1340 = vadd.xlane.f32.xlu0 %v1336
        %v1341 = vpop.xlane.xlu0 %1340
        %1342 = vadd.xlane.f32.xlu0 %v1337
        %v1343 = vpop.xlane.xlu0 %1342
        %v1344 = vmul.f32 %v1336, %v1336
        %v1345 = vmul.f32 %v1337, %v1337
        %1346 = vadd.xlane.f32.xlu0 %v1344
        %v1347 = vpop.xlane.xlu0 %1346
        %1348 = vadd.xlane.f32.xlu0 %v1345
        %v1349 = vpop.xlane.xlu0 %1348
        %v1350 = vmul.f32 %v1341, 0.015625
        %v1351 = vmul.f32 %v1343, 0.015625
        %v1352 = vmul.f32 %v1347, 0.015625
        %v1353 = vmul.f32 %v1349, 0.015625
        %v1354 = vmul.f32 %v1350, %v1350
        %v1355 = vmul.f32 %v1351, %v1351
        %v1356 = vsub.f32 %v1352, %v1354
        %v1357 = vsub.f32 %v1353, %v1355
        %v1358 = vmax.f32 %v1356, 0.0
        %v1359 = vmax.f32 %v1357, 0.0
        %v1360 = vsub.f32 %v1336, %v1350
        %v1361 = vsub.f32 %v1337, %v1351
        %v1362 = vadd.f32 %v1358, 1e-05
        %v1363 = vadd.f32 %v1359, 1e-05
        %v1364 = vrsqrt.pop %v1362
        %v1365 = vrsqrt.pop %v1363
        %v1366 = vmul.f32 %v1360, %v1364
        %v1367 = vmul.f32 %v1361, %v1365
        %v1369 = vlaneseq
        %v1370 = vshrl.u32 %v1369, 7
        %v1371 = vsub.s32 0, %v1370
        %v1372 = vrot.slane %v1338, %v1371
        %v1374 = vmul.f32 %v1366, %v1372
        %v1375 = vmul.f32 %v1367, %v1372
        %v1377 = vlaneseq
        %v1378 = vshrl.u32 %v1377, 7
        %v1379 = vsub.s32 0, %v1378
        %v1380 = vrot.slane %v1339, %v1379
        %v1382 = vadd.f32 %v1374, %v1380
        %v1383 = vadd.f32 %v1375, %v1380
        %v1384 = vmul.f32 %v1382, 0.5
        %v1385 = vmul.f32 %v1383, 0.5
        %v1386 = vmul.f32 %v1382, 0.70710677
        %v1387 = vmul.f32 %v1383, 0.70710677
        %v1388 = verf.f32.pop %v1386
        %v1389 = verf.f32.pop %v1387
        %v1390 = vadd.f32 %v1388, 1.0
        %v1391 = vadd.f32 %v1389, 1.0
        %v1392 = vmul.f32 %v1384, %v1390
        %v1393 = vmul.f32 %v1385, %v1391
        %v1394 = vld [vmem:[#allocation11] sm:$0xff]
        %v1395 = vld [vmem:[#allocation11 + $0x8] sm:$0xff]
        %v1396 = vld [vmem:[#allocation11 + $0x10] sm:$0xff]
        %v1397 = vld [vmem:[#allocation11 + $0x18] sm:$0xff]
        %v1398 = vld [vmem:[#allocation11 + $0x20] sm:$0xff]
        %v1399 = vld [vmem:[#allocation11 + $0x28] sm:$0xff]
        %v1400 = vld [vmem:[#allocation11 + $0x30] sm:$0xff]
        %v1401 = vld [vmem:[#allocation11 + $0x38] sm:$0xff]
        %v1402 = vld [vmem:[#allocation11 + $0x40] sm:$0xff]
        %v1403 = vld [vmem:[#allocation11 + $0x48] sm:$0xff]
        %v1404 = vld [vmem:[#allocation11 + $0x50] sm:$0xff]
        %v1405 = vld [vmem:[#allocation11 + $0x58] sm:$0xff]
        %v1406 = vld [vmem:[#allocation11 + $0x60] sm:$0xff]
        %v1407 = vld [vmem:[#allocation11 + $0x68] sm:$0xff]
        %v1408 = vld [vmem:[#allocation11 + $0x70] sm:$0xff]
        %v1409 = vld [vmem:[#allocation11 + $0x78] sm:$0xff]
        %v1410 = vld [vmem:[%s14] sm:$0x1]
        %v1412 = vlaneseq
        %v1413 = vshrl.u32 %v1412, 7
        %v1414 = vsub.s32 0, %v1413
        %v1415 = vrot.slane %v1410, %v1414
        %1417 = vmatprep.subr.mxu0 0.0
        %1418 = vmatpush1.msra.mxu0 %v1394
        %1419 = vmatprep.subr.mxu0 0.0
        %1420 = vmatpush1.msra.mxu0 %v1395
        %1421 = vmatprep.subr.mxu0 0.0
        %1422 = vmatpush1.msra.mxu0 %v1396
        %1423 = vmatprep.subr.mxu0 0.0
        %1424 = vmatpush1.msra.mxu0 %v1397
        %1425 = vmatprep.subr.mxu0 0.0
        %1426 = vmatpush1.msra.mxu0 %v1398
        %1427 = vmatprep.subr.mxu0 0.0
        %1428 = vmatpush1.msra.mxu0 %v1399
        %1429 = vmatprep.subr.mxu0 0.0
        %1430 = vmatpush1.msra.mxu0 %v1400
        %1431 = vmatprep.subr.mxu0 0.0
        %1432 = vmatpush1.msra.mxu0 %v1401
        %1433 = vmatprep.subr.mxu0 0.0
        %1434 = vmatpush1.msra.mxu0 %v1402
        %1435 = vmatprep.subr.mxu0 0.0
        %1436 = vmatpush1.msra.mxu0 %v1403
        %1437 = vmatprep.subr.mxu0 0.0
        %1438 = vmatpush1.msra.mxu0 %v1404
        %1439 = vmatprep.subr.mxu0 0.0
        %1440 = vmatpush1.msra.mxu0 %v1405
        %1441 = vmatprep.subr.mxu0 0.0
        %1442 = vmatpush1.msra.mxu0 %v1406
        %1443 = vmatprep.subr.mxu0 0.0
        %1444 = vmatpush1.msra.mxu0 %v1407
        %1445 = vmatprep.subr.mxu0 0.0
        %1446 = vmatpush1.msra.mxu0 %v1408
        %1447 = vmatprep.subr.mxu0 0.0
        %1448 = vmatpush1.msra.mxu0 %v1409
        %1449 = vmatprep.subr.mxu0 0.0
        %1450 = vmatpush1.msra.mxu0 0.0
        %1451 = vmatprep.subr.mxu0 0.0
        %1452 = vmatpush1.msra.mxu0 0.0
        %1453 = vmatprep.subr.mxu0 0.0
        %1454 = vmatpush1.msra.mxu0 0.0
        %1455 = vmatprep.subr.mxu0 0.0
        %1456 = vmatpush1.msra.mxu0 0.0
        %1457 = vmatprep.subr.mxu0 0.0
        %1458 = vmatpush1.msra.mxu0 0.0
        %1459 = vmatprep.subr.mxu0 0.0
        %1460 = vmatpush1.msra.mxu0 0.0
        %1461 = vmatprep.subr.mxu0 0.0
        %1462 = vmatpush1.msra.mxu0 0.0
        %1463 = vmatprep.subr.mxu0 0.0
        %1464 = vmatpush1.msra.mxu0 0.0
        %1465 = vmatprep.subr.mxu0 0.0
        %1466 = vmatpush1.msra.mxu0 0.0
        %1467 = vmatprep.subr.mxu0 0.0
        %1468 = vmatpush1.msra.mxu0 0.0
        %1469 = vmatprep.subr.mxu0 0.0
        %1470 = vmatpush1.msra.mxu0 0.0
        %1471 = vmatprep.subr.mxu0 0.0
        %1472 = vmatpush1.msra.mxu0 0.0
        %1473 = vmatprep.subr.mxu0 0.0
        %1474 = vmatpush1.msra.mxu0 0.0
        %1475 = vmatprep.subr.mxu0 0.0
        %1476 = vmatpush1.msra.mxu0 0.0
        %1477 = vmatprep.subr.mxu0 0.0
        %1478 = vmatpush1.msra.mxu0 0.0
        %1479 = vmatprep.subr.mxu0 0.0
        %1480 = vmatpush1.msra.mxu0 0.0
        %1481 = vmatprep.mubr.f32.mxu0 0.0
        %1482 = vmatmul.mubr.f32.gmra.mrb[0].mxu0 %v1392
        %v1483 = vpop.f32.mrb[0].mxu0
        %v1484 = vadd.f32 %v1415, %v1483
        %v1485 = vpop.f32.mrb[0].mxu0
        %1486 = vmatprep.mubr.f32.mxu0 0.0
        %1487 = vmatmul.mubr.f32.gmra.mrb[0].mxu0 %v1393
        %v1488 = vpop.f32.mrb[0].mxu0
        %v1489 = vadd.f32 %v1415, %v1488
        %v1490 = vpop.f32.mrb[0].mxu0
        %1491 = vdwg.mxu0
        %v1492 = vadd.f32 %v688, %v1484
        %v1493 = vadd.f32 %v689, %v1489
        %1494 = vst [vmem:[%s677] sm:$0xff] %v1492
        %1495 = vst [vmem:[%s677 + $0x8] sm:$0xff] %v1493
        %s1496 = sand.u32 %s411, 1
        %s1497 = scalar_lea.sflag [#allocation4], %s1496
        %s1498 = sand.u32 %s411, 1
        %s1499 = smul.addr %s1498, 16
        %s1500 = scalar_lea.vmem [#allocation13], %s1499
        // Predicated region
        $region105: #{tpu_custom_call.1} parent=79 // pred_check
          %p1501 = pneg %p421
        $region106: #{tpu_custom_call.1} parent=79 // pred_check_branch
          %1503 = sbr.rel (%p1501) target = $region108
        $region107: #{tpu_custom_call.1} parent=79 // pred_region
          %s1504 = smul.u32 2, %s42
          %s1506 = ssub.s32 256, 256
          %1507 = vsyncadd %s1497, %s1506
          %s1508 = smul.addr %s41, 2
          %s1509 = sadd.s32 %s1504, %s1508
          %s1510 = smul.addr %s1509, 128
          %s1511 = scalar_lea.hbm %s15, %s1510
          %s1512 = sshll.u32 %s1500, 4
          %s1513 = int_to_ptr.vmem [resolvable:$true] %s1512
          %1518 = dma.vmem_to_hbm [thread:$0]  %s1513, 256, %s1511, %s1497, 128, 128, 8
        $region108: #{tpu_custom_call.1} parent=79 // pred_fallthru
          _
      $region80: #{tpu_custom_call.1} parent=5 // pred_fallthru
        _
      %p1519 = scmp.le.s32.totalorder 2, %s32
      // Predicated region
      $region109: #{tpu_custom_call.1} parent=5 // pred_check
        %p1520 = pneg %p1519
      $region110: #{tpu_custom_call.1} parent=5 // pred_check_branch
        %1522 = sbr.rel (%p1520) target = $region112
      $region111: #{tpu_custom_call.1} parent=5 // pred_region
        %s1523 = ssub.s32 %s32, 2
        // Predicated region
        $region113: #{tpu_custom_call.1} parent=111 // pred_check
          %p1524 = pneg %p427
        $region114: #{tpu_custom_call.1} parent=111 // pred_check_branch
          %1526 = sbr.rel (%p1524) target = $region116
        $region115: #{tpu_custom_call.1} parent=111 // pred_region
          %s1527 = sand.u32 %s412, 1
          %s1528 = scalar_lea.sflag [#allocation4], %s1527
          %s1529 = sand.u32 %s412, 1
          %s1530 = smul.addr %s1529, 16
          %s1531 = scalar_lea.vmem [#allocation13], %s1530
          %1532 = dma.done %s1528, 256
        $region116: #{tpu_custom_call.1} parent=111 // pred_fallthru
          _
      $region112: #{tpu_custom_call.1} parent=5 // pred_fallthru
        _
    $region6: #{tpu_custom_call.1} parent=1 // loop_footer
      %s36 = sadd.s32 1, %s32
    $region7: #{tpu_custom_call.1} parent=1 // loop_footer_branch
      %31 = sbr.rel target = $region3
    $region8: #{tpu_custom_call.1} parent=1 // loop_exit
      _
    %1533 = vsyncpa [#allocation3], 1
    %s1534 = scalar_lea.sflag [#allocation3], 1
    %1535 = vsyncpa %s1534, 1
    %1536 = vsyncpa [#allocation6], 1
    %s1537 = scalar_lea.sflag [#allocation6], 1
    %1538 = vsyncpa %s1537, 1
    %1539 = vsyncpa [#allocation9], 1
    %1540 = vsyncpa [#allocation12], 1
    %1541 = vsyncpa [#allocation4], 1
    %s1542 = scalar_lea.sflag [#allocation4], 1
    %1543 = vsyncpa %s1542, 1

// kernel: tpu_custom_call.1
$region0: #{tpu_custom_call.1}
  #allocation0 [shape = 'u32[]', space=smem, size = 0x4, offset = 0x4, fixed_abs, tag = 'smem constant byte address 0x4 - core index']
  #allocation1 [shape = 'u32[144,128]{1,0:T(1,128)}', space=vmem, size = 0x12000, scoped, tag = 'internal scratch']
  %s0 = inlined_call_operand.hbm [shape: f32[2,16,128], index: 0, kind: input, shape index: {}]
  %s1 = inlined_call_operand.hbm [shape: f32[2,16,128], index: 1, kind: input, shape index: {}]
  %s2 = inlined_call_operand.hbm [shape: f32[2,16,128], index: 2, kind: input, shape index: {}]
  %s3 = inlined_call_operand.vmem [shape: f32[1,128], index: 3, kind: input, shape index: {}]
  %s4 = inlined_call_operand.vmem [shape: f32[1,128], index: 4, kind: input, shape index: {}]
  %s5 = inlined_call_operand.hbm [shape: f32[128,128], index: 5, kind: input, shape index: {}]
  %s6 = inlined_call_operand.vmem [shape: f32[1,128], index: 6, kind: input, shape index: {}]
  %s7 = inlined_call_operand.vmem [shape: f32[1,128], index: 7, kind: input, shape index: {}]
  %s8 = inlined_call_operand.vmem [shape: f32[1,128], index: 8, kind: input, shape index: {}]
  %s9 = inlined_call_operand.hbm [shape: f32[3,128,128], index: 9, kind: input, shape index: {}]
  %s10 = inlined_call_operand.vmem [shape: f32[1,128], index: 10, kind: input, shape index: {}]
  %s11 = inlined_call_operand.vmem [shape: f32[1,128], index: 11, kind: input, shape index: {}]
  %s12 = inlined_call_operand.vmem [shape: f32[1,128], index: 12, kind: input, shape index: {}]
  %s13 = inlined_call_operand.hbm [shape: f32[128,128], index: 13, kind: input, shape index: {}]
  %s14 = inlined_call_operand.vmem [shape: f32[1,128], index: 14, kind: input, shape index: {}]
  %s15 = inlined_call_operand.hbm [shape: f32[2,16,128], index: 15, kind: output, shape index: {}]
  %s16 = sld [smem:[#allocation0]]
  $region117: #{tpu_custom_call.1} parent=0
    _
  %s18 = ssub.s32 1, %s16
  %s19 = scalar_select 0, %s18, %s16
  $region1: #{tpu_custom_call.1} parent=0
    #allocation2 [shape = 'u8[8192]{0}', space=vmem, size = 0x2000, scoped, tag = 'input window, operand 0']
    #allocation3 [shape = 's32[2]{0}', space=sflag, size = 0x8, scoped, tag = 'scoped memory for tpu_custom_call.1']
    #allocation4 [shape = 's32[2]{0}', space=sflag, size = 0x8, scoped, tag = 'scoped memory for tpu_custom_call.1']
    #allocation5 [shape = 'u8[16384]{0}', space=vmem, size = 0x4000, scoped, tag = 'input window, operand 1']
    #allocation6 [shape = 's32[2]{0}', space=sflag, size = 0x8, scoped, tag = 'scoped memory for tpu_custom_call.1']
    #allocation7 [shape = 'u8[8192]{0}', space=vmem, size = 0x2000, scoped, tag = 'input window, operand 2']
    #allocation8 [shape = 'u8[65536]{0}', space=vmem, size = 0x10000, scoped, tag = 'input window, operand 5, single buffered']
    #allocation9 [shape = 's32[1]{0}', space=sflag, size = 0x4, scoped, tag = 'scoped memory for tpu_custom_call.1']
    #allocation10 [shape = 'u8[196608]{0}', space=vmem, size = 0x30000, scoped, tag = 'input window, operand 9, single buffered']
    #allocation11 [shape = 'u8[65536]{0}', space=vmem, size = 0x10000, scoped, tag = 'input window, operand 13, single buffered']
    #allocation12 [shape = 's32[1]{0}', space=sflag, size = 0x4, scoped, tag = 'scoped memory for tpu_custom_call.1']
    #allocation13 [shape = 'u8[16384]{0}', space=vmem, size = 0x4000, scoped, tag = 'output window, operand 0']
    %20 = vsyncpa [#allocation3], 0
    %s21 = scalar_lea.sflag [#allocation3], 1
    %22 = vsyncpa %s21, 0
    %23 = vsyncpa [#allocation6], 0
    %s24 = scalar_lea.sflag [#allocation6], 1
    %25 = vsyncpa %s24, 0
    %26 = vsyncpa [#allocation9], 0
    %27 = vsyncpa [#allocation12], 0
    %28 = vsyncpa [#allocation4], 0
    %s29 = scalar_lea.sflag [#allocation4], 1
    %30 = vsyncpa %s29, 0
    loop: start=0, step=1, limit=4
    $region2: #{tpu_custom_call.1} parent=1 // loop_pre_header
      _
    $region3: #{tpu_custom_call.1} parent=1 // loop_header
      %s32 = sphi 0, %s36
      %p33 = scmp.ge.s32.totalorder %s32, 4
      %s39 = sphi 0, %s51
      %s40 = sphi 0, %s47
      %s41 = sphi 0, %s39
      %s42 = sphi 0, %s40
      %s43 = sphi 0, %s41
      %s44 = sphi 0, %s42
      %s64 = sphi 0, %s66
      %s67 = sphi 0, %s64
      %s68 = sphi 0, %s67
      %s84 = sphi 0, %s68
      %s92 = sphi 0, %s94
      %s95 = sphi 0, %s92
      %s96 = sphi 0, %s95
      %s112 = sphi 0, %s96
      %s128 = sphi 0, %s130
      %s131 = sphi 0, %s128
      %s132 = sphi 0, %s131
      %s148 = sphi 0, %s132
      %s152 = sphi 0, %s152
      %s154 = sphi 0, %s152
      %s155 = sphi 0, %s154
      %s169 = sphi 0, %s155
      %s173 = sphi 0, %s173
      %s175 = sphi 0, %s173
      %s176 = sphi 0, %s175
      %s190 = sphi 0, %s176
      %s194 = sphi 0, %s194
      %s196 = sphi 0, %s194
      %s197 = sphi 0, %s196
      %s211 = sphi 0, %s197
      %s215 = sphi 0, %s215
      %s217 = sphi 0, %s215
      %s218 = sphi 0, %s217
      %s232 = sphi 0, %s218
      %s236 = sphi 0, %s236
      %s238 = sphi 0, %s236
      %s239 = sphi 0, %s238
      %s253 = sphi 0, %s239
      %s257 = sphi 0, %s257
      %s259 = sphi 0, %s257
      %s260 = sphi 0, %s259
      %s274 = sphi 0, %s260
      %s278 = sphi 0, %s278
      %s280 = sphi 0, %s278
      %s281 = sphi 0, %s280
      %s295 = sphi 0, %s281
      %s299 = sphi 0, %s299
      %s301 = sphi 0, %s299
      %s302 = sphi 0, %s301
      %s316 = sphi 0, %s302
      %s320 = sphi 0, %s320
      %s322 = sphi 0, %s320
      %s323 = sphi 0, %s322
      %s337 = sphi 0, %s323
      %s341 = sphi 0, %s341
      %s343 = sphi 0, %s341
      %s344 = sphi 0, %s343
      %s358 = sphi 0, %s344
      %s362 = sphi 0, %s362
      %s364 = sphi 0, %s362
      %s365 = sphi 0, %s364
      %s379 = sphi 0, %s365
      %s383 = sphi 0, %s383
      %s385 = sphi 0, %s383
      %s386 = sphi 0, %s385
      %s400 = sphi 0, %s386
      %s408 = sphi 0, %s410
      %s411 = sphi 0, %s408
      %s412 = sphi 0, %s411
      %s428 = sphi 0, %s412
    $region4: #{tpu_custom_call.1} parent=1 // loop_header_branch
      %35 = sbr.rel (%p33) target = $region8
    $region5: #{tpu_custom_call.1} parent=1 // loop_body
      %s37 = ssub.s32 %s32, 1
      %s38 = ssub.s32 %s32, 2
      %s45 = sadd.s32 1, %s40
      %p46 = scmp.ge.s32.totalorder %s45, 1
      %s47 = scalar_select %p46, 0, %s45
      %s48 = sadd.s32 1, %s39
      %s49 = scalar_select %p46, %s48, %s39
      %p50 = scmp.ge.s32.totalorder %s49, 2
      %s51 = scalar_select %p50, 0, %s49
      %s52 = smul.u32 %s40, 2
      %s53 = ssub.s32 %s52, 1
      %p54 = scmp.gt.s32.totalorder %s53, 0
      %s55 = scalar_select %p54, %s53, 0
      %s56 = smul.u32 %s47, 2
      %s57 = ssub.s32 %s56, 1
      %p58 = scmp.gt.s32.totalorder %s57, 0
      %s59 = scalar_select %p58, %s57, 0
      %s60 = ssub.s32 %s39, %s51
      %s61 = ssub.s32 %s55, %s59
      %s62 = sor.u32 %s60, %s61
      %p63 = scmp.eq.s32.totalorder %s62, 0
      %s65 = sadd.s32 %s64, 1
      %s66 = scalar_select %p63, %s64, %s65
      %p69 = pneg %p63
      %p70 = scmp.eq.s32.totalorder %s32, 1
      %p71 = por %p69, %p70
      %p72 = scmp.ne.s32.totalorder %s64, %s67
      %p73 = scmp.eq.s32.totalorder %s32, 0
      %p74 = por %p72, %p73
      %p75 = scmp.ne.s32.totalorder %s64, %s67
      %p76 = scmp.eq.s32.totalorder %s37, 1
      %p77 = por %p75, %p76
      %p78 = scmp.ne.s32.totalorder %s67, %s68
      %p79 = scmp.eq.s32.totalorder %s37, 0
      %p80 = por %p78, %p79
      %p81 = scmp.ne.s32.totalorder %s67, %s68
      %p82 = scmp.eq.s32.totalorder %s38, 1
      %p83 = por %p81, %p82
      %p85 = scmp.ne.s32.totalorder %s68, %s84
      %p86 = scmp.eq.s32.totalorder %s38, 0
      %p87 = por %p85, %p86
      %s88 = ssub.s32 %s39, %s51
      %s89 = ssub.s32 %s40, %s47
      %s90 = sor.u32 %s88, %s89
      %p91 = scmp.eq.s32.totalorder %s90, 0
      %s93 = sadd.s32 %s92, 1
      %s94 = scalar_select %p91, %s92, %s93
      %p97 = pneg %p91
      %p98 = scmp.eq.s32.totalorder %s32, 1
      %p99 = por %p97, %p98
      %p100 = scmp.ne.s32.totalorder %s92, %s95
      %p101 = scmp.eq.s32.totalorder %s32, 0
      %p102 = por %p100, %p101
      %p103 = scmp.ne.s32.totalorder %s92, %s95
      %p104 = scmp.eq.s32.totalorder %s37, 1
      %p105 = por %p103, %p104
      %p106 = scmp.ne.s32.totalorder %s95, %s96
      %p107 = scmp.eq.s32.totalorder %s37, 0
      %p108 = por %p106, %p107
      %p109 = scmp.ne.s32.totalorder %s95, %s96
      %p110 = scmp.eq.s32.totalorder %s38, 1
      %p111 = por %p109, %p110
      %p113 = scmp.ne.s32.totalorder %s96, %s112
      %p114 = scmp.eq.s32.totalorder %s38, 0
      %p115 = por %p113, %p114
      %s116 = sadd.s32 %s40, 1
      %s117 = smul.u32 %s116, 2
      %p118 = scmp.lt.s32.totalorder %s117, 1
      %s119 = scalar_select %p118, %s117, 1
      %s120 = sadd.s32 %s47, 1
      %s121 = smul.u32 %s120, 2
      %p122 = scmp.lt.s32.totalorder %s121, 1
      %s123 = scalar_select %p122, %s121, 1
      %s124 = ssub.s32 %s39, %s51
      %s125 = ssub.s32 %s119, %s123
      %s126 = sor.u32 %s124, %s125
      %p127 = scmp.eq.s32.totalorder %s126, 0
      %s129 = sadd.s32 %s128, 1
      %s130 = scalar_select %p127, %s128, %s129
      %p133 = pneg %p127
      %p134 = scmp.eq.s32.totalorder %s32, 1
      %p135 = por %p133, %p134
      %p136 = scmp.ne.s32.totalorder %s128, %s131
      %p137 = scmp.eq.s32.totalorder %s32, 0
      %p138 = por %p136, %p137
      %p139 = scmp.ne.s32.totalorder %s128, %s131
      %p140 = scmp.eq.s32.totalorder %s37, 1
      %p141 = por %p139, %p140
      %p142 = scmp.ne.s32.totalorder %s131, %s132
      %p143 = scmp.eq.s32.totalorder %s37, 0
      %p144 = por %p142, %p143
      %p145 = scmp.ne.s32.totalorder %s131, %s132
      %p146 = scmp.eq.s32.totalorder %s38, 1
      %p147 = por %p145, %p146
      %p149 = scmp.ne.s32.totalorder %s132, %s148
      %p150 = scmp.eq.s32.totalorder %s38, 0
      %p151 = por %p149, %p150
      %s153 = sadd.s32 %s152, 1
      %p156 = scmp.eq.s32.totalorder %s32, 1
      %p157 = scmp.ne.s32.totalorder %s152, %s154
      %p158 = scmp.eq.s32.totalorder %s32, 0
      %p159 = por %p157, %p158
      %p160 = scmp.ne.s32.totalorder %s152, %s154
      %p161 = scmp.eq.s32.totalorder %s37, 1
      %p162 = por %p160, %p161
      %p163 = scmp.ne.s32.totalorder %s154, %s155
      %p164 = scmp.eq.s32.totalorder %s37, 0
      %p165 = por %p163, %p164
      %p166 = scmp.ne.s32.totalorder %s154, %s155
      %p167 = scmp.eq.s32.totalorder %s38, 1
      %p168 = por %p166, %p167
      %p170 = scmp.ne.s32.totalorder %s155, %s169
      %p171 = scmp.eq.s32.totalorder %s38, 0
      %p172 = por %p170, %p171
      %s174 = sadd.s32 %s173, 1
      %p177 = scmp.eq.s32.totalorder %s32, 1
      %p178 = scmp.ne.s32.totalorder %s173, %s175
      %p179 = scmp.eq.s32.totalorder %s32, 0
      %p180 = por %p178, %p179
      %p181 = scmp.ne.s32.totalorder %s173, %s175
      %p182 = scmp.eq.s32.totalorder %s37, 1
      %p183 = por %p181, %p182
      %p184 = scmp.ne.s32.totalorder %s175, %s176
      %p185 = scmp.eq.s32.totalorder %s37, 0
      %p186 = por %p184, %p185
      %p187 = scmp.ne.s32.totalorder %s175, %s176
      %p188 = scmp.eq.s32.totalorder %s38, 1
      %p189 = por %p187, %p188
      %p191 = scmp.ne.s32.totalorder %s176, %s190
      %p192 = scmp.eq.s32.totalorder %s38, 0
      %p193 = por %p191, %p192
      %s195 = sadd.s32 %s194, 1
      %p198 = scmp.eq.s32.totalorder %s32, 1
      %p199 = scmp.ne.s32.totalorder %s194, %s196
      %p200 = scmp.eq.s32.totalorder %s32, 0
      %p201 = por %p199, %p200
      %p202 = scmp.ne.s32.totalorder %s194, %s196
      %p203 = scmp.eq.s32.totalorder %s37, 1
      %p204 = por %p202, %p203
      %p205 = scmp.ne.s32.totalorder %s196, %s197
      %p206 = scmp.eq.s32.totalorder %s37, 0
      %p207 = por %p205, %p206
      %p208 = scmp.ne.s32.totalorder %s196, %s197
      %p209 = scmp.eq.s32.totalorder %s38, 1
      %p210 = por %p208, %p209
      %p212 = scmp.ne.s32.totalorder %s197, %s211
      %p213 = scmp.eq.s32.totalorder %s38, 0
      %p214 = por %p212, %p213
      %s216 = sadd.s32 %s215, 1
      %p219 = scmp.eq.s32.totalorder %s32, 1
      %p220 = scmp.ne.s32.totalorder %s215, %s217
      %p221 = scmp.eq.s32.totalorder %s32, 0
      %p222 = por %p220, %p221
      %p223 = scmp.ne.s32.totalorder %s215, %s217
      %p224 = scmp.eq.s32.totalorder %s37, 1
      %p225 = por %p223, %p224
      %p226 = scmp.ne.s32.totalorder %s217, %s218
      %p227 = scmp.eq.s32.totalorder %s37, 0
      %p228 = por %p226, %p227
      %p229 = scmp.ne.s32.totalorder %s217, %s218
      %p230 = scmp.eq.s32.totalorder %s38, 1
      %p231 = por %p229, %p230
      %p233 = scmp.ne.s32.totalorder %s218, %s232
      %p234 = scmp.eq.s32.totalorder %s38, 0
      %p235 = por %p233, %p234
      %s237 = sadd.s32 %s236, 1
      %p240 = scmp.eq.s32.totalorder %s32, 1
      %p241 = scmp.ne.s32.totalorder %s236, %s238
      %p242 = scmp.eq.s32.totalorder %s32, 0
      %p243 = por %p241, %p242
      %p244 = scmp.ne.s32.totalorder %s236, %s238
      %p245 = scmp.eq.s32.totalorder %s37, 1
      %p246 = por %p244, %p245
      %p247 = scmp.ne.s32.totalorder %s238, %s239
      %p248 = scmp.eq.s32.totalorder %s37, 0
      %p249 = por %p247, %p248
      %p250 = scmp.ne.s32.totalorder %s238, %s239
      %p251 = scmp.eq.s32.totalorder %s38, 1
      %p252 = por %p250, %p251
      %p254 = scmp.ne.s32.totalorder %s239, %s253
      %p255 = scmp.eq.s32.totalorder %s38, 0
      %p256 = por %p254, %p255
      %s258 = sadd.s32 %s257, 1
      %p261 = scmp.eq.s32.totalorder %s32, 1
      %p262 = scmp.ne.s32.totalorder %s257, %s259
      %p263 = scmp.eq.s32.totalorder %s32, 0
      %p264 = por %p262, %p263
      %p265 = scmp.ne.s32.totalorder %s257, %s259
      %p266 = scmp.eq.s32.totalorder %s37, 1
      %p267 = por %p265, %p266
      %p268 = scmp.ne.s32.totalorder %s259, %s260
      %p269 = scmp.eq.s32.totalorder %s37, 0
      %p270 = por %p268, %p269
      %p271 = scmp.ne.s32.totalorder %s259, %s260
      %p272 = scmp.eq.s32.totalorder %s38, 1
      %p273 = por %p271, %p272
      %p275 = scmp.ne.s32.totalorder %s260, %s274
      %p276 = scmp.eq.s32.totalorder %s38, 0
      %p277 = por %p275, %p276
      %s279 = sadd.s32 %s278, 1
      %p282 = scmp.eq.s32.totalorder %s32, 1
      %p283 = scmp.ne.s32.totalorder %s278, %s280
      %p284 = scmp.eq.s32.totalorder %s32, 0
      %p285 = por %p283, %p284
      %p286 = scmp.ne.s32.totalorder %s278, %s280
      %p287 = scmp.eq.s32.totalorder %s37, 1
      %p288 = por %p286, %p287
      %p289 = scmp.ne.s32.totalorder %s280, %s281
      %p290 = scmp.eq.s32.totalorder %s37, 0
      %p291 = por %p289, %p290
      %p292 = scmp.ne.s32.totalorder %s280, %s281
      %p293 = scmp.eq.s32.totalorder %s38, 1
      %p294 = por %p292, %p293
      %p296 = scmp.ne.s32.totalorder %s281, %s295
      %p297 = scmp.eq.s32.totalorder %s38, 0
      %p298 = por %p296, %p297
      %s300 = sadd.s32 %s299, 1
      %p303 = scmp.eq.s32.totalorder %s32, 1
      %p304 = scmp.ne.s32.totalorder %s299, %s301
      %p305 = scmp.eq.s32.totalorder %s32, 0
      %p306 = por %p304, %p305
      %p307 = scmp.ne.s32.totalorder %s299, %s301
      %p308 = scmp.eq.s32.totalorder %s37, 1
      %p309 = por %p307, %p308
      %p310 = scmp.ne.s32.totalorder %s301, %s302
      %p311 = scmp.eq.s32.totalorder %s37, 0
      %p312 = por %p310, %p311
      %p313 = scmp.ne.s32.totalorder %s301, %s302
      %p314 = scmp.eq.s32.totalorder %s38, 1
      %p315 = por %p313, %p314
      %p317 = scmp.ne.s32.totalorder %s302, %s316
      %p318 = scmp.eq.s32.totalorder %s38, 0
      %p319 = por %p317, %p318
      %s321 = sadd.s32 %s320, 1
      %p324 = scmp.eq.s32.totalorder %s32, 1
      %p325 = scmp.ne.s32.totalorder %s320, %s322
      %p326 = scmp.eq.s32.totalorder %s32, 0
      %p327 = por %p325, %p326
      %p328 = scmp.ne.s32.totalorder %s320, %s322
      %p329 = scmp.eq.s32.totalorder %s37, 1
      %p330 = por %p328, %p329
      %p331 = scmp.ne.s32.totalorder %s322, %s323
      %p332 = scmp.eq.s32.totalorder %s37, 0
      %p333 = por %p331, %p332
      %p334 = scmp.ne.s32.totalorder %s322, %s323
      %p335 = scmp.eq.s32.totalorder %s38, 1
      %p336 = por %p334, %p335
      %p338 = scmp.ne.s32.totalorder %s323, %s337
      %p339 = scmp.eq.s32.totalorder %s38, 0
      %p340 = por %p338, %p339
      %s342 = sadd.s32 %s341, 1
      %p345 = scmp.eq.s32.totalorder %s32, 1
      %p346 = scmp.ne.s32.totalorder %s341, %s343
      %p347 = scmp.eq.s32.totalorder %s32, 0
      %p348 = por %p346, %p347
      %p349 = scmp.ne.s32.totalorder %s341, %s343
      %p350 = scmp.eq.s32.totalorder %s37, 1
      %p351 = por %p349, %p350
      %p352 = scmp.ne.s32.totalorder %s343, %s344
      %p353 = scmp.eq.s32.totalorder %s37, 0
      %p354 = por %p352, %p353
      %p355 = scmp.ne.s32.totalorder %s343, %s344
      %p356 = scmp.eq.s32.totalorder %s38, 1
      %p357 = por %p355, %p356
      %p359 = scmp.ne.s32.totalorder %s344, %s358
      %p360 = scmp.eq.s32.totalorder %s38, 0
      %p361 = por %p359, %p360
      %s363 = sadd.s32 %s362, 1
      %p366 = scmp.eq.s32.totalorder %s32, 1
      %p367 = scmp.ne.s32.totalorder %s362, %s364
      %p368 = scmp.eq.s32.totalorder %s32, 0
      %p369 = por %p367, %p368
      %p370 = scmp.ne.s32.totalorder %s362, %s364
      %p371 = scmp.eq.s32.totalorder %s37, 1
      %p372 = por %p370, %p371
      %p373 = scmp.ne.s32.totalorder %s364, %s365
      %p374 = scmp.eq.s32.totalorder %s37, 0
      %p375 = por %p373, %p374
      %p376 = scmp.ne.s32.totalorder %s364, %s365
      %p377 = scmp.eq.s32.totalorder %s38, 1
      %p378 = por %p376, %p377
      %p380 = scmp.ne.s32.totalorder %s365, %s379
      %p381 = scmp.eq.s32.totalorder %s38, 0
      %p382 = por %p380, %p381
      %s384 = sadd.s32 %s383, 1
      %p387 = scmp.eq.s32.totalorder %s32, 1
      %p388 = scmp.ne.s32.totalorder %s383, %s385
      %p389 = scmp.eq.s32.totalorder %s32, 0
      %p390 = por %p388, %p389
      %p391 = scmp.ne.s32.totalorder %s383, %s385
      %p392 = scmp.eq.s32.totalorder %s37, 1
      %p393 = por %p391, %p392
      %p394 = scmp.ne.s32.totalorder %s385, %s386
      %p395 = scmp.eq.s32.totalorder %s37, 0
      %p396 = por %p394, %p395
      %p397 = scmp.ne.s32.totalorder %s385, %s386
      %p398 = scmp.eq.s32.totalorder %s38, 1
      %p399 = por %p397, %p398
      %p401 = scmp.ne.s32.totalorder %s386, %s400
      %p402 = scmp.eq.s32.totalorder %s38, 0
      %p403 = por %p401, %p402
      %s404 = ssub.s32 %s39, %s51
      %s405 = ssub.s32 %s40, %s47
      %s406 = sor.u32 %s404, %s405
      %p407 = scmp.eq.s32.totalorder %s406, 0
      %s409 = sadd.s32 %s408, 1
      %s410 = scalar_select %p407, %s408, %s409
      %p413 = pneg %p407
      %p414 = scmp.eq.s32.totalorder %s32, 1
      %p415 = por %p413, %p414
      %p416 = scmp.ne.s32.totalorder %s408, %s411
      %p417 = scmp.eq.s32.totalorder %s32, 0
      %p418 = por %p416, %p417
      %p419 = scmp.ne.s32.totalorder %s408, %s411
      %p420 = scmp.eq.s32.totalorder %s37, 1
      %p421 = por %p419, %p420
      %p422 = scmp.ne.s32.totalorder %s411, %s412
      %p423 = scmp.eq.s32.totalorder %s37, 0
      %p424 = por %p422, %p423
      %p425 = scmp.ne.s32.totalorder %s411, %s412
      %p426 = scmp.eq.s32.totalorder %s38, 1
      %p427 = por %p425, %p426
      %p429 = scmp.ne.s32.totalorder %s412, %s428
      %p430 = scmp.eq.s32.totalorder %s38, 0
      %p431 = por %p429, %p430
      %p432 = scmp.le.s32.totalorder 1, %s32
      %p433 = scmp.lt.s32.totalorder %s32, 3
      %p434 = pnand %p432, %p433
      %p435 = pneg %p434
      // Predicated region
      $region9: #{tpu_custom_call.1} parent=5 // pred_check
        _
      $region10: #{tpu_custom_call.1} parent=5 // pred_check_branch
        %437 = sbr.rel (%p434) target = $region12
      $region11: #{tpu_custom_call.1} parent=5 // pred_region
        %s438 = ssub.s32 %s32, 1
        // Predicated region
        $region13: #{tpu_custom_call.1} parent=11 // pred_check
          %p439 = pneg %p165
        $region14: #{tpu_custom_call.1} parent=11 // pred_check_branch
          %441 = sbr.rel (%p439) target = $region16
        $region15: #{tpu_custom_call.1} parent=11 // pred_region
          _
        $region16: #{tpu_custom_call.1} parent=11 // pred_fallthru
          _
        // Predicated region
        $region17: #{tpu_custom_call.1} parent=11 // pred_check
          %p442 = pneg %p186
        $region18: #{tpu_custom_call.1} parent=11 // pred_check_branch
          %444 = sbr.rel (%p442) target = $region20
        $region19: #{tpu_custom_call.1} parent=11 // pred_region
          _
        $region20: #{tpu_custom_call.1} parent=11 // pred_fallthru
          _
        // Predicated region
        $region21: #{tpu_custom_call.1} parent=11 // pred_check
          %p445 = pneg %p207
        $region22: #{tpu_custom_call.1} parent=11 // pred_check_branch
          %447 = sbr.rel (%p445) target = $region24
        $region23: #{tpu_custom_call.1} parent=11 // pred_region
          %s449 = ssub.s32 2048, 2048
          %450 = vsyncadd [#allocation9], %s449
          %s451 = sshll.u32 [#allocation8], 4
          %s452 = int_to_ptr.vmem [resolvable:$true] %s451
          %457 = dma.hbm_to_vmem [thread:$0]  %s5, 2048, %s452, [#allocation9], 128, 128, 8
        $region24: #{tpu_custom_call.1} parent=11 // pred_fallthru
          _
        // Predicated region
        $region25: #{tpu_custom_call.1} parent=11 // pred_check
          %p458 = pneg %p228
        $region26: #{tpu_custom_call.1} parent=11 // pred_check_branch
          %460 = sbr.rel (%p458) target = $region28
        $region27: #{tpu_custom_call.1} parent=11 // pred_region
          _
        $region28: #{tpu_custom_call.1} parent=11 // pred_fallthru
          _
        // Predicated region
        $region29: #{tpu_custom_call.1} parent=11 // pred_check
          %p461 = pneg %p249
        $region30: #{tpu_custom_call.1} parent=11 // pred_check_branch
          %463 = sbr.rel (%p461) target = $region32
        $region31: #{tpu_custom_call.1} parent=11 // pred_region
          _
        $region32: #{tpu_custom_call.1} parent=11 // pred_fallthru
          _
        // Predicated region
        $region33: #{tpu_custom_call.1} parent=11 // pred_check
          %p464 = pneg %p270
        $region34: #{tpu_custom_call.1} parent=11 // pred_check_branch
          %466 = sbr.rel (%p464) target = $region36
        $region35: #{tpu_custom_call.1} parent=11 // pred_region
          _
        $region36: #{tpu_custom_call.1} parent=11 // pred_fallthru
          _
        // Predicated region
        $region37: #{tpu_custom_call.1} parent=11 // pred_check
          %p467 = pneg %p291
        $region38: #{tpu_custom_call.1} parent=11 // pred_check_branch
          %469 = sbr.rel (%p467) target = $region40
        $region39: #{tpu_custom_call.1} parent=11 // pred_region
          %s471 = ssub.s32 6144, 6144
          %472 = vsyncadd [#allocation9], %s471
          %s473 = sshll.u32 [#allocation10], 4
          %s474 = int_to_ptr.vmem [resolvable:$true] %s473
          %479 = dma.hbm_to_vmem [thread:$0]  %s9, 6144, %s474, [#allocation9], 128, 128, 8
        $region40: #{tpu_custom_call.1} parent=11 // pred_fallthru
          _
        // Predicated region
        $region41: #{tpu_custom_call.1} parent=11 // pred_check
          %p480 = pneg %p312
        $region42: #{tpu_custom_call.1} parent=11 // pred_check_branch
          %482 = sbr.rel (%p480) target = $region44
        $region43: #{tpu_custom_call.1} parent=11 // pred_region
          _
        $region44: #{tpu_custom_call.1} parent=11 // pred_fallthru
          _
        // Predicated region
        $region45: #{tpu_custom_call.1} parent=11 // pred_check
          %p483 = pneg %p333
        $region46: #{tpu_custom_call.1} parent=11 // pred_check_branch
          %485 = sbr.rel (%p483) target = $region48
        $region47: #{tpu_custom_call.1} parent=11 // pred_region
          _
        $region48: #{tpu_custom_call.1} parent=11 // pred_fallthru
          _
        // Predicated region
        $region49: #{tpu_custom_call.1} parent=11 // pred_check
          %p486 = pneg %p354
        $region50: #{tpu_custom_call.1} parent=11 // pred_check_branch
          %488 = sbr.rel (%p486) target = $region52
        $region51: #{tpu_custom_call.1} parent=11 // pred_region
          _
        $region52: #{tpu_custom_call.1} parent=11 // pred_fallthru
          _
        // Predicated region
        $region53: #{tpu_custom_call.1} parent=11 // pred_check
          %p489 = pneg %p375
        $region54: #{tpu_custom_call.1} parent=11 // pred_check_branch
          %491 = sbr.rel (%p489) target = $region56
        $region55: #{tpu_custom_call.1} parent=11 // pred_region
          %s493 = ssub.s32 2048, 2048
          %494 = vsyncadd [#allocation12], %s493
          %s495 = sshll.u32 [#allocation11], 4
          %s496 = int_to_ptr.vmem [resolvable:$true] %s495
          %501 = dma.hbm_to_vmem [thread:$0]  %s13, 2048, %s496, [#allocation12], 128, 128, 8
        $region56: #{tpu_custom_call.1} parent=11 // pred_fallthru
          _
        // Predicated region
        $region57: #{tpu_custom_call.1} parent=11 // pred_check
          %p502 = pneg %p396
        $region58: #{tpu_custom_call.1} parent=11 // pred_check_branch
          %504 = sbr.rel (%p502) target = $region60
        $region59: #{tpu_custom_call.1} parent=11 // pred_region
          _
        $region60: #{tpu_custom_call.1} parent=11 // pred_fallthru
          _
      $region12: #{tpu_custom_call.1} parent=5 // pred_fallthru
        _
      %p505 = scmp.lt.s32.totalorder %s32, 2
      // Predicated region
      $region61: #{tpu_custom_call.1} parent=5 // pred_check
        %p506 = pneg %p505
      $region62: #{tpu_custom_call.1} parent=5 // pred_check_branch
        %508 = sbr.rel (%p506) target = $region64
      $region63: #{tpu_custom_call.1} parent=5 // pred_region
        // Predicated region
        $region65: #{tpu_custom_call.1} parent=63 // pred_check
          %p509 = pneg %p74
        $region66: #{tpu_custom_call.1} parent=63 // pred_check_branch
          %511 = sbr.rel (%p509) target = $region68
        $region67: #{tpu_custom_call.1} parent=63 // pred_region
          %s512 = sand.u32 %s64, 1
          %s513 = scalar_lea.sflag [#allocation3], %s512
          %s514 = sand.u32 %s64, 1
          %s515 = smul.addr %s514, 8
          %s516 = scalar_lea.vmem [#allocation2], %s515
          %s517 = smul.u32 %s40, 2
          %s518 = ssub.s32 %s517, 1
          %p519 = scmp.gt.s32.totalorder %s518, 0
          %s520 = scalar_select %p519, %s518, 0
          %s522 = ssub.s32 128, 128
          %523 = vsyncadd %s513, %s522
          %s524 = smul.addr %s39, 2
          %s525 = sadd.s32 %s520, %s524
          %s526 = smul.addr %s525, 128
          %s527 = scalar_lea.hbm %s0, %s526
          %s529 = sshll.u32 %s516, 4
          %s530 = int_to_ptr.vmem [resolvable:$true] %s529
          %532 = dma.hbm_to_vmem [thread:$0]  %s527, 128, %s530, %s513
        $region68: #{tpu_custom_call.1} parent=63 // pred_fallthru
          _
        // Predicated region
        $region69: #{tpu_custom_call.1} parent=63 // pred_check
          %p533 = pneg %p102
        $region70: #{tpu_custom_call.1} parent=63 // pred_check_branch
          %535 = sbr.rel (%p533) target = $region72
        $region71: #{tpu_custom_call.1} parent=63 // pred_region
          %s536 = sand.u32 %s32, 1
          %s537 = scalar_lea.sflag [#allocation6], %s536
          %s538 = sand.u32 %s92, 1
          %s539 = smul.addr %s538, 16
          %s540 = scalar_lea.vmem [#allocation5], %s539
          %s541 = smul.u32 2, %s40
          %s543 = ssub.s32 256, 256
          %544 = vsyncadd %s537, %s543
          %s545 = smul.addr %s39, 2
          %s546 = sadd.s32 %s541, %s545
          %s547 = smul.addr %s546, 128
          %s548 = scalar_lea.hbm %s1, %s547
          %s549 = sshll.u32 %s540, 4
          %s550 = int_to_ptr.vmem [resolvable:$true] %s549
          %555 = dma.hbm_to_vmem [thread:$0]  %s548, 256, %s550, %s537, 128, 128, 8
        $region72: #{tpu_custom_call.1} parent=63 // pred_fallthru
          _
        // Predicated region
        $region73: #{tpu_custom_call.1} parent=63 // pred_check
          %p556 = pneg %p138
        $region74: #{tpu_custom_call.1} parent=63 // pred_check_branch
          %558 = sbr.rel (%p556) target = $region76
        $region75: #{tpu_custom_call.1} parent=63 // pred_region
          %s559 = sand.u32 %s32, 1
          %s560 = scalar_lea.sflag [#allocation6], %s559
          %s561 = sand.u32 %s128, 1
          %s562 = smul.addr %s561, 8
          %s563 = scalar_lea.vmem [#allocation7], %s562
          %s564 = sadd.s32 %s40, 1
          %s565 = smul.u32 %s564, 2
          %p566 = scmp.lt.s32.totalorder %s565, 1
          %s567 = scalar_select %p566, %s565, 1
          %s569 = ssub.s32 128, 128
          %570 = vsyncadd %s560, %s569
          %s571 = smul.addr %s39, 2
          %s572 = sadd.s32 %s567, %s571
          %s573 = smul.addr %s572, 128
          %s574 = scalar_lea.hbm %s2, %s573
          %s576 = sshll.u32 %s563, 4
          %s577 = int_to_ptr.vmem [resolvable:$true] %s576
          %579 = dma.hbm_to_vmem [thread:$0]  %s574, 128, %s577, %s560
        $region76: #{tpu_custom_call.1} parent=63 // pred_fallthru
          _
      $region64: #{tpu_custom_call.1} parent=5 // pred_fallthru
        _
      %p580 = scmp.le.s32.totalorder 1, %s32
      %p581 = scmp.lt.s32.totalorder %s32, 3
      %p582 = pnand %p580, %p581
      %p583 = pneg %p582
      // Predicated region
      $region77: #{tpu_custom_call.1} parent=5 // pred_check
        _
      $region78: #{tpu_custom_call.1} parent=5 // pred_check_branch
        %585 = sbr.rel (%p582) target = $region80
      $region79: #{tpu_custom_call.1} parent=5 // pred_region
        %s586 = ssub.s32 %s32, 1
        %s587 = sand.u32 %s67, 1
        %s588 = scalar_lea.sflag [#allocation3], %s587
        %s589 = sand.u32 %s67, 1
        %s590 = smul.addr %s589, 8
        %s591 = scalar_lea.vmem [#allocation2], %s590
        // Predicated region
        $region81: #{tpu_custom_call.1} parent=79 // pred_check
          %p592 = pneg %p80
        $region82: #{tpu_custom_call.1} parent=79 // pred_check_branch
          %594 = sbr.rel (%p592) target = $region84
        $region83: #{tpu_custom_call.1} parent=79 // pred_region
          %595 = dma.done %s588, 128
        $region84: #{tpu_custom_call.1} parent=79 // pred_fallthru
          _
        %s596 = sand.u32 %s37, 1
        %s597 = scalar_lea.sflag [#allocation6], %s596
        %s598 = sand.u32 %s95, 1
        %s599 = smul.addr %s598, 16
        %s600 = scalar_lea.vmem [#allocation5], %s599
        // Predicated region
        $region85: #{tpu_custom_call.1} parent=79 // pred_check
          %p601 = pneg %p108
        $region86: #{tpu_custom_call.1} parent=79 // pred_check_branch
          %603 = sbr.rel (%p601) target = $region88
        $region87: #{tpu_custom_call.1} parent=79 // pred_region
          %604 = dma.done %s597, 256
        $region88: #{tpu_custom_call.1} parent=79 // pred_fallthru
          _
        %s605 = sand.u32 %s37, 1
        %s606 = scalar_lea.sflag [#allocation6], %s605
        %s607 = sand.u32 %s131, 1
        %s608 = smul.addr %s607, 8
        %s609 = scalar_lea.vmem [#allocation7], %s608
        // Predicated region
        $region89: #{tpu_custom_call.1} parent=79 // pred_check
          %p610 = pneg %p144
        $region90: #{tpu_custom_call.1} parent=79 // pred_check_branch
          %612 = sbr.rel (%p610) target = $region92
        $region91: #{tpu_custom_call.1} parent=79 // pred_region
          %613 = dma.done %s606, 128
        $region92: #{tpu_custom_call.1} parent=79 // pred_fallthru
          _
        // Predicated region
        $region93: #{tpu_custom_call.1} parent=79 // pred_check
          %p614 = pneg %p207
        $region94: #{tpu_custom_call.1} parent=79 // pred_check_branch
          %616 = sbr.rel (%p614) target = $region96
        $region95: #{tpu_custom_call.1} parent=79 // pred_region
          %617 = dma.done [#allocation9], 2048
        $region96: #{tpu_custom_call.1} parent=79 // pred_fallthru
          _
        // Predicated region
        $region97: #{tpu_custom_call.1} parent=79 // pred_check
          %p618 = pneg %p291
        $region98: #{tpu_custom_call.1} parent=79 // pred_check_branch
          %620 = sbr.rel (%p618) target = $region100
        $region99: #{tpu_custom_call.1} parent=79 // pred_region
          %621 = dma.done [#allocation9], 6144
        $region100: #{tpu_custom_call.1} parent=79 // pred_fallthru
          _
        // Predicated region
        $region101: #{tpu_custom_call.1} parent=79 // pred_check
          %p622 = pneg %p375
        $region102: #{tpu_custom_call.1} parent=79 // pred_check_branch
          %624 = sbr.rel (%p622) target = $region104
        $region103: #{tpu_custom_call.1} parent=79 // pred_region
          %625 = dma.done [#allocation12], 2048
        $region104: #{tpu_custom_call.1} parent=79 // pred_fallthru
          _
        %s626 = sand.u32 %s67, 1
        %s627 = scalar_lea.sflag [#allocation3], %s626
        %s628 = sand.u32 %s67, 1
        %s629 = smul.addr %s628, 8
        %s630 = scalar_lea.vmem [#allocation2], %s629
        %p631 = pneg %p80
        %p632 = pneg %p77
        %s633 = sand.u32 %s37, 1
        %s634 = scalar_lea.sflag [#allocation6], %s633
        %s635 = sand.u32 %s95, 1
        %s636 = smul.addr %s635, 16
        %s637 = scalar_lea.vmem [#allocation5], %s636
        %p638 = pneg %p108
        %p639 = pneg %p105
        %s640 = sand.u32 %s37, 1
        %s641 = scalar_lea.sflag [#allocation6], %s640
        %s642 = sand.u32 %s131, 1
        %s643 = smul.addr %s642, 8
        %s644 = scalar_lea.vmem [#allocation7], %s643
        %p645 = pneg %p144
        %p646 = pneg %p141
        %p647 = pneg %p165
        %p648 = pneg %p162
        %p649 = pneg %p186
        %p650 = pneg %p183
        %p651 = pneg %p207
        %p652 = pneg %p204
        %p653 = pneg %p228
        %p654 = pneg %p225
        %p655 = pneg %p249
        %p656 = pneg %p246
        %p657 = pneg %p270
        %p658 = pneg %p267
        %p659 = pneg %p291
        %p660 = pneg %p288
        %p661 = pneg %p312
        %p662 = pneg %p309
        %p663 = pneg %p333
        %p664 = pneg %p330
        %p665 = pneg %p354
        %p666 = pneg %p351
        %p667 = pneg %p375
        %p668 = pneg %p372
        %p669 = pneg %p396
        %p670 = pneg %p393
        %p671 = pneg %p424
        %p672 = pneg %p421
        %s673 = sand.u32 %s411, 1
        %s674 = scalar_lea.sflag [#allocation4], %s673
        %s675 = sand.u32 %s411, 1
        %s676 = smul.addr %s675, 16
        %s677 = scalar_lea.vmem [#allocation13], %s676
        %s678 = smul.u32 %s42, 2
        %s679 = ssub.s32 %s678, 1
        %p680 = scmp.gt.s32.totalorder %s679, 0
        %s681 = scalar_select %p680, %s679, 0
        %s682 = smul.u32 2, %s42
        %s683 = sadd.s32 %s42, 1
        %s684 = smul.u32 %s683, 2
        %p685 = scmp.lt.s32.totalorder %s684, 1
        %s686 = scalar_select %p685, %s684, 1
        %s687 = smul.u32 2, %s42
        %v688 = vld [vmem:[%s600] sm:$0xff]
        %v689 = vld [vmem:[%s600 + $0x8] sm:$0xff]
        %v690 = vld [vmem:[%s591] sm:$0xff]
        %v691 = vld [vmem:[%s609] sm:$0xff]
        %v692 = vld [vmem:[%s3] sm:$0x1]
        %v693 = vld [vmem:[%s4] sm:$0x1]
        %694 = vadd.xlane.f32.xlu0 %v690
        %v695 = vpop.xlane.xlu0 %694
        %696 = vadd.xlane.f32.xlu0 %v688
        %v697 = vpop.xlane.xlu0 %696
        %698 = vadd.xlane.f32.xlu0 %v689
        %v699 = vpop.xlane.xlu0 %698
        %700 = vadd.xlane.f32.xlu0 %v691
        %v701 = vpop.xlane.xlu0 %700
        %v702 = vmul.f32 %v690, %v690
        %v703 = vmul.f32 %v688, %v688
        %v704 = vmul.f32 %v689, %v689
        %v705 = vmul.f32 %v691, %v691
        %706 = vadd.xlane.f32.xlu0 %v702
        %v707 = vpop.xlane.xlu0 %706
        %708 = vadd.xlane.f32.xlu0 %v703
        %v709 = vpop.xlane.xlu0 %708
        %710 = vadd.xlane.f32.xlu0 %v704
        %v711 = vpop.xlane.xlu0 %710
        %712 = vadd.xlane.f32.xlu0 %v705
        %v713 = vpop.xlane.xlu0 %712
        %v714 = vmul.f32 %v695, 0.03125
        %v715 = vmul.f32 %v697, 0.03125
        %v716 = vmul.f32 %v699, 0.03125
        %v717 = vmul.f32 %v701, 0.03125
        %v718 = vmul.f32 %v707, 0.03125
        %v719 = vmul.f32 %v709, 0.03125
        %v720 = vmul.f32 %v711, 0.03125
        %v721 = vmul.f32 %v713, 0.03125
        %v722 = vmul.f32 %v714, %v714
        %v723 = vmul.f32 %v715, %v715
        %v724 = vmul.f32 %v716, %v716
        %v725 = vmul.f32 %v717, %v717
        %v726 = vsub.f32 %v718, %v722
        %v727 = vsub.f32 %v719, %v723
        %v728 = vsub.f32 %v720, %v724
        %v729 = vsub.f32 %v721, %v725
        %v730 = vmax.f32 %v726, 0.0
        %v731 = vmax.f32 %v727, 0.0
        %v732 = vmax.f32 %v728, 0.0
        %v733 = vmax.f32 %v729, 0.0
        %v734 = vsub.f32 %v690, %v714
        %v735 = vsub.f32 %v688, %v715
        %v736 = vsub.f32 %v689, %v716
        %v737 = vsub.f32 %v691, %v717
        %v738 = vadd.f32 %v730, 1e-05
        %v739 = vadd.f32 %v731, 1e-05
        %v740 = vadd.f32 %v732, 1e-05
        %v741 = vadd.f32 %v733, 1e-05
        %v742 = vrsqrt.pop %v738
        %v743 = vrsqrt.pop %v739
        %v744 = vrsqrt.pop %v740
        %v745 = vrsqrt.pop %v741
        %v746 = vmul.f32 %v734, %v742
        %v747 = vmul.f32 %v735, %v743
        %v748 = vmul.f32 %v736, %v744
        %v749 = vmul.f32 %v737, %v745
        %v751 = vlaneseq
        %v752 = vshrl.u32 %v751, 7
        %v753 = vsub.s32 0, %v752
        %v754 = vrot.slane %v692, %v753
        %v756 = vmul.f32 %v746, %v754
        %v757 = vmul.f32 %v747, %v754
        %v758 = vmul.f32 %v748, %v754
        %v759 = vmul.f32 %v749, %v754
        %v761 = vlaneseq
        %v762 = vshrl.u32 %v761, 7
        %v763 = vsub.s32 0, %v762
        %v764 = vrot.slane %v693, %v763
        %v766 = vadd.f32 %v756, %v764
        %v767 = vadd.f32 %v757, %v764
        %v768 = vadd.f32 %v758, %v764
        %v769 = vadd.f32 %v759, %v764
        %v770 = vmul.f32 %v766, 0.5
        %v771 = vmul.f32 %v767, 0.5
        %v772 = vmul.f32 %v768, 0.5
        %v773 = vmul.f32 %v769, 0.5
        %v774 = vmul.f32 %v766, 0.70710677
        %v775 = vmul.f32 %v767, 0.70710677
        %v776 = vmul.f32 %v768, 0.70710677
        %v777 = vmul.f32 %v769, 0.70710677
        %v778 = verf.f32.pop %v774
        %v779 = verf.f32.pop %v775
        %v780 = verf.f32.pop %v776
        %v781 = verf.f32.pop %v777
        %v782 = vadd.f32 %v778, 1.0
        %v783 = vadd.f32 %v779, 1.0
        %v784 = vadd.f32 %v780, 1.0
        %v785 = vadd.f32 %v781, 1.0
        %v786 = vmul.f32 %v770, %v782
        %v787 = vmul.f32 %v771, %v783
        %v788 = vmul.f32 %v772, %v784
        %v789 = vmul.f32 %v773, %v785
        %v790 = vld [vmem:[#allocation8] sm:$0xff]
        %v791 = vld [vmem:[#allocation8 + $0x8] sm:$0xff]
        %v792 = vld [vmem:[#allocation8 + $0x10] sm:$0xff]
        %v793 = vld [vmem:[#allocation8 + $0x18] sm:$0xff]
        %v794 = vld [vmem:[#allocation8 + $0x20] sm:$0xff]
        %v795 = vld [vmem:[#allocation8 + $0x28] sm:$0xff]
        %v796 = vld [vmem:[#allocation8 + $0x30] sm:$0xff]
        %v797 = vld [vmem:[#allocation8 + $0x38] sm:$0xff]
        %v798 = vld [vmem:[#allocation8 + $0x40] sm:$0xff]
        %v799 = vld [vmem:[#allocation8 + $0x48] sm:$0xff]
        %v800 = vld [vmem:[#allocation8 + $0x50] sm:$0xff]
        %v801 = vld [vmem:[#allocation8 + $0x58] sm:$0xff]
        %v802 = vld [vmem:[#allocation8 + $0x60] sm:$0xff]
        %v803 = vld [vmem:[#allocation8 + $0x68] sm:$0xff]
        %v804 = vld [vmem:[#allocation8 + $0x70] sm:$0xff]
        %v805 = vld [vmem:[#allocation8 + $0x78] sm:$0xff]
        %v806 = vld [vmem:[%s6] sm:$0x1]
        %v808 = vlaneseq
        %v809 = vshrl.u32 %v808, 7
        %v810 = vsub.s32 0, %v809
        %v811 = vrot.slane %v806, %v810
        %813 = vmatprep.subr.mxu0 0.0
        %814 = vmatpush1.msra.mxu0 %v790
        %815 = vmatprep.subr.mxu0 0.0
        %816 = vmatpush1.msra.mxu0 %v791
        %817 = vmatprep.subr.mxu0 0.0
        %818 = vmatpush1.msra.mxu0 %v792
        %819 = vmatprep.subr.mxu0 0.0
        %820 = vmatpush1.msra.mxu0 %v793
        %821 = vmatprep.subr.mxu0 0.0
        %822 = vmatpush1.msra.mxu0 %v794
        %823 = vmatprep.subr.mxu0 0.0
        %824 = vmatpush1.msra.mxu0 %v795
        %825 = vmatprep.subr.mxu0 0.0
        %826 = vmatpush1.msra.mxu0 %v796
        %827 = vmatprep.subr.mxu0 0.0
        %828 = vmatpush1.msra.mxu0 %v797
        %829 = vmatprep.subr.mxu0 0.0
        %830 = vmatpush1.msra.mxu0 %v798
        %831 = vmatprep.subr.mxu0 0.0
        %832 = vmatpush1.msra.mxu0 %v799
        %833 = vmatprep.subr.mxu0 0.0
        %834 = vmatpush1.msra.mxu0 %v800
        %835 = vmatprep.subr.mxu0 0.0
        %836 = vmatpush1.msra.mxu0 %v801
        %837 = vmatprep.subr.mxu0 0.0
        %838 = vmatpush1.msra.mxu0 %v802
        %839 = vmatprep.subr.mxu0 0.0
        %840 = vmatpush1.msra.mxu0 %v803
        %841 = vmatprep.subr.mxu0 0.0
        %842 = vmatpush1.msra.mxu0 %v804
        %843 = vmatprep.subr.mxu0 0.0
        %844 = vmatpush1.msra.mxu0 %v805
        %845 = vmatprep.subr.mxu0 0.0
        %846 = vmatpush1.msra.mxu0 0.0
        %847 = vmatprep.subr.mxu0 0.0
        %848 = vmatpush1.msra.mxu0 0.0
        %849 = vmatprep.subr.mxu0 0.0
        %850 = vmatpush1.msra.mxu0 0.0
        %851 = vmatprep.subr.mxu0 0.0
        %852 = vmatpush1.msra.mxu0 0.0
        %853 = vmatprep.subr.mxu0 0.0
        %854 = vmatpush1.msra.mxu0 0.0
        %855 = vmatprep.subr.mxu0 0.0
        %856 = vmatpush1.msra.mxu0 0.0
        %857 = vmatprep.subr.mxu0 0.0
        %858 = vmatpush1.msra.mxu0 0.0
        %859 = vmatprep.subr.mxu0 0.0
        %860 = vmatpush1.msra.mxu0 0.0
        %861 = vmatprep.subr.mxu0 0.0
        %862 = vmatpush1.msra.mxu0 0.0
        %863 = vmatprep.subr.mxu0 0.0
        %864 = vmatpush1.msra.mxu0 0.0
        %865 = vmatprep.subr.mxu0 0.0
        %866 = vmatpush1.msra.mxu0 0.0
        %867 = vmatprep.subr.mxu0 0.0
        %868 = vmatpush1.msra.mxu0 0.0
        %869 = vmatprep.subr.mxu0 0.0
        %870 = vmatpush1.msra.mxu0 0.0
        %871 = vmatprep.subr.mxu0 0.0
        %872 = vmatpush1.msra.mxu0 0.0
        %873 = vmatprep.subr.mxu0 0.0
        %874 = vmatpush1.msra.mxu0 0.0
        %875 = vmatprep.subr.mxu0 0.0
        %876 = vmatpush1.msra.mxu0 0.0
        %877 = vmatprep.mubr.f32.mxu0 0.0
        %878 = vmatmul.mubr.f32.gmra.mrb[0].mxu0 %v786
        %v879 = vpop.f32.mrb[0].mxu0
        %v880 = vadd.f32 %v811, %v879
        %v881 = vpop.f32.mrb[0].mxu0
        %882 = vmatprep.mubr.f32.mxu0 0.0
        %883 = vmatmul.mubr.f32.gmra.mrb[0].mxu0 %v787
        %v884 = vpop.f32.mrb[0].mxu0
        %v885 = vadd.f32 %v811, %v884
        %v886 = vpop.f32.mrb[0].mxu0
        %887 = vmatprep.mubr.f32.mxu0 0.0
        %888 = vmatmul.mubr.f32.gmra.mrb[0].mxu0 %v788
        %v889 = vpop.f32.mrb[0].mxu0
        %v890 = vadd.f32 %v811, %v889
        %v891 = vpop.f32.mrb[0].mxu0
        %892 = vmatprep.mubr.f32.mxu0 0.0
        %893 = vmatmul.mubr.f32.gmra.mrb[0].mxu0 %v789
        %v894 = vpop.f32.mrb[0].mxu0
        %v895 = vadd.f32 %v811, %v894
        %v896 = vpop.f32.mrb[0].mxu0
        %897 = vdwg.mxu0
        %v898 = vld [vmem:[%s7] sm:$0x1]
        %v899 = vld [vmem:[%s8] sm:$0x1]
        %900 = vadd.xlane.f32.xlu0 %v880
        %v901 = vpop.xlane.xlu0 %900
        %902 = vadd.xlane.f32.xlu0 %v885
        %v903 = vpop.xlane.xlu0 %902
        %904 = vadd.xlane.f32.xlu0 %v890
        %v905 = vpop.xlane.xlu0 %904
        %906 = vadd.xlane.f32.xlu0 %v895
        %v907 = vpop.xlane.xlu0 %906
        %v908 = vmul.f32 %v880, %v880
        %v909 = vmul.f32 %v885, %v885
        %v910 = vmul.f32 %v890, %v890
        %v911 = vmul.f32 %v895, %v895
        %912 = vadd.xlane.f32.xlu0 %v908
        %v913 = vpop.xlane.xlu0 %912
        %914 = vadd.xlane.f32.xlu0 %v909
        %v915 = vpop.xlane.xlu0 %914
        %916 = vadd.xlane.f32.xlu0 %v910
        %v917 = vpop.xlane.xlu0 %916
        %918 = vadd.xlane.f32.xlu0 %v911
        %v919 = vpop.xlane.xlu0 %918
        %v920 = vmul.f32 %v901, 0.015625
        %v921 = vmul.f32 %v903, 0.015625
        %v922 = vmul.f32 %v905, 0.015625
        %v923 = vmul.f32 %v907, 0.015625
        %v924 = vmul.f32 %v913, 0.015625
        %v925 = vmul.f32 %v915, 0.015625
        %v926 = vmul.f32 %v917, 0.015625
        %v927 = vmul.f32 %v919, 0.015625
        %v928 = vmul.f32 %v920, %v920
        %v929 = vmul.f32 %v921, %v921
        %v930 = vmul.f32 %v922, %v922
        %v931 = vmul.f32 %v923, %v923
        %v932 = vsub.f32 %v924, %v928
        %v933 = vsub.f32 %v925, %v929
        %v934 = vsub.f32 %v926, %v930
        %v935 = vsub.f32 %v927, %v931
        %v936 = vmax.f32 %v932, 0.0
        %v937 = vmax.f32 %v933, 0.0
        %v938 = vmax.f32 %v934, 0.0
        %v939 = vmax.f32 %v935, 0.0
        %v940 = vsub.f32 %v880, %v920
        %v941 = vsub.f32 %v885, %v921
        %v942 = vsub.f32 %v890, %v922
        %v943 = vsub.f32 %v895, %v923
        %v944 = vadd.f32 %v936, 1e-05
        %v945 = vadd.f32 %v937, 1e-05
        %v946 = vadd.f32 %v938, 1e-05
        %v947 = vadd.f32 %v939, 1e-05
        %v948 = vrsqrt.pop %v944
        %v949 = vrsqrt.pop %v945
        %v950 = vrsqrt.pop %v946
        %v951 = vrsqrt.pop %v947
        %v952 = vmul.f32 %v940, %v948
        %v953 = vmul.f32 %v941, %v949
        %v954 = vmul.f32 %v942, %v950
        %v955 = vmul.f32 %v943, %v951
        %v957 = vlaneseq
        %v958 = vshrl.u32 %v957, 7
        %v959 = vsub.s32 0, %v958
        %v960 = vrot.slane %v898, %v959
        %v962 = vmul.f32 %v952, %v960
        %v963 = vmul.f32 %v953, %v960
        %v964 = vmul.f32 %v954, %v960
        %v965 = vmul.f32 %v955, %v960
        %v967 = vlaneseq
        %v968 = vshrl.u32 %v967, 7
        %v969 = vsub.s32 0, %v968
        %v970 = vrot.slane %v899, %v969
        %v972 = vadd.f32 %v962, %v970
        %v973 = vadd.f32 %v963, %v970
        %v974 = vadd.f32 %v964, %v970
        %v975 = vadd.f32 %v965, %v970
        %v976 = vmul.f32 %v972, 0.5
        %v977 = vmul.f32 %v973, 0.5
        %v978 = vmul.f32 %v974, 0.5
        %v979 = vmul.f32 %v975, 0.5
        %v980 = vmul.f32 %v972, 0.70710677
        %v981 = vmul.f32 %v973, 0.70710677
        %v982 = vmul.f32 %v974, 0.70710677
        %v983 = vmul.f32 %v975, 0.70710677
        %v984 = verf.f32.pop %v980
        %v985 = verf.f32.pop %v981
        %v986 = verf.f32.pop %v982
        %v987 = verf.f32.pop %v983
        %v988 = vadd.f32 %v984, 1.0
        %v989 = vadd.f32 %v985, 1.0
        %v990 = vadd.f32 %v986, 1.0
        %v991 = vadd.f32 %v987, 1.0
        %v992 = vmul.f32 %v976, %v988
        %v993 = vmul.f32 %v977, %v989
        %v994 = vmul.f32 %v978, %v990
        %v995 = vmul.f32 %v979, %v991
        %v996 = vlaneseq
        %v997 = vshrl.u32 %v996, 7
        %v998 = vadd.s32 %v997, 8
        %v999 = vadd.s32 %v997, 16
        %v1000 = vadd.s32 %v997, 24
        %s1001 = smul.u32 %s42, 16
        %s1002 = ssub.s32 %s1001, 8
        %v1003 = vstv %s1002
        %v1004 = vadd.s32 %v1003, %v997
        %v1005 = vadd.s32 %v1003, %v998
        %v1006 = vadd.s32 %v1003, %v999
        %v1007 = vadd.s32 %v1003, %v1000
        %vm1008 = vcmp.ge.s32.totalorder %v1004, 0
        %vm1009 = vcmp.ge.s32.totalorder %v1005, 0
        %vm1010 = vcmp.ge.s32.totalorder %v1006, 0
        %vm1011 = vcmp.ge.s32.totalorder %v1007, 0
        %vm1012 = vcmp.lt.s32.totalorder %v1004, 16
        %vm1013 = vcmp.lt.s32.totalorder %v1005, 16
        %vm1014 = vcmp.lt.s32.totalorder %v1006, 16
        %vm1015 = vcmp.lt.s32.totalorder %v1007, 16
        %vm1016 = vmand %vm1008, %vm1012
        %vm1017 = vmand %vm1009, %vm1013
        %vm1018 = vmand %vm1010, %vm1014
        %vm1019 = vmand %vm1011, %vm1015
        %v1020 = vsel %vm1016, 1, 0
        %v1021 = vsel %vm1017, 1, 0
        %v1022 = vsel %vm1018, 1, 0
        %v1023 = vsel %vm1019, 1, 0
        %vm1024 = vcmp.eq.s32.totalorder %v1020, 1
        %vm1025 = vcmp.eq.s32.totalorder %v1021, 1
        %vm1026 = vcmp.eq.s32.totalorder %v1022, 1
        %vm1027 = vcmp.eq.s32.totalorder %v1023, 1
        %v1028 = vsel %vm1024, %v992, 0.0
        %v1029 = vsel %vm1025, %v993, 0.0
        %v1030 = vsel %vm1026, %v994, 0.0
        %v1031 = vsel %vm1027, %v995, 0.0
        %v1032 = vld [vmem:[#allocation10] sm:$0xff]
        %v1033 = vld [vmem:[#allocation10 + $0x8] sm:$0xff]
        %v1034 = vld [vmem:[#allocation10 + $0x10] sm:$0xff]
        %v1035 = vld [vmem:[#allocation10 + $0x18] sm:$0xff]
        %v1036 = vld [vmem:[#allocation10 + $0x20] sm:$0xff]
        %v1037 = vld [vmem:[#allocation10 + $0x28] sm:$0xff]
        %v1038 = vld [vmem:[#allocation10 + $0x30] sm:$0xff]
        %v1039 = vld [vmem:[#allocation10 + $0x38] sm:$0xff]
        %v1040 = vld [vmem:[#allocation10 + $0x40] sm:$0xff]
        %v1041 = vld [vmem:[#allocation10 + $0x48] sm:$0xff]
        %v1042 = vld [vmem:[#allocation10 + $0x50] sm:$0xff]
        %v1043 = vld [vmem:[#allocation10 + $0x58] sm:$0xff]
        %v1044 = vld [vmem:[#allocation10 + $0x60] sm:$0xff]
        %v1045 = vld [vmem:[#allocation10 + $0x68] sm:$0xff]
        %v1046 = vld [vmem:[#allocation10 + $0x70] sm:$0xff]
        %v1047 = vld [vmem:[#allocation10 + $0x78] sm:$0xff]
        %s1048 = scalar_lea.vmem [#allocation10], 128
        %v1049 = vld [vmem:[%s1048] sm:$0xff]
        %v1050 = vld [vmem:[%s1048 + $0x8] sm:$0xff]
        %v1051 = vld [vmem:[%s1048 + $0x10] sm:$0xff]
        %v1052 = vld [vmem:[%s1048 + $0x18] sm:$0xff]
        %v1053 = vld [vmem:[%s1048 + $0x20] sm:$0xff]
        %v1054 = vld [vmem:[%s1048 + $0x28] sm:$0xff]
        %v1055 = vld [vmem:[%s1048 + $0x30] sm:$0xff]
        %v1056 = vld [vmem:[%s1048 + $0x38] sm:$0xff]
        %v1057 = vld [vmem:[%s1048 + $0x40] sm:$0xff]
        %v1058 = vld [vmem:[%s1048 + $0x48] sm:$0xff]
        %v1059 = vld [vmem:[%s1048 + $0x50] sm:$0xff]
        %v1060 = vld [vmem:[%s1048 + $0x58] sm:$0xff]
        %v1061 = vld [vmem:[%s1048 + $0x60] sm:$0xff]
        %v1062 = vld [vmem:[%s1048 + $0x68] sm:$0xff]
        %v1063 = vld [vmem:[%s1048 + $0x70] sm:$0xff]
        %v1064 = vld [vmem:[%s1048 + $0x78] sm:$0xff]
        %1065 = vmatprep.subr.mxu0 0.0
        %1066 = vmatpush1.msra.mxu0 %v1049
        %1067 = vmatprep.subr.mxu0 0.0
        %1068 = vmatpush1.msra.mxu0 %v1050
        %1069 = vmatprep.subr.mxu0 0.0
        %1070 = vmatpush1.msra.mxu0 %v1051
        %1071 = vmatprep.subr.mxu0 0.0
        %1072 = vmatpush1.msra.mxu0 %v1052
        %1073 = vmatprep.subr.mxu0 0.0
        %1074 = vmatpush1.msra.mxu0 %v1053
        %1075 = vmatprep.subr.mxu0 0.0
        %1076 = vmatpush1.msra.mxu0 %v1054
        %1077 = vmatprep.subr.mxu0 0.0
        %1078 = vmatpush1.msra.mxu0 %v1055
        %1079 = vmatprep.subr.mxu0 0.0
        %1080 = vmatpush1.msra.mxu0 %v1056
        %1081 = vmatprep.subr.mxu0 0.0
        %1082 = vmatpush1.msra.mxu0 %v1057
        %1083 = vmatprep.subr.mxu0 0.0
        %1084 = vmatpush1.msra.mxu0 %v1058
        %1085 = vmatprep.subr.mxu0 0.0
        %1086 = vmatpush1.msra.mxu0 %v1059
        %1087 = vmatprep.subr.mxu0 0.0
        %1088 = vmatpush1.msra.mxu0 %v1060
        %1089 = vmatprep.subr.mxu0 0.0
        %1090 = vmatpush1.msra.mxu0 %v1061
        %1091 = vmatprep.subr.mxu0 0.0
        %1092 = vmatpush1.msra.mxu0 %v1062
        %1093 = vmatprep.subr.mxu0 0.0
        %1094 = vmatpush1.msra.mxu0 %v1063
        %1095 = vmatprep.subr.mxu0 0.0
        %1096 = vmatpush1.msra.mxu0 %v1064
        %1097 = vmatprep.subr.mxu0 0.0
        %1098 = vmatpush1.msra.mxu0 0.0
        %1099 = vmatprep.subr.mxu0 0.0
        %1100 = vmatpush1.msra.mxu0 0.0
        %1101 = vmatprep.subr.mxu0 0.0
        %1102 = vmatpush1.msra.mxu0 0.0
        %1103 = vmatprep.subr.mxu0 0.0
        %1104 = vmatpush1.msra.mxu0 0.0
        %1105 = vmatprep.subr.mxu0 0.0
        %1106 = vmatpush1.msra.mxu0 0.0
        %1107 = vmatprep.subr.mxu0 0.0
        %1108 = vmatpush1.msra.mxu0 0.0
        %1109 = vmatprep.subr.mxu0 0.0
        %1110 = vmatpush1.msra.mxu0 0.0
        %1111 = vmatprep.subr.mxu0 0.0
        %1112 = vmatpush1.msra.mxu0 0.0
        %1113 = vmatprep.subr.mxu0 0.0
        %1114 = vmatpush1.msra.mxu0 0.0
        %1115 = vmatprep.subr.mxu0 0.0
        %1116 = vmatpush1.msra.mxu0 0.0
        %1117 = vmatprep.subr.mxu0 0.0
        %1118 = vmatpush1.msra.mxu0 0.0
        %1119 = vmatprep.subr.mxu0 0.0
        %1120 = vmatpush1.msra.mxu0 0.0
        %1121 = vmatprep.subr.mxu0 0.0
        %1122 = vmatpush1.msra.mxu0 0.0
        %1123 = vmatprep.subr.mxu0 0.0
        %1124 = vmatpush1.msra.mxu0 0.0
        %1125 = vmatprep.subr.mxu0 0.0
        %1126 = vmatpush1.msra.mxu0 0.0
        %1127 = vmatprep.subr.mxu0 0.0
        %1128 = vmatpush1.msra.mxu0 0.0
        %1129 = vmatprep.mubr.f32.mxu0 0.0
        %1130 = vmatmul.mubr.f32.gmra.mrb[0].mxu0 %v1029
        %v1131 = vpop.f32.mrb[0].mxu0
        %v1132 = vadd.f32 0.0, %v1131
        %v1133 = vpop.f32.mrb[0].mxu0
        %1134 = vmatprep.mubr.f32.mxu0 0.0
        %1135 = vmatmul.mubr.f32.gmra.mrb[0].mxu0 %v1030
        %v1136 = vpop.f32.mrb[0].mxu0
        %v1137 = vadd.f32 0.0, %v1136
        %v1138 = vpop.f32.mrb[0].mxu0
        %1139 = vdwg.mxu0
        %vm1143 = vcmask 1041408
        %v1144 = vrot.slane %v1028, 6
        %v1145 = vrot.slane %v1029, 6
        %v1146 = vsel %vm1143, %v1144, %v1145
        %v1147 = vrot.slane %v1030, 6
        %v1148 = vsel %vm1143, %v1145, %v1147
        %1151 = vmatprep.subr.mxu0 0.0
        %1152 = vmatpush1.msra.mxu0 %v1032
        %1153 = vmatprep.subr.mxu0 0.0
        %1154 = vmatpush1.msra.mxu0 %v1033
        %1155 = vmatprep.subr.mxu0 0.0
        %1156 = vmatpush1.msra.mxu0 %v1034
        %1157 = vmatprep.subr.mxu0 0.0
        %1158 = vmatpush1.msra.mxu0 %v1035
        %1159 = vmatprep.subr.mxu0 0.0
        %1160 = vmatpush1.msra.mxu0 %v1036
        %1161 = vmatprep.subr.mxu0 0.0
        %1162 = vmatpush1.msra.mxu0 %v1037
        %1163 = vmatprep.subr.mxu0 0.0
        %1164 = vmatpush1.msra.mxu0 %v1038
        %1165 = vmatprep.subr.mxu0 0.0
        %1166 = vmatpush1.msra.mxu0 %v1039
        %1167 = vmatprep.subr.mxu0 0.0
        %1168 = vmatpush1.msra.mxu0 %v1040
        %1169 = vmatprep.subr.mxu0 0.0
        %1170 = vmatpush1.msra.mxu0 %v1041
        %1171 = vmatprep.subr.mxu0 0.0
        %1172 = vmatpush1.msra.mxu0 %v1042
        %1173 = vmatprep.subr.mxu0 0.0
        %1174 = vmatpush1.msra.mxu0 %v1043
        %1175 = vmatprep.subr.mxu0 0.0
        %1176 = vmatpush1.msra.mxu0 %v1044
        %1177 = vmatprep.subr.mxu0 0.0
        %1178 = vmatpush1.msra.mxu0 %v1045
        %1179 = vmatprep.subr.mxu0 0.0
        %1180 = vmatpush1.msra.mxu0 %v1046
        %1181 = vmatprep.subr.mxu0 0.0
        %1182 = vmatpush1.msra.mxu0 %v1047
        %1183 = vmatprep.subr.mxu0 0.0
        %1184 = vmatpush1.msra.mxu0 0.0
        %1185 = vmatprep.subr.mxu0 0.0
        %1186 = vmatpush1.msra.mxu0 0.0
        %1187 = vmatprep.subr.mxu0 0.0
        %1188 = vmatpush1.msra.mxu0 0.0
        %1189 = vmatprep.subr.mxu0 0.0
        %1190 = vmatpush1.msra.mxu0 0.0
        %1191 = vmatprep.subr.mxu0 0.0
        %1192 = vmatpush1.msra.mxu0 0.0
        %1193 = vmatprep.subr.mxu0 0.0
        %1194 = vmatpush1.msra.mxu0 0.0
        %1195 = vmatprep.subr.mxu0 0.0
        %1196 = vmatpush1.msra.mxu0 0.0
        %1197 = vmatprep.subr.mxu0 0.0
        %1198 = vmatpush1.msra.mxu0 0.0
        %1199 = vmatprep.subr.mxu0 0.0
        %1200 = vmatpush1.msra.mxu0 0.0
        %1201 = vmatprep.subr.mxu0 0.0
        %1202 = vmatpush1.msra.mxu0 0.0
        %1203 = vmatprep.subr.mxu0 0.0
        %1204 = vmatpush1.msra.mxu0 0.0
        %1205 = vmatprep.subr.mxu0 0.0
        %1206 = vmatpush1.msra.mxu0 0.0
        %1207 = vmatprep.subr.mxu0 0.0
        %1208 = vmatpush1.msra.mxu0 0.0
        %1209 = vmatprep.subr.mxu0 0.0
        %1210 = vmatpush1.msra.mxu0 0.0
        %1211 = vmatprep.subr.mxu0 0.0
        %1212 = vmatpush1.msra.mxu0 0.0
        %1213 = vmatprep.subr.mxu0 0.0
        %1214 = vmatpush1.msra.mxu0 0.0
        %1215 = vmatprep.mubr.f32.mxu0 0.0
        %1216 = vmatmul.mubr.f32.gmra.mrb[0].mxu0 %v1146
        %v1217 = vpop.f32.mrb[0].mxu0
        %v1218 = vadd.f32 %v1132, %v1217
        %v1219 = vpop.f32.mrb[0].mxu0
        %1220 = vmatprep.mubr.f32.mxu0 0.0
        %1221 = vmatmul.mubr.f32.gmra.mrb[0].mxu0 %v1148
        %v1222 = vpop.f32.mrb[0].mxu0
        %v1223 = vadd.f32 %v1137, %v1222
        %v1224 = vpop.f32.mrb[0].mxu0
        %1225 = vdwg.mxu0
        %s1226 = scalar_lea.vmem [#allocation10], 256
        %v1227 = vld [vmem:[%s1226] sm:$0xff]
        %v1228 = vld [vmem:[%s1226 + $0x8] sm:$0xff]
        %v1229 = vld [vmem:[%s1226 + $0x10] sm:$0xff]
        %v1230 = vld [vmem:[%s1226 + $0x18] sm:$0xff]
        %v1231 = vld [vmem:[%s1226 + $0x20] sm:$0xff]
        %v1232 = vld [vmem:[%s1226 + $0x28] sm:$0xff]
        %v1233 = vld [vmem:[%s1226 + $0x30] sm:$0xff]
        %v1234 = vld [vmem:[%s1226 + $0x38] sm:$0xff]
        %v1235 = vld [vmem:[%s1226 + $0x40] sm:$0xff]
        %v1236 = vld [vmem:[%s1226 + $0x48] sm:$0xff]
        %v1237 = vld [vmem:[%s1226 + $0x50] sm:$0xff]
        %v1238 = vld [vmem:[%s1226 + $0x58] sm:$0xff]
        %v1239 = vld [vmem:[%s1226 + $0x60] sm:$0xff]
        %v1240 = vld [vmem:[%s1226 + $0x68] sm:$0xff]
        %v1241 = vld [vmem:[%s1226 + $0x70] sm:$0xff]
        %v1242 = vld [vmem:[%s1226 + $0x78] sm:$0xff]
        %vm1244 = vcmask 1045504
        %v1245 = vrot.slane %v1029, 2
        %v1246 = vrot.slane %v1030, 2
        %v1247 = vsel %vm1244, %v1245, %v1246
        %v1248 = vrot.slane %v1031, 2
        %v1249 = vsel %vm1244, %v1246, %v1248
        %1252 = vmatprep.subr.mxu0 0.0
        %1253 = vmatpush1.msra.mxu0 %v1227
        %1254 = vmatprep.subr.mxu0 0.0
        %1255 = vmatpush1.msra.mxu0 %v1228
        %1256 = vmatprep.subr.mxu0 0.0
        %1257 = vmatpush1.msra.mxu0 %v1229
        %1258 = vmatprep.subr.mxu0 0.0
        %1259 = vmatpush1.msra.mxu0 %v1230
        %1260 = vmatprep.subr.mxu0 0.0
        %1261 = vmatpush1.msra.mxu0 %v1231
        %1262 = vmatprep.subr.mxu0 0.0
        %1263 = vmatpush1.msra.mxu0 %v1232
        %1264 = vmatprep.subr.mxu0 0.0
        %1265 = vmatpush1.msra.mxu0 %v1233
        %1266 = vmatprep.subr.mxu0 0.0
        %1267 = vmatpush1.msra.mxu0 %v1234
        %1268 = vmatprep.subr.mxu0 0.0
        %1269 = vmatpush1.msra.mxu0 %v1235
        %1270 = vmatprep.subr.mxu0 0.0
        %1271 = vmatpush1.msra.mxu0 %v1236
        %1272 = vmatprep.subr.mxu0 0.0
        %1273 = vmatpush1.msra.mxu0 %v1237
        %1274 = vmatprep.subr.mxu0 0.0
        %1275 = vmatpush1.msra.mxu0 %v1238
        %1276 = vmatprep.subr.mxu0 0.0
        %1277 = vmatpush1.msra.mxu0 %v1239
        %1278 = vmatprep.subr.mxu0 0.0
        %1279 = vmatpush1.msra.mxu0 %v1240
        %1280 = vmatprep.subr.mxu0 0.0
        %1281 = vmatpush1.msra.mxu0 %v1241
        %1282 = vmatprep.subr.mxu0 0.0
        %1283 = vmatpush1.msra.mxu0 %v1242
        %1284 = vmatprep.subr.mxu0 0.0
        %1285 = vmatpush1.msra.mxu0 0.0
        %1286 = vmatprep.subr.mxu0 0.0
        %1287 = vmatpush1.msra.mxu0 0.0
        %1288 = vmatprep.subr.mxu0 0.0
        %1289 = vmatpush1.msra.mxu0 0.0
        %1290 = vmatprep.subr.mxu0 0.0
        %1291 = vmatpush1.msra.mxu0 0.0
        %1292 = vmatprep.subr.mxu0 0.0
        %1293 = vmatpush1.msra.mxu0 0.0
        %1294 = vmatprep.subr.mxu0 0.0
        %1295 = vmatpush1.msra.mxu0 0.0
        %1296 = vmatprep.subr.mxu0 0.0
        %1297 = vmatpush1.msra.mxu0 0.0
        %1298 = vmatprep.subr.mxu0 0.0
        %1299 = vmatpush1.msra.mxu0 0.0
        %1300 = vmatprep.subr.mxu0 0.0
        %1301 = vmatpush1.msra.mxu0 0.0
        %1302 = vmatprep.subr.mxu0 0.0
        %1303 = vmatpush1.msra.mxu0 0.0
        %1304 = vmatprep.subr.mxu0 0.0
        %1305 = vmatpush1.msra.mxu0 0.0
        %1306 = vmatprep.subr.mxu0 0.0
        %1307 = vmatpush1.msra.mxu0 0.0
        %1308 = vmatprep.subr.mxu0 0.0
        %1309 = vmatpush1.msra.mxu0 0.0
        %1310 = vmatprep.subr.mxu0 0.0
        %1311 = vmatpush1.msra.mxu0 0.0
        %1312 = vmatprep.subr.mxu0 0.0
        %1313 = vmatpush1.msra.mxu0 0.0
        %1314 = vmatprep.subr.mxu0 0.0
        %1315 = vmatpush1.msra.mxu0 0.0
        %1316 = vmatprep.mubr.f32.mxu0 0.0
        %1317 = vmatmul.mubr.f32.gmra.mrb[0].mxu0 %v1247
        %v1318 = vpop.f32.mrb[0].mxu0
        %v1319 = vadd.f32 0.0, %v1318
        %v1320 = vpop.f32.mrb[0].mxu0
        %1321 = vmatprep.mubr.f32.mxu0 0.0
        %1322 = vmatmul.mubr.f32.gmra.mrb[0].mxu0 %v1249
        %v1323 = vpop.f32.mrb[0].mxu0
        %v1324 = vadd.f32 0.0, %v1323
        %v1325 = vpop.f32.mrb[0].mxu0
        %1326 = vdwg.mxu0
        %v1327 = vadd.f32 %v1218, %v1319
        %v1328 = vadd.f32 %v1223, %v1324
        %v1329 = vld [vmem:[%s10] sm:$0x1]
        %v1331 = vlaneseq
        %v1332 = vshrl.u32 %v1331, 7
        %v1333 = vsub.s32 0, %v1332
        %v1334 = vrot.slane %v1329, %v1333
        %v1336 = vadd.f32 %v1327, %v1334
        %v1337 = vadd.f32 %v1328, %v1334
        %v1338 = vld [vmem:[%s11] sm:$0x1]
        %v1339 = vld [vmem:[%s12] sm:$0x1]
        %1340 = vadd.xlane.f32.xlu0 %v1336
        %v1341 = vpop.xlane.xlu0 %1340
        %1342 = vadd.xlane.f32.xlu0 %v1337
        %v1343 = vpop.xlane.xlu0 %1342
        %v1344 = vmul.f32 %v1336, %v1336
        %v1345 = vmul.f32 %v1337, %v1337
        %1346 = vadd.xlane.f32.xlu0 %v1344
        %v1347 = vpop.xlane.xlu0 %1346
        %1348 = vadd.xlane.f32.xlu0 %v1345
        %v1349 = vpop.xlane.xlu0 %1348
        %v1350 = vmul.f32 %v1341, 0.015625
        %v1351 = vmul.f32 %v1343, 0.015625
        %v1352 = vmul.f32 %v1347, 0.015625
        %v1353 = vmul.f32 %v1349, 0.015625
        %v1354 = vmul.f32 %v1350, %v1350
        %v1355 = vmul.f32 %v1351, %v1351
        %v1356 = vsub.f32 %v1352, %v1354
        %v1357 = vsub.f32 %v1353, %v1355
        %v1358 = vmax.f32 %v1356, 0.0
        %v1359 = vmax.f32 %v1357, 0.0
        %v1360 = vsub.f32 %v1336, %v1350
        %v1361 = vsub.f32 %v1337, %v1351
        %v1362 = vadd.f32 %v1358, 1e-05
        %v1363 = vadd.f32 %v1359, 1e-05
        %v1364 = vrsqrt.pop %v1362
        %v1365 = vrsqrt.pop %v1363
        %v1366 = vmul.f32 %v1360, %v1364
        %v1367 = vmul.f32 %v1361, %v1365
        %v1369 = vlaneseq
        %v1370 = vshrl.u32 %v1369, 7
        %v1371 = vsub.s32 0, %v1370
        %v1372 = vrot.slane %v1338, %v1371
        %v1374 = vmul.f32 %v1366, %v1372
        %v1375 = vmul.f32 %v1367, %v1372
        %v1377 = vlaneseq
        %v1378 = vshrl.u32 %v1377, 7
        %v1379 = vsub.s32 0, %v1378
        %v1380 = vrot.slane %v1339, %v1379
        %v1382 = vadd.f32 %v1374, %v1380
        %v1383 = vadd.f32 %v1375, %v1380
        %v1384 = vmul.f32 %v1382, 0.5
        %v1385 = vmul.f32 %v1383, 0.5
        %v1386 = vmul.f32 %v1382, 0.70710677
        %v1387 = vmul.f32 %v1383, 0.70710677
        %v1388 = verf.f32.pop %v1386
        %v1389 = verf.f32.pop %v1387
        %v1390 = vadd.f32 %v1388, 1.0
        %v1391 = vadd.f32 %v1389, 1.0
        %v1392 = vmul.f32 %v1384, %v1390
        %v1393 = vmul.f32 %v1385, %v1391
        %v1394 = vld [vmem:[#allocation11] sm:$0xff]
        %v1395 = vld [vmem:[#allocation11 + $0x8] sm:$0xff]
        %v1396 = vld [vmem:[#allocation11 + $0x10] sm:$0xff]
        %v1397 = vld [vmem:[#allocation11 + $0x18] sm:$0xff]
        %v1398 = vld [vmem:[#allocation11 + $0x20] sm:$0xff]
        %v1399 = vld [vmem:[#allocation11 + $0x28] sm:$0xff]
        %v1400 = vld [vmem:[#allocation11 + $0x30] sm:$0xff]
        %v1401 = vld [vmem:[#allocation11 + $0x38] sm:$0xff]
        %v1402 = vld [vmem:[#allocation11 + $0x40] sm:$0xff]
        %v1403 = vld [vmem:[#allocation11 + $0x48] sm:$0xff]
        %v1404 = vld [vmem:[#allocation11 + $0x50] sm:$0xff]
        %v1405 = vld [vmem:[#allocation11 + $0x58] sm:$0xff]
        %v1406 = vld [vmem:[#allocation11 + $0x60] sm:$0xff]
        %v1407 = vld [vmem:[#allocation11 + $0x68] sm:$0xff]
        %v1408 = vld [vmem:[#allocation11 + $0x70] sm:$0xff]
        %v1409 = vld [vmem:[#allocation11 + $0x78] sm:$0xff]
        %v1410 = vld [vmem:[%s14] sm:$0x1]
        %v1412 = vlaneseq
        %v1413 = vshrl.u32 %v1412, 7
        %v1414 = vsub.s32 0, %v1413
        %v1415 = vrot.slane %v1410, %v1414
        %1417 = vmatprep.subr.mxu0 0.0
        %1418 = vmatpush1.msra.mxu0 %v1394
        %1419 = vmatprep.subr.mxu0 0.0
        %1420 = vmatpush1.msra.mxu0 %v1395
        %1421 = vmatprep.subr.mxu0 0.0
        %1422 = vmatpush1.msra.mxu0 %v1396
        %1423 = vmatprep.subr.mxu0 0.0
        %1424 = vmatpush1.msra.mxu0 %v1397
        %1425 = vmatprep.subr.mxu0 0.0
        %1426 = vmatpush1.msra.mxu0 %v1398
        %1427 = vmatprep.subr.mxu0 0.0
        %1428 = vmatpush1.msra.mxu0 %v1399
        %1429 = vmatprep.subr.mxu0 0.0
        %1430 = vmatpush1.msra.mxu0 %v1400
        %1431 = vmatprep.subr.mxu0 0.0
        %1432 = vmatpush1.msra.mxu0 %v1401
        %1433 = vmatprep.subr.mxu0 0.0
        %1434 = vmatpush1.msra.mxu0 %v1402
        %1435 = vmatprep.subr.mxu0 0.0
        %1436 = vmatpush1.msra.mxu0 %v1403
        %1437 = vmatprep.subr.mxu0 0.0
        %1438 = vmatpush1.msra.mxu0 %v1404
        %1439 = vmatprep.subr.mxu0 0.0
        %1440 = vmatpush1.msra.mxu0 %v1405
        %1441 = vmatprep.subr.mxu0 0.0
        %1442 = vmatpush1.msra.mxu0 %v1406
        %1443 = vmatprep.subr.mxu0 0.0
        %1444 = vmatpush1.msra.mxu0 %v1407
        %1445 = vmatprep.subr.mxu0 0.0
        %1446 = vmatpush1.msra.mxu0 %v1408
        %1447 = vmatprep.subr.mxu0 0.0
        %1448 = vmatpush1.msra.mxu0 %v1409
        %1449 = vmatprep.subr.mxu0 0.0
        %1450 = vmatpush1.msra.mxu0 0.0
        %1451 = vmatprep.subr.mxu0 0.0
        %1452 = vmatpush1.msra.mxu0 0.0
        %1453 = vmatprep.subr.mxu0 0.0
        %1454 = vmatpush1.msra.mxu0 0.0
        %1455 = vmatprep.subr.mxu0 0.0
        %1456 = vmatpush1.msra.mxu0 0.0
        %1457 = vmatprep.subr.mxu0 0.0
        %1458 = vmatpush1.msra.mxu0 0.0
        %1459 = vmatprep.subr.mxu0 0.0
        %1460 = vmatpush1.msra.mxu0 0.0
        %1461 = vmatprep.subr.mxu0 0.0
        %1462 = vmatpush1.msra.mxu0 0.0
        %1463 = vmatprep.subr.mxu0 0.0
        %1464 = vmatpush1.msra.mxu0 0.0
        %1465 = vmatprep.subr.mxu0 0.0
        %1466 = vmatpush1.msra.mxu0 0.0
        %1467 = vmatprep.subr.mxu0 0.0
        %1468 = vmatpush1.msra.mxu0 0.0
        %1469 = vmatprep.subr.mxu0 0.0
        %1470 = vmatpush1.msra.mxu0 0.0
        %1471 = vmatprep.subr.mxu0 0.0
        %1472 = vmatpush1.msra.mxu0 0.0
        %1473 = vmatprep.subr.mxu0 0.0
        %1474 = vmatpush1.msra.mxu0 0.0
        %1475 = vmatprep.subr.mxu0 0.0
        %1476 = vmatpush1.msra.mxu0 0.0
        %1477 = vmatprep.subr.mxu0 0.0
        %1478 = vmatpush1.msra.mxu0 0.0
        %1479 = vmatprep.subr.mxu0 0.0
        %1480 = vmatpush1.msra.mxu0 0.0
        %1481 = vmatprep.mubr.f32.mxu0 0.0
        %1482 = vmatmul.mubr.f32.gmra.mrb[0].mxu0 %v1392
        %v1483 = vpop.f32.mrb[0].mxu0
        %v1484 = vadd.f32 %v1415, %v1483
        %v1485 = vpop.f32.mrb[0].mxu0
        %1486 = vmatprep.mubr.f32.mxu0 0.0
        %1487 = vmatmul.mubr.f32.gmra.mrb[0].mxu0 %v1393
        %v1488 = vpop.f32.mrb[0].mxu0
        %v1489 = vadd.f32 %v1415, %v1488
        %v1490 = vpop.f32.mrb[0].mxu0
        %1491 = vdwg.mxu0
        %v1492 = vadd.f32 %v688, %v1484
        %v1493 = vadd.f32 %v689, %v1489
        %1494 = vst [vmem:[%s677] sm:$0xff] %v1492
        %1495 = vst [vmem:[%s677 + $0x8] sm:$0xff] %v1493
        %s1496 = sand.u32 %s411, 1
        %s1497 = scalar_lea.sflag [#allocation4], %s1496
        %s1498 = sand.u32 %s411, 1
        %s1499 = smul.addr %s1498, 16
        %s1500 = scalar_lea.vmem [#allocation13], %s1499
        // Predicated region
        $region105: #{tpu_custom_call.1} parent=79 // pred_check
          %p1501 = pneg %p421
        $region106: #{tpu_custom_call.1} parent=79 // pred_check_branch
          %1503 = sbr.rel (%p1501) target = $region108
        $region107: #{tpu_custom_call.1} parent=79 // pred_region
          %s1504 = smul.u32 2, %s42
          %s1506 = ssub.s32 256, 256
          %1507 = vsyncadd %s1497, %s1506
          %s1508 = smul.addr %s41, 2
          %s1509 = sadd.s32 %s1504, %s1508
          %s1510 = smul.addr %s1509, 128
          %s1511 = scalar_lea.hbm %s15, %s1510
          %s1512 = sshll.u32 %s1500, 4
          %s1513 = int_to_ptr.vmem [resolvable:$true] %s1512
          %1518 = dma.vmem_to_hbm [thread:$0]  %s1513, 256, %s1511, %s1497, 128, 128, 8
        $region108: #{tpu_custom_call.1} parent=79 // pred_fallthru
          _
      $region80: #{tpu_custom_call.1} parent=5 // pred_fallthru
        _
      %p1519 = scmp.le.s32.totalorder 2, %s32
      // Predicated region
      $region109: #{tpu_custom_call.1} parent=5 // pred_check
        %p1520 = pneg %p1519
      $region110: #{tpu_custom_call.1} parent=5 // pred_check_branch
        %1522 = sbr.rel (%p1520) target = $region112
      $region111: #{tpu_custom_call.1} parent=5 // pred_region
        %s1523 = ssub.s32 %s32, 2
        // Predicated region
        $region113: #{tpu_custom_call.1} parent=111 // pred_check
          %p1524 = pneg %p427
        $region114: #{tpu_custom_call.1} parent=111 // pred_check_branch
          %1526 = sbr.rel (%p1524) target = $region116
        $region115: #{tpu_custom_call.1} parent=111 // pred_region
          %s1527 = sand.u32 %s412, 1
          %s1528 = scalar_lea.sflag [#allocation4], %s1527
          %s1529 = sand.u32 %s412, 1
          %s1530 = smul.addr %s1529, 16
          %s1531 = scalar_lea.vmem [#allocation13], %s1530
          %1532 = dma.done %s1528, 256
        $region116: #{tpu_custom_call.1} parent=111 // pred_fallthru
          _
      $region112: #{tpu_custom_call.1} parent=5 // pred_fallthru
        _
    $region6: #{tpu_custom_call.1} parent=1 // loop_footer
      %s36 = sadd.s32 1, %s32
    $region7: #{tpu_custom_call.1} parent=1 // loop_footer_branch
      %31 = sbr.rel target = $region3
    $region8: #{tpu_custom_call.1} parent=1 // loop_exit
      _
    %1533 = vsyncpa [#allocation3], 1
    %s1534 = scalar_lea.sflag [#allocation3], 1
    %1535 = vsyncpa %s1534, 1
    %1536 = vsyncpa [#allocation6], 1
    %s1537 = scalar_lea.sflag [#allocation6], 1
    %1538 = vsyncpa %s1537, 1
    %1539 = vsyncpa [#allocation9], 1
    %1540 = vsyncpa [#allocation12], 1
    %1541 = vsyncpa [#allocation4], 1
    %s1542 = scalar_lea.sflag [#allocation4], 1
    %1543 = vsyncpa %s1542, 1

</llo_original>
